<compile_context>
chip_gen: v5e
topology: v5e:2x2
jax: 0.10.0
libtpu: 0.0.40
codegen_flags: <defaults>
</compile_context>

<pallas_src>
import math

import jax
import jax.numpy as jnp
from jax import lax
from jax.experimental import pallas as pl
from jax.experimental.pallas import tpu as pltpu

BN_EPS = 1e-5
F_PAD = 128          # every feature axis padded to one full lane tile
NEG_INF = -1e30      # finite "-inf" for the masked softmax
HIGHEST = lax.Precision.HIGHEST


# --------------------------------- kernel ----------------------------------- #
def build_kernel(encoder_dim, batch):
    """Kernel closure over the (static) layer widths and batch size."""
    dim = len(encoder_dim) - 1
    in_dim = encoder_dim[0]
    latent_dim = encoder_dim[-1]
    lat_off = in_dim                      # latent lives in lanes [lat_off, lat_off+latent_dim)
    assert max(encoder_dim) <= F_PAD, "feature widths must fit one lane tile"
    assert lat_off + latent_dim <= F_PAD, "x_hat + latent must fit one output tile"
    assert batch % 8 == 0, "batch must be a multiple of the 8-sublane tile"
    inv_b = 1.0 / batch

    def kernel(x_ref, w_ref, vecs_ref, out_ref):
        # Hoisted constants (JAX does not CSE broadcasts -> build them once).
        ones_bb = jnp.ones((8, batch), jnp.float32)     # aligned ones block for moment matmuls
        lane = lax.broadcasted_iota(jnp.int32, (batch, F_PAD), 1)

        def bn_relu(h, r):
            # Training-mode BatchNorm1d fused with ReLU, applied as one
            # scale/shift on the tile.  Batch moments via ones-matmuls on the
            # MXU (idle between layer matmuls), single-pass sum / sum-of-squares.
            gamma = vecs_ref[r:r + 1, :]
            beta = vecs_ref[r + 1:r + 2, :]
            s1 = jnp.dot(ones_bb, h, precision=HIGHEST,
                         preferred_element_type=jnp.float32)[0:1, :]
            s2 = jnp.dot(ones_bb, h * h, precision=HIGHEST,
                         preferred_element_type=jnp.float32)[0:1, :]
            mean = s1 * inv_b
            var = jnp.maximum(s2 * inv_b - mean * mean, 0.0)
            scale = gamma * lax.rsqrt(var + BN_EPS)       # padded lanes: gamma=0 -> scale=0
            shift = beta - mean * scale
            return jnp.maximum(h * scale + shift, 0.0)

        h = x_ref[...].astype(jnp.float32)

        # -------------------------------- encoder -------------------------------
        for i in range(dim):
            h = jnp.dot(h, w_ref[i], precision=HIGHEST,
                        preferred_element_type=jnp.float32)
            if i < dim - 1:
                # Pre-BN Linear bias omitted: train-mode BN subtracts the batch
                # mean, which cancels a per-feature constant exactly.
                h = bn_relu(h, 2 * i)
            else:
                # Bottleneck bias (feeds the softmax, so it does matter).
                h = h + vecs_ref[2 * (dim - 1):2 * (dim - 1) + 1, :]

        # Masked softmax over the latent lanes [lat_off, lat_off+latent_dim);
        # exact divide (approx reciprocal was the source of the x_hat mismatch).
        valid = (lane >= lat_off) & (lane < lat_off + latent_dim)
        logits = jnp.where(valid, h, NEG_INF)
        m = jnp.max(logits, axis=1, keepdims=True)
        e = jnp.where(valid, jnp.exp(logits - m), 0.0)
        latent = e / jnp.sum(e, axis=1, keepdims=True)    # zeros outside the latent lanes

        # -------------------------------- decoder -------------------------------
        h = latent
        base = 2 * (dim - 1) + 1
        for i in range(dim):
            h = jnp.dot(h, w_ref[dim + i], precision=HIGHEST,
                        preferred_element_type=jnp.float32)
            h = bn_relu(h, base + 2 * i)                  # pre-BN bias omitted (exact)

        # Single lane-dense output slab: x_hat in lanes [0, in_dim) (decoder
        # output; exactly zero elsewhere since padded gammas/betas are zero),
        # latent already sits in lanes [lat_off, ...).  Disjoint supports -> add.
        out_ref[...] = (h + latent).astype(out_ref.dtype)

    return kernel


# ------------------------------- parameters --------------------------------- #
def init_params(key, encoder_dim):
    """PyTorch-style init (U(-1/sqrt(fan_in), ...)) as per-layer dicts.

    gamma/beta are randomized (instead of the 1/0 defaults) so the BatchNorm
    path is actually exercised; pre-BN biases are generated too (the reference
    uses them, the kernel provably does not need them in train mode).
    """
    dim = len(encoder_dim) - 1
    dec_dim = list(reversed(encoder_dim))
    keys = iter(jax.random.split(key, 8 * dim))
    params = {"enc": [], "dec": []}

    for i in range(dim):
        fi, fo = encoder_dim[i], encoder_dim[i + 1]
        bound = 1.0 / math.sqrt(fi)
        layer = {
            "w": jax.random.uniform(next(keys), (fi, fo), jnp.float32, -bound, bound),
            "b": jax.random.uniform(next(keys), (1, fo), jnp.float32, -bound, bound),
        }
        if i < dim - 1:
            layer["gamma"] = jax.random.uniform(next(keys), (1, fo), jnp.float32, 0.5, 1.5)
            layer["beta"] = jax.random.uniform(next(keys), (1, fo), jnp.float32, -0.5, 0.5)
        params["enc"].append(layer)

    for i in range(dim):
        fi, fo = dec_dim[i], dec_dim[i + 1]
        bound = 1.0 / math.sqrt(fi)
        params["dec"].append({
            "w": jax.random.uniform(next(keys), (fi, fo), jnp.float32, -bound, bound),
            "b": jax.random.uniform(next(keys), (1, fo), jnp.float32, -bound, bound),
            "gamma": jax.random.uniform(next(keys), (1, fo), jnp.float32, 0.5, 1.5),
            "beta": jax.random.uniform(next(keys), (1, fo), jnp.float32, -0.5, 0.5),
        })
    return params


def pack_params(params, encoder_dim):
    """Pack params into (weight slab (2*dim,128,128), per-feature vecs (8,128)).

    Weight slab: every W zero-padded to (F_PAD, F_PAD).  The bottleneck weight's
    OUTPUT columns and the first decoder weight's INPUT rows are placed at lane
    offset `lat_off = encoder_dim[0]`, so the latent lives directly in the lanes
    where the packed output slab wants it (no roll/scatter in the kernel).

    vecs rows (static layout the kernel indexes by row):
      rows 2i, 2i+1             : encoder layer i gamma / beta   (i < dim-1)
      row  2(dim-1)             : bottleneck bias (at lanes [lat_off, ...))
      rows 2(dim-1)+1 + 2i, +1  : decoder layer i gamma / beta
    """
    dim = len(encoder_dim) - 1
    dec_dim = list(reversed(encoder_dim))
    lat_off = encoder_dim[0]
    latent_dim = encoder_dim[-1]

    ws = [l["w"] for l in params["enc"]] + [l["w"] for l in params["dec"]]
    wslab = jnp.zeros((2 * dim, F_PAD, F_PAD), jnp.float32)
    for k, w in enumerate(ws):
        fi, fo = w.shape
        r0 = lat_off if k == dim else 0        # decoder layer 0 reads the latent lanes
        c0 = lat_off if k == dim - 1 else 0    # bottleneck layer writes the latent lanes
        wslab = wslab.at[k, r0:r0 + fi, c0:c0 + fo].set(w)

    n_rows = 4 * dim - 1
    rows_pad = ((n_rows + 7) // 8) * 8
    vecs = jnp.zeros((rows_pad, F_PAD), jnp.float32)
    r = 0
    for i in range(dim - 1):
        fo = encoder_dim[i + 1]
        vecs = vecs.at[r, :fo].set(params["enc"][i]["gamma"][0])
        vecs = vecs.at[r + 1, :fo].set(params["enc"][i]["beta"][0])
        r += 2
    vecs = vecs.at[r, lat_off:lat_off + latent_dim].set(params["enc"][dim - 1]["b"][0])
    r += 1
    for i in range(dim):
        fo = dec_dim[i + 1]
        vecs = vecs.at[r, :fo].set(params["dec"][i]["gamma"][0])
        vecs = vecs.at[r + 1, :fo].set(params["dec"][i]["beta"][0])
        r += 2
    return wslab, vecs


# --------------------------------- wrapper ----------------------------------- #
def autoencoder_forward(x, wslab, vecs, encoder_dim):
    B = x.shape[0]
    dim = len(encoder_dim) - 1
    dec_dim = list(reversed(encoder_dim))
    in_dim = encoder_dim[0]
    latent_dim = encoder_dim[-1]
    lat_off = in_dim

    # Lane-dense input slab (single DMA, no masked partial loads).
    x_pad = jnp.zeros((B, F_PAD), jnp.float32).at[:, :in_dim].set(x)

    pairs = [(encoder_dim[i], encoder_dim[i + 1]) for i in range(dim)] + \
            [(dec_dim[i], dec_dim[i + 1]) for i in range(dim)]
    matmul_flops = 2 * B * sum(fi * fo for fi, fo in pairs)
    moment_flops = (2 * dim - 1) * 2 * (2 * 8 * B * F_PAD)
    cost = pl.CostEstimate(
        flops=matmul_flops + moment_flops,
        transcendentals=B * latent_dim + (2 * dim - 1) * F_PAD,
        bytes_accessed=4 * (x_pad.size + wslab.size + vecs.size + B * F_PAD),
    )

    vmem = pl.BlockSpec(memory_space=pltpu.MemorySpace.VMEM)
    out = pl.pallas_call(
        build_kernel(encoder_dim, B),
        out_shape=jax.ShapeDtypeStruct((B, F_PAD), jnp.float32),
        in_specs=[vmem, vmem, vmem],
        out_specs=vmem,
        cost_estimate=cost,
    )(x_pad, wslab, vecs)

    x_hat = out[:, :in_dim]
    latent = out[:, lat_off:lat_off + latent_dim]
    return x_hat, latent


# ---------------------- pure-JAX reference (for checking) -------------------- #
def _bn_ref(x, gamma, beta):
    mean = jnp.mean(x, axis=0, keepdims=True)
    var = jnp.mean((x - mean) ** 2, axis=0, keepdims=True)
    return (x - mean) / jnp.sqrt(var + BN_EPS) * gamma + beta


def autoencoder_ref(x, params, encoder_dim):
    """Faithful re-implementation of the PyTorch forward (all biases included)."""
    dim = len(encoder_dim) - 1
    h = x.astype(jnp.float32)
    for i, layer in enumerate(params["enc"]):
        h = jnp.dot(h, layer["w"], precision=HIGHEST) + layer["b"]
        if i < dim - 1:
            h = jnp.maximum(_bn_ref(h, layer["gamma"], layer["beta"]), 0.0)
    latent = jax.nn.softmax(h, axis=1)
    h = latent
    for layer in params["dec"]:
        h = jnp.dot(h, layer["w"], precision=HIGHEST) + layer["b"]
        h = jnp.maximum(_bn_ref(h, layer["gamma"], layer["beta"]), 0.0)
    return h, latent


# ----------------------------------- main ------------------------------------ #
if __name__ == "__main__":
    encoder_dim = [32, 64, 16]   # input 32 -> hidden 64 -> latent 16
    batch = 128                  # fills MXU rows; amortizes the fixed launch/DMA cost

    key = jax.random.PRNGKey(0)
    kx, kp = jax.random.split(key)
    x = jax.random.normal(kx, (batch, encoder_dim[0]), jnp.float32)
    params = init_params(kp, encoder_dim)
    wslab, vecs = pack_params(params, encoder_dim)

    x_hat, latent = autoencoder_forward(x, wslab, vecs, encoder_dim)
    jax.block_until_ready((x_hat, latent))

    x_hat_ref, latent_ref = autoencoder_ref(x, params, encoder_dim)
    assert x_hat.shape == (batch, encoder_dim[0])
    assert latent.shape == (batch, encoder_dim[-1])
    # Tolerance covers f32 rounding-order differences amplified by the
    # training-mode BatchNorm normalization (bounded by gamma/sqrt(var+eps)).
    assert jnp.allclose(latent, latent_ref, rtol=2e-3, atol=2e-3)
    assert jnp.allclose(x_hat, x_hat_ref, rtol=2e-3, atol=2e-3)

    print("KERNEL_OK")
</pallas_src>

<mosaic_0001>
module attributes {stable_mosaic.version = 11 : i64} {
  func.func @kernel(%arg0: memref<128x128xf32, #tpu.memory_space<vmem>>, %arg1: memref<4x128x128xf32, #tpu.memory_space<vmem>>, %arg2: memref<8x128xf32, #tpu.memory_space<vmem>>, %arg3: memref<128x128xf32, #tpu.memory_space<vmem>>) attributes {dimension_semantics = [], scalar_prefetch = 0 : i64, scratch_operands = 0 : i64, tpu.core_type = #tpu.core_type<tc>} {
    %cst = arith.constant 1.000000e+00 : f32
    %0 = vector.broadcast %cst : f32 to vector<8x128xf32>
    %1 = tpu.iota {dimensions = array<i32: 1>} : vector<128x128xi32>
    %c0 = arith.constant 0 : index
    %c0_0 = arith.constant 0 : index
    %2 = vector.load %arg0[%c0, %c0_0] : memref<128x128xf32, #tpu.memory_space<vmem>>, vector<128x128xf32>
    %c0_1 = arith.constant 0 : index
    %c0_2 = arith.constant 0 : index
    %c0_3 = arith.constant 0 : index
    %3 = vector.load %arg1[%c0_1, %c0_2, %c0_3] : memref<4x128x128xf32, #tpu.memory_space<vmem>>, vector<1x128x128xf32>
    %4 = vector.shape_cast %3 : vector<1x128x128xf32> to vector<128x128xf32>
    %cst_4 = arith.constant dense<0.000000e+00> : vector<128x128xf32>
    %5 = tpu.matmul %2, %4, %cst_4 {dimension_numbers = #tpu.dot_dimension_numbers<[1], [0], [0], [1], [0, 0, 1, 1], [], []>, precision = #tpu.contract_precision<fp32>} : vector<128x128xf32>, vector<128x128xf32>, vector<128x128xf32> -> vector<128x128xf32>
    %c0_5 = arith.constant 0 : index
    %c0_6 = arith.constant 0 : index
    %6 = vector.load %arg2[%c0_5, %c0_6] : memref<8x128xf32, #tpu.memory_space<vmem>>, vector<1x128xf32>
    %c1 = arith.constant 1 : index
    %c0_7 = arith.constant 0 : index
    %7 = vector.load %arg2[%c1, %c0_7] : memref<8x128xf32, #tpu.memory_space<vmem>>, vector<1x128xf32>
    %cst_8 = arith.constant dense<0.000000e+00> : vector<8x128xf32>
    %8 = tpu.matmul %0, %5, %cst_8 {dimension_numbers = #tpu.dot_dimension_numbers<[1], [0], [0], [1], [0, 0, 1, 1], [], []>, precision = #tpu.contract_precision<fp32>} : vector<8x128xf32>, vector<128x128xf32>, vector<8x128xf32> -> vector<8x128xf32>
    %9 = vector.extract_strided_slice %8 {offsets = [0, 0], sizes = [1, 128], strides = [1, 1]} : vector<8x128xf32> to vector<1x128xf32>
    %10 = arith.mulf %5, %5 : vector<128x128xf32>
    %cst_9 = arith.constant dense<0.000000e+00> : vector<8x128xf32>
    %11 = tpu.matmul %0, %10, %cst_9 {dimension_numbers = #tpu.dot_dimension_numbers<[1], [0], [0], [1], [0, 0, 1, 1], [], []>, precision = #tpu.contract_precision<fp32>} : vector<8x128xf32>, vector<128x128xf32>, vector<8x128xf32> -> vector<8x128xf32>
    %12 = vector.extract_strided_slice %11 {offsets = [0, 0], sizes = [1, 128], strides = [1, 1]} : vector<8x128xf32> to vector<1x128xf32>
    %cst_10 = arith.constant 7.812500e-03 : f32
    %13 = vector.broadcast %cst_10 : f32 to vector<1x128xf32>
    %14 = arith.mulf %9, %13 : vector<1x128xf32>
    %cst_11 = arith.constant 7.812500e-03 : f32
    %15 = vector.broadcast %cst_11 : f32 to vector<1x128xf32>
    %16 = arith.mulf %12, %15 : vector<1x128xf32>
    %17 = arith.mulf %14, %14 : vector<1x128xf32>
    %18 = arith.subf %16, %17 : vector<1x128xf32>
    %cst_12 = arith.constant 0.000000e+00 : f32
    %19 = vector.broadcast %cst_12 : f32 to vector<1x128xf32>
    %20 = arith.maximumf %18, %19 : vector<1x128xf32>
    %cst_13 = arith.constant 9.99999974E-6 : f32
    %21 = vector.broadcast %cst_13 : f32 to vector<1x128xf32>
    %22 = arith.addf %20, %21 : vector<1x128xf32>
    %23 = math.rsqrt %22 : vector<1x128xf32>
    %24 = arith.mulf %6, %23 : vector<1x128xf32>
    %25 = arith.mulf %14, %24 : vector<1x128xf32>
    %26 = arith.subf %7, %25 : vector<1x128xf32>
    %27 = vector.broadcast %24 : vector<1x128xf32> to vector<128x128xf32>
    %28 = arith.mulf %5, %27 : vector<128x128xf32>
    %29 = vector.broadcast %26 : vector<1x128xf32> to vector<128x128xf32>
    %30 = arith.addf %28, %29 : vector<128x128xf32>
    %cst_14 = arith.constant 0.000000e+00 : f32
    %31 = vector.broadcast %cst_14 : f32 to vector<128x128xf32>
    %32 = arith.maximumf %30, %31 : vector<128x128xf32>
    %c1_15 = arith.constant 1 : index
    %c0_16 = arith.constant 0 : index
    %c0_17 = arith.constant 0 : index
    %33 = vector.load %arg1[%c1_15, %c0_16, %c0_17] : memref<4x128x128xf32, #tpu.memory_space<vmem>>, vector<1x128x128xf32>
    %34 = vector.shape_cast %33 : vector<1x128x128xf32> to vector<128x128xf32>
    %cst_18 = arith.constant dense<0.000000e+00> : vector<128x128xf32>
    %35 = tpu.matmul %32, %34, %cst_18 {dimension_numbers = #tpu.dot_dimension_numbers<[1], [0], [0], [1], [0, 0, 1, 1], [], []>, precision = #tpu.contract_precision<fp32>} : vector<128x128xf32>, vector<128x128xf32>, vector<128x128xf32> -> vector<128x128xf32>
    %c2 = arith.constant 2 : index
    %c0_19 = arith.constant 0 : index
    %36 = vector.load %arg2[%c2, %c0_19] : memref<8x128xf32, #tpu.memory_space<vmem>>, vector<1x128xf32>
    %37 = vector.broadcast %36 : vector<1x128xf32> to vector<128x128xf32>
    %38 = arith.addf %35, %37 : vector<128x128xf32>
    %c32_i32 = arith.constant 32 : i32
    %39 = vector.broadcast %c32_i32 : i32 to vector<128x128xi32>
    %40 = arith.cmpi sge, %1, %39 : vector<128x128xi32>
    %c48_i32 = arith.constant 48 : i32
    %41 = vector.broadcast %c48_i32 : i32 to vector<128x128xi32>
    %42 = arith.cmpi slt, %1, %41 : vector<128x128xi32>
    %43 = arith.andi %40, %42 : vector<128x128xi1>
    %cst_20 = arith.constant -1.000000e+30 : f32
    %44 = vector.broadcast %cst_20 : f32 to vector<128x128xf32>
    %45 = arith.select %43, %38, %44 : vector<128x128xi1>, vector<128x128xf32>
    %cst_21 = arith.constant dense<0xFF800000> : vector<128xf32>
    %46 = vector.multi_reduction <maximumf>, %45, %cst_21 [1] : vector<128x128xf32> to vector<128xf32>
    %47 = vector.shape_cast %46 : vector<128xf32> to vector<128x1xf32>
    %48 = vector.broadcast %47 : vector<128x1xf32> to vector<128x128xf32>
    %49 = arith.subf %45, %48 : vector<128x128xf32>
    %50 = math.exp %49 : vector<128x128xf32>
    %cst_22 = arith.constant 0.000000e+00 : f32
    %51 = vector.broadcast %cst_22 : f32 to vector<128x128xf32>
    %52 = arith.select %43, %50, %51 : vector<128x128xi1>, vector<128x128xf32>
    %cst_23 = arith.constant dense<0.000000e+00> : vector<128xf32>
    %53 = vector.multi_reduction <add>, %52, %cst_23 [1] : vector<128x128xf32> to vector<128xf32>
    %54 = vector.shape_cast %53 : vector<128xf32> to vector<128x1xf32>
    %55 = vector.broadcast %54 : vector<128x1xf32> to vector<128x128xf32>
    %56 = arith.divf %52, %55 : vector<128x128xf32>
    %c2_24 = arith.constant 2 : index
    %c0_25 = arith.constant 0 : index
    %c0_26 = arith.constant 0 : index
    %57 = vector.load %arg1[%c2_24, %c0_25, %c0_26] : memref<4x128x128xf32, #tpu.memory_space<vmem>>, vector<1x128x128xf32>
    %58 = vector.shape_cast %57 : vector<1x128x128xf32> to vector<128x128xf32>
    %cst_27 = arith.constant dense<0.000000e+00> : vector<128x128xf32>
    %59 = tpu.matmul %56, %58, %cst_27 {dimension_numbers = #tpu.dot_dimension_numbers<[1], [0], [0], [1], [0, 0, 1, 1], [], []>, precision = #tpu.contract_precision<fp32>} : vector<128x128xf32>, vector<128x128xf32>, vector<128x128xf32> -> vector<128x128xf32>
    %c3 = arith.constant 3 : index
    %c0_28 = arith.constant 0 : index
    %60 = vector.load %arg2[%c3, %c0_28] : memref<8x128xf32, #tpu.memory_space<vmem>>, vector<1x128xf32>
    %c4 = arith.constant 4 : index
    %c0_29 = arith.constant 0 : index
    %61 = vector.load %arg2[%c4, %c0_29] : memref<8x128xf32, #tpu.memory_space<vmem>>, vector<1x128xf32>
    %cst_30 = arith.constant dense<0.000000e+00> : vector<8x128xf32>
    %62 = tpu.matmul %0, %59, %cst_30 {dimension_numbers = #tpu.dot_dimension_numbers<[1], [0], [0], [1], [0, 0, 1, 1], [], []>, precision = #tpu.contract_precision<fp32>} : vector<8x128xf32>, vector<128x128xf32>, vector<8x128xf32> -> vector<8x128xf32>
    %63 = vector.extract_strided_slice %62 {offsets = [0, 0], sizes = [1, 128], strides = [1, 1]} : vector<8x128xf32> to vector<1x128xf32>
    %64 = arith.mulf %59, %59 : vector<128x128xf32>
    %cst_31 = arith.constant dense<0.000000e+00> : vector<8x128xf32>
    %65 = tpu.matmul %0, %64, %cst_31 {dimension_numbers = #tpu.dot_dimension_numbers<[1], [0], [0], [1], [0, 0, 1, 1], [], []>, precision = #tpu.contract_precision<fp32>} : vector<8x128xf32>, vector<128x128xf32>, vector<8x128xf32> -> vector<8x128xf32>
    %66 = vector.extract_strided_slice %65 {offsets = [0, 0], sizes = [1, 128], strides = [1, 1]} : vector<8x128xf32> to vector<1x128xf32>
    %cst_32 = arith.constant 7.812500e-03 : f32
    %67 = vector.broadcast %cst_32 : f32 to vector<1x128xf32>
    %68 = arith.mulf %63, %67 : vector<1x128xf32>
    %cst_33 = arith.constant 7.812500e-03 : f32
    %69 = vector.broadcast %cst_33 : f32 to vector<1x128xf32>
    %70 = arith.mulf %66, %69 : vector<1x128xf32>
    %71 = arith.mulf %68, %68 : vector<1x128xf32>
    %72 = arith.subf %70, %71 : vector<1x128xf32>
    %cst_34 = arith.constant 0.000000e+00 : f32
    %73 = vector.broadcast %cst_34 : f32 to vector<1x128xf32>
    %74 = arith.maximumf %72, %73 : vector<1x128xf32>
    %cst_35 = arith.constant 9.99999974E-6 : f32
    %75 = vector.broadcast %cst_35 : f32 to vector<1x128xf32>
    %76 = arith.addf %74, %75 : vector<1x128xf32>
    %77 = math.rsqrt %76 : vector<1x128xf32>
    %78 = arith.mulf %60, %77 : vector<1x128xf32>
    %79 = arith.mulf %68, %78 : vector<1x128xf32>
    %80 = arith.subf %61, %79 : vector<1x128xf32>
    %81 = vector.broadcast %78 : vector<1x128xf32> to vector<128x128xf32>
    %82 = arith.mulf %59, %81 : vector<128x128xf32>
    %83 = vector.broadcast %80 : vector<1x128xf32> to vector<128x128xf32>
    %84 = arith.addf %82, %83 : vector<128x128xf32>
    %cst_36 = arith.constant 0.000000e+00 : f32
    %85 = vector.broadcast %cst_36 : f32 to vector<128x128xf32>
    %86 = arith.maximumf %84, %85 : vector<128x128xf32>
    %c3_37 = arith.constant 3 : index
    %c0_38 = arith.constant 0 : index
    %c0_39 = arith.constant 0 : index
    %87 = vector.load %arg1[%c3_37, %c0_38, %c0_39] : memref<4x128x128xf32, #tpu.memory_space<vmem>>, vector<1x128x128xf32>
    %88 = vector.shape_cast %87 : vector<1x128x128xf32> to vector<128x128xf32>
    %cst_40 = arith.constant dense<0.000000e+00> : vector<128x128xf32>
    %89 = tpu.matmul %86, %88, %cst_40 {dimension_numbers = #tpu.dot_dimension_numbers<[1], [0], [0], [1], [0, 0, 1, 1], [], []>, precision = #tpu.contract_precision<fp32>} : vector<128x128xf32>, vector<128x128xf32>, vector<128x128xf32> -> vector<128x128xf32>
    %c5 = arith.constant 5 : index
    %c0_41 = arith.constant 0 : index
    %90 = vector.load %arg2[%c5, %c0_41] : memref<8x128xf32, #tpu.memory_space<vmem>>, vector<1x128xf32>
    %c6 = arith.constant 6 : index
    %c0_42 = arith.constant 0 : index
    %91 = vector.load %arg2[%c6, %c0_42] : memref<8x128xf32, #tpu.memory_space<vmem>>, vector<1x128xf32>
    %cst_43 = arith.constant dense<0.000000e+00> : vector<8x128xf32>
    %92 = tpu.matmul %0, %89, %cst_43 {dimension_numbers = #tpu.dot_dimension_numbers<[1], [0], [0], [1], [0, 0, 1, 1], [], []>, precision = #tpu.contract_precision<fp32>} : vector<8x128xf32>, vector<128x128xf32>, vector<8x128xf32> -> vector<8x128xf32>
    %93 = vector.extract_strided_slice %92 {offsets = [0, 0], sizes = [1, 128], strides = [1, 1]} : vector<8x128xf32> to vector<1x128xf32>
    %94 = arith.mulf %89, %89 : vector<128x128xf32>
    %cst_44 = arith.constant dense<0.000000e+00> : vector<8x128xf32>
    %95 = tpu.matmul %0, %94, %cst_44 {dimension_numbers = #tpu.dot_dimension_numbers<[1], [0], [0], [1], [0, 0, 1, 1], [], []>, precision = #tpu.contract_precision<fp32>} : vector<8x128xf32>, vector<128x128xf32>, vector<8x128xf32> -> vector<8x128xf32>
    %96 = vector.extract_strided_slice %95 {offsets = [0, 0], sizes = [1, 128], strides = [1, 1]} : vector<8x128xf32> to vector<1x128xf32>
    %cst_45 = arith.constant 7.812500e-03 : f32
    %97 = vector.broadcast %cst_45 : f32 to vector<1x128xf32>
    %98 = arith.mulf %93, %97 : vector<1x128xf32>
    %cst_46 = arith.constant 7.812500e-03 : f32
    %99 = vector.broadcast %cst_46 : f32 to vector<1x128xf32>
    %100 = arith.mulf %96, %99 : vector<1x128xf32>
    %101 = arith.mulf %98, %98 : vector<1x128xf32>
    %102 = arith.subf %100, %101 : vector<1x128xf32>
    %cst_47 = arith.constant 0.000000e+00 : f32
    %103 = vector.broadcast %cst_47 : f32 to vector<1x128xf32>
    %104 = arith.maximumf %102, %103 : vector<1x128xf32>
    %cst_48 = arith.constant 9.99999974E-6 : f32
    %105 = vector.broadcast %cst_48 : f32 to vector<1x128xf32>
    %106 = arith.addf %104, %105 : vector<1x128xf32>
    %107 = math.rsqrt %106 : vector<1x128xf32>
    %108 = arith.mulf %90, %107 : vector<1x128xf32>
    %109 = arith.mulf %98, %108 : vector<1x128xf32>
    %110 = arith.subf %91, %109 : vector<1x128xf32>
    %111 = vector.broadcast %108 : vector<1x128xf32> to vector<128x128xf32>
    %112 = arith.mulf %89, %111 : vector<128x128xf32>
    %113 = vector.broadcast %110 : vector<1x128xf32> to vector<128x128xf32>
    %114 = arith.addf %112, %113 : vector<128x128xf32>
    %cst_49 = arith.constant 0.000000e+00 : f32
    %115 = vector.broadcast %cst_49 : f32 to vector<128x128xf32>
    %116 = arith.maximumf %114, %115 : vector<128x128xf32>
    %117 = arith.addf %116, %56 : vector<128x128xf32>
    %c0_50 = arith.constant 0 : index
    %c0_51 = arith.constant 0 : index
    %118 = vector.load %arg3[%c0_50, %c0_51] : memref<128x128xf32, #tpu.memory_space<vmem>>, vector<128x128xf32>
    tpu.vector_store %arg3[%c0_50, %c0_51], %117 {strides = array<i32>} : memref<128x128xf32, #tpu.memory_space<vmem>>, vector<128x128xf32>,
    return
  }
}

</mosaic_0001>

<llo_original>
// kernel: tpu_custom_call.1
$region0: #{tpu_custom_call.1}
  #allocation0 [shape = 'u32[]', space=smem, size = 0x4, offset = 0x4, fixed_abs, tag = 'smem constant byte address 0x4 - core index']
  #allocation1 [shape = 'u32[72,128]{1,0:T(1,128)}', space=vmem, size = 0x9000, scoped, tag = 'internal scratch']
  %s0 = inlined_call_operand.hbm [shape: f32[128,128], index: 0, kind: input, shape index: {}]
  %s1 = inlined_call_operand.hbm [shape: f32[4,128,128], index: 1, kind: input, shape index: {}]
  %s2 = inlined_call_operand.hbm [shape: f32[8,128], index: 2, kind: input, shape index: {}]
  %s3 = inlined_call_operand.hbm [shape: f32[128,128], index: 3, kind: output, shape index: {}]
  %s4 = sld [smem:[#allocation0]]
  $region34: #{tpu_custom_call.1} parent=0
    _
  %s6 = ssub.s32 1, %s4
  %s7 = scalar_select 0, %s6, %s4
  $region1: #{tpu_custom_call.1} parent=0
    #allocation2 [shape = 'u8[65536]{0}', space=vmem, size = 0x10000, scoped, tag = 'input window, operand 0, single buffered']
    #allocation3 [shape = 's32[1]{0}', space=sflag, size = 0x4, scoped, tag = 'scoped memory for tpu_custom_call.1']
    #allocation4 [shape = 's32[1]{0}', space=sflag, size = 0x4, scoped, tag = 'scoped memory for tpu_custom_call.1']
    #allocation5 [shape = 'u8[262144]{0}', space=vmem, size = 0x40000, scoped, tag = 'input window, operand 1, single buffered']
    #allocation6 [shape = 's32[1]{0}', space=sflag, size = 0x4, scoped, tag = 'scoped memory for tpu_custom_call.1']
    #allocation7 [shape = 'u8[4096]{0}', space=vmem, size = 0x1000, scoped, tag = 'input window, operand 2, single buffered']
    #allocation8 [shape = 'u8[65536]{0}', space=vmem, size = 0x10000, scoped, tag = 'output window, operand 0, single buffered']
    %8 = vsyncpa [#allocation3], 0
    %9 = vsyncpa [#allocation6], 0
    %10 = vsyncpa [#allocation4], 0
    // Predicated region
    $region2: #{tpu_custom_call.1} parent=1 // pred_check
      _
    $region3: #{tpu_custom_call.1} parent=1 // pred_check_branch
      %12 = sbr.rel (0) target = $region5
    $region4: #{tpu_custom_call.1} parent=1 // pred_region
      %14 = vsyncadd [#allocation3], 0
      %s15 = sshll.u32 %s0, 4
      %s16 = int_to_ptr.hbm [resolvable:$true] %s15
      %s17 = sshll.u32 [#allocation2], 4
      %s18 = int_to_ptr.vmem [resolvable:$true] %s17
      %23 = dma.hbm_to_vmem [thread:$0]  %s16, 2048, %s18, [#allocation3], 128, 128, 8
    $region5: #{tpu_custom_call.1} parent=1 // pred_fallthru
      _
    // Predicated region
    $region6: #{tpu_custom_call.1} parent=1 // pred_check
      _
    $region7: #{tpu_custom_call.1} parent=1 // pred_check_branch
      %25 = sbr.rel (0) target = $region9
    $region8: #{tpu_custom_call.1} parent=1 // pred_region
      %27 = vsyncadd [#allocation6], 0
      %s28 = sshll.u32 %s1, 4
      %s29 = int_to_ptr.hbm [resolvable:$true] %s28
      %s30 = sshll.u32 [#allocation5], 4
      %s31 = int_to_ptr.vmem [resolvable:$true] %s30
      %36 = dma.hbm_to_vmem [thread:$0]  %s29, 8192, %s31, [#allocation6], 128, 128, 8
    $region9: #{tpu_custom_call.1} parent=1 // pred_fallthru
      _
    // Predicated region
    $region10: #{tpu_custom_call.1} parent=1 // pred_check
      _
    $region11: #{tpu_custom_call.1} parent=1 // pred_check_branch
      %38 = sbr.rel (0) target = $region13
    $region12: #{tpu_custom_call.1} parent=1 // pred_region
      %40 = vsyncadd [#allocation6], 0
      %s42 = sshll.u32 %s2, 4
      %s43 = int_to_ptr.hbm [resolvable:$true] %s42
      %s44 = sshll.u32 [#allocation7], 4
      %s45 = int_to_ptr.vmem [resolvable:$true] %s44
      %47 = dma.hbm_to_vmem [thread:$0]  %s43, 128, %s45, [#allocation6]
    $region13: #{tpu_custom_call.1} parent=1 // pred_fallthru
      _
    // Predicated region
    $region14: #{tpu_custom_call.1} parent=1 // pred_check
      _
    $region15: #{tpu_custom_call.1} parent=1 // pred_check_branch
      %49 = sbr.rel (0) target = $region17
    $region16: #{tpu_custom_call.1} parent=1 // pred_region
      %51 = dma.done [#allocation3], 2048
    $region17: #{tpu_custom_call.1} parent=1 // pred_fallthru
      _
    // Predicated region
    $region18: #{tpu_custom_call.1} parent=1 // pred_check
      _
    $region19: #{tpu_custom_call.1} parent=1 // pred_check_branch
      %53 = sbr.rel (0) target = $region21
    $region20: #{tpu_custom_call.1} parent=1 // pred_region
      %55 = dma.done [#allocation6], 8192
    $region21: #{tpu_custom_call.1} parent=1 // pred_fallthru
      _
    // Predicated region
    $region22: #{tpu_custom_call.1} parent=1 // pred_check
      _
    $region23: #{tpu_custom_call.1} parent=1 // pred_check_branch
      %57 = sbr.rel (0) target = $region25
    $region24: #{tpu_custom_call.1} parent=1 // pred_region
      %59 = dma.done [#allocation6], 128
    $region25: #{tpu_custom_call.1} parent=1 // pred_fallthru
      _
    %v60 = vlaneseq
    %v61 = vand.u32 %v60, 127
    %v62 = vld [vmem:[#allocation2] sm:$0xff]
    %v63 = vld [vmem:[#allocation2 + $0x8] sm:$0xff]
    %v64 = vld [vmem:[#allocation2 + $0x10] sm:$0xff]
    %v65 = vld [vmem:[#allocation2 + $0x18] sm:$0xff]
    %v66 = vld [vmem:[#allocation2 + $0x20] sm:$0xff]
    %v67 = vld [vmem:[#allocation2 + $0x28] sm:$0xff]
    %v68 = vld [vmem:[#allocation2 + $0x30] sm:$0xff]
    %v69 = vld [vmem:[#allocation2 + $0x38] sm:$0xff]
    %v70 = vld [vmem:[#allocation2 + $0x40] sm:$0xff]
    %v71 = vld [vmem:[#allocation2 + $0x48] sm:$0xff]
    %v72 = vld [vmem:[#allocation2 + $0x50] sm:$0xff]
    %v73 = vld [vmem:[#allocation2 + $0x58] sm:$0xff]
    %v74 = vld [vmem:[#allocation2 + $0x60] sm:$0xff]
    %v75 = vld [vmem:[#allocation2 + $0x68] sm:$0xff]
    %v76 = vld [vmem:[#allocation2 + $0x70] sm:$0xff]
    %v77 = vld [vmem:[#allocation2 + $0x78] sm:$0xff]
    %v78 = vld [vmem:[#allocation5] sm:$0xff]
    %v79 = vld [vmem:[#allocation5 + $0x8] sm:$0xff]
    %v80 = vld [vmem:[#allocation5 + $0x10] sm:$0xff]
    %v81 = vld [vmem:[#allocation5 + $0x18] sm:$0xff]
    %v82 = vld [vmem:[#allocation5 + $0x20] sm:$0xff]
    %v83 = vld [vmem:[#allocation5 + $0x28] sm:$0xff]
    %v84 = vld [vmem:[#allocation5 + $0x30] sm:$0xff]
    %v85 = vld [vmem:[#allocation5 + $0x38] sm:$0xff]
    %v86 = vld [vmem:[#allocation5 + $0x40] sm:$0xff]
    %v87 = vld [vmem:[#allocation5 + $0x48] sm:$0xff]
    %v88 = vld [vmem:[#allocation5 + $0x50] sm:$0xff]
    %v89 = vld [vmem:[#allocation5 + $0x58] sm:$0xff]
    %v90 = vld [vmem:[#allocation5 + $0x60] sm:$0xff]
    %v91 = vld [vmem:[#allocation5 + $0x68] sm:$0xff]
    %v92 = vld [vmem:[#allocation5 + $0x70] sm:$0xff]
    %v93 = vld [vmem:[#allocation5 + $0x78] sm:$0xff]
    %v94 = vand.u32 %v93, 4294901760
    %95 = vmatpush.msra.mxu0 %v94
    %v96 = vand.u32 %v92, 4294901760
    %97 = vmatpush.msra.mxu0 %v96
    %v98 = vand.u32 %v91, 4294901760
    %99 = vmatpush.msra.mxu0 %v98
    %v100 = vand.u32 %v90, 4294901760
    %101 = vmatpush.msra.mxu0 %v100
    %v102 = vand.u32 %v89, 4294901760
    %103 = vmatpush.msra.mxu0 %v102
    %v104 = vand.u32 %v88, 4294901760
    %105 = vmatpush.msra.mxu0 %v104
    %v106 = vand.u32 %v87, 4294901760
    %107 = vmatpush.msra.mxu0 %v106
    %v108 = vand.u32 %v86, 4294901760
    %109 = vmatpush.msra.mxu0 %v108
    %v110 = vand.u32 %v85, 4294901760
    %111 = vmatpush.msra.mxu0 %v110
    %v112 = vand.u32 %v84, 4294901760
    %113 = vmatpush.msra.mxu0 %v112
    %v114 = vand.u32 %v83, 4294901760
    %115 = vmatpush.msra.mxu0 %v114
    %v116 = vand.u32 %v82, 4294901760
    %117 = vmatpush.msra.mxu0 %v116
    %v118 = vand.u32 %v81, 4294901760
    %119 = vmatpush.msra.mxu0 %v118
    %v120 = vand.u32 %v80, 4294901760
    %121 = vmatpush.msra.mxu0 %v120
    %v122 = vand.u32 %v79, 4294901760
    %123 = vmatpush.msra.mxu0 %v122
    %v124 = vand.u32 %v78, 4294901760
    %125 = vmatpush.msra.mxu0 %v124
    %v126 = vand.u32 %v62, 4294901760
    %v127 = vsub.f32 %v62, %v126
    %v128 = vand.u32 %v127, 4294901760
    %v129 = vsub.f32 %v127, %v128
    %v130 = vand.u32 %v129, 4294901760
    %131 = vmatmul.f32.gmra.mxu0 %v130
    %v132 = vpop.f32.mrf.mxu0
    %v133 = vadd.f32 0.0, %v132
    %v134 = vand.u32 %v63, 4294901760
    %v135 = vsub.f32 %v63, %v134
    %v136 = vand.u32 %v135, 4294901760
    %v137 = vsub.f32 %v135, %v136
    %v138 = vand.u32 %v137, 4294901760
    %139 = vmatmul.f32.gmra.mxu0 %v138
    %v140 = vpop.f32.mrf.mxu0
    %v141 = vadd.f32 0.0, %v140
    %v142 = vand.u32 %v64, 4294901760
    %v143 = vsub.f32 %v64, %v142
    %v144 = vand.u32 %v143, 4294901760
    %v145 = vsub.f32 %v143, %v144
    %v146 = vand.u32 %v145, 4294901760
    %147 = vmatmul.f32.gmra.mxu0 %v146
    %v148 = vpop.f32.mrf.mxu0
    %v149 = vadd.f32 0.0, %v148
    %v150 = vand.u32 %v65, 4294901760
    %v151 = vsub.f32 %v65, %v150
    %v152 = vand.u32 %v151, 4294901760
    %v153 = vsub.f32 %v151, %v152
    %v154 = vand.u32 %v153, 4294901760
    %155 = vmatmul.f32.gmra.mxu0 %v154
    %v156 = vpop.f32.mrf.mxu0
    %v157 = vadd.f32 0.0, %v156
    %v158 = vand.u32 %v66, 4294901760
    %v159 = vsub.f32 %v66, %v158
    %v160 = vand.u32 %v159, 4294901760
    %v161 = vsub.f32 %v159, %v160
    %v162 = vand.u32 %v161, 4294901760
    %163 = vmatmul.f32.gmra.mxu0 %v162
    %v164 = vpop.f32.mrf.mxu0
    %v165 = vadd.f32 0.0, %v164
    %v166 = vand.u32 %v67, 4294901760
    %v167 = vsub.f32 %v67, %v166
    %v168 = vand.u32 %v167, 4294901760
    %v169 = vsub.f32 %v167, %v168
    %v170 = vand.u32 %v169, 4294901760
    %171 = vmatmul.f32.gmra.mxu0 %v170
    %v172 = vpop.f32.mrf.mxu0
    %v173 = vadd.f32 0.0, %v172
    %v174 = vand.u32 %v68, 4294901760
    %v175 = vsub.f32 %v68, %v174
    %v176 = vand.u32 %v175, 4294901760
    %v177 = vsub.f32 %v175, %v176
    %v178 = vand.u32 %v177, 4294901760
    %179 = vmatmul.f32.gmra.mxu0 %v178
    %v180 = vpop.f32.mrf.mxu0
    %v181 = vadd.f32 0.0, %v180
    %v182 = vand.u32 %v69, 4294901760
    %v183 = vsub.f32 %v69, %v182
    %v184 = vand.u32 %v183, 4294901760
    %v185 = vsub.f32 %v183, %v184
    %v186 = vand.u32 %v185, 4294901760
    %187 = vmatmul.f32.gmra.mxu0 %v186
    %v188 = vpop.f32.mrf.mxu0
    %v189 = vadd.f32 0.0, %v188
    %v190 = vand.u32 %v70, 4294901760
    %v191 = vsub.f32 %v70, %v190
    %v192 = vand.u32 %v191, 4294901760
    %v193 = vsub.f32 %v191, %v192
    %v194 = vand.u32 %v193, 4294901760
    %195 = vmatmul.f32.gmra.mxu0 %v194
    %v196 = vpop.f32.mrf.mxu0
    %v197 = vadd.f32 0.0, %v196
    %v198 = vand.u32 %v71, 4294901760
    %v199 = vsub.f32 %v71, %v198
    %v200 = vand.u32 %v199, 4294901760
    %v201 = vsub.f32 %v199, %v200
    %v202 = vand.u32 %v201, 4294901760
    %203 = vmatmul.f32.gmra.mxu0 %v202
    %v204 = vpop.f32.mrf.mxu0
    %v205 = vadd.f32 0.0, %v204
    %v206 = vand.u32 %v72, 4294901760
    %v207 = vsub.f32 %v72, %v206
    %v208 = vand.u32 %v207, 4294901760
    %v209 = vsub.f32 %v207, %v208
    %v210 = vand.u32 %v209, 4294901760
    %211 = vmatmul.f32.gmra.mxu0 %v210
    %v212 = vpop.f32.mrf.mxu0
    %v213 = vadd.f32 0.0, %v212
    %v214 = vand.u32 %v73, 4294901760
    %v215 = vsub.f32 %v73, %v214
    %v216 = vand.u32 %v215, 4294901760
    %v217 = vsub.f32 %v215, %v216
    %v218 = vand.u32 %v217, 4294901760
    %219 = vmatmul.f32.gmra.mxu0 %v218
    %v220 = vpop.f32.mrf.mxu0
    %v221 = vadd.f32 0.0, %v220
    %v222 = vand.u32 %v74, 4294901760
    %v223 = vsub.f32 %v74, %v222
    %v224 = vand.u32 %v223, 4294901760
    %v225 = vsub.f32 %v223, %v224
    %v226 = vand.u32 %v225, 4294901760
    %227 = vmatmul.f32.gmra.mxu0 %v226
    %v228 = vpop.f32.mrf.mxu0
    %v229 = vadd.f32 0.0, %v228
    %v230 = vand.u32 %v75, 4294901760
    %v231 = vsub.f32 %v75, %v230
    %v232 = vand.u32 %v231, 4294901760
    %v233 = vsub.f32 %v231, %v232
    %v234 = vand.u32 %v233, 4294901760
    %235 = vmatmul.f32.gmra.mxu0 %v234
    %v236 = vpop.f32.mrf.mxu0
    %v237 = vadd.f32 0.0, %v236
    %v238 = vand.u32 %v76, 4294901760
    %v239 = vsub.f32 %v76, %v238
    %v240 = vand.u32 %v239, 4294901760
    %v241 = vsub.f32 %v239, %v240
    %v242 = vand.u32 %v241, 4294901760
    %243 = vmatmul.f32.gmra.mxu0 %v242
    %v244 = vpop.f32.mrf.mxu0
    %v245 = vadd.f32 0.0, %v244
    %v246 = vand.u32 %v77, 4294901760
    %v247 = vsub.f32 %v77, %v246
    %v248 = vand.u32 %v247, 4294901760
    %v249 = vsub.f32 %v247, %v248
    %v250 = vand.u32 %v249, 4294901760
    %251 = vmatmul.f32.gmra.mxu0 %v250
    %v252 = vpop.f32.mrf.mxu0
    %v253 = vadd.f32 0.0, %v252
    %254 = vdwg.mxu0
    %v255 = vand.u32 %v93, 4294901760
    %v256 = vsub.f32 %v93, %v255
    %v257 = vand.u32 %v256, 4294901760
    %v258 = vsub.f32 %v256, %v257
    %v259 = vand.u32 %v258, 4294901760
    %260 = vmatpush.msra.mxu0 %v259
    %v261 = vand.u32 %v92, 4294901760
    %v262 = vsub.f32 %v92, %v261
    %v263 = vand.u32 %v262, 4294901760
    %v264 = vsub.f32 %v262, %v263
    %v265 = vand.u32 %v264, 4294901760
    %266 = vmatpush.msra.mxu0 %v265
    %v267 = vand.u32 %v91, 4294901760
    %v268 = vsub.f32 %v91, %v267
    %v269 = vand.u32 %v268, 4294901760
    %v270 = vsub.f32 %v268, %v269
    %v271 = vand.u32 %v270, 4294901760
    %272 = vmatpush.msra.mxu0 %v271
    %v273 = vand.u32 %v90, 4294901760
    %v274 = vsub.f32 %v90, %v273
    %v275 = vand.u32 %v274, 4294901760
    %v276 = vsub.f32 %v274, %v275
    %v277 = vand.u32 %v276, 4294901760
    %278 = vmatpush.msra.mxu0 %v277
    %v279 = vand.u32 %v89, 4294901760
    %v280 = vsub.f32 %v89, %v279
    %v281 = vand.u32 %v280, 4294901760
    %v282 = vsub.f32 %v280, %v281
    %v283 = vand.u32 %v282, 4294901760
    %284 = vmatpush.msra.mxu0 %v283
    %v285 = vand.u32 %v88, 4294901760
    %v286 = vsub.f32 %v88, %v285
    %v287 = vand.u32 %v286, 4294901760
    %v288 = vsub.f32 %v286, %v287
    %v289 = vand.u32 %v288, 4294901760
    %290 = vmatpush.msra.mxu0 %v289
    %v291 = vand.u32 %v87, 4294901760
    %v292 = vsub.f32 %v87, %v291
    %v293 = vand.u32 %v292, 4294901760
    %v294 = vsub.f32 %v292, %v293
    %v295 = vand.u32 %v294, 4294901760
    %296 = vmatpush.msra.mxu0 %v295
    %v297 = vand.u32 %v86, 4294901760
    %v298 = vsub.f32 %v86, %v297
    %v299 = vand.u32 %v298, 4294901760
    %v300 = vsub.f32 %v298, %v299
    %v301 = vand.u32 %v300, 4294901760
    %302 = vmatpush.msra.mxu0 %v301
    %v303 = vand.u32 %v85, 4294901760
    %v304 = vsub.f32 %v85, %v303
    %v305 = vand.u32 %v304, 4294901760
    %v306 = vsub.f32 %v304, %v305
    %v307 = vand.u32 %v306, 4294901760
    %308 = vmatpush.msra.mxu0 %v307
    %v309 = vand.u32 %v84, 4294901760
    %v310 = vsub.f32 %v84, %v309
    %v311 = vand.u32 %v310, 4294901760
    %v312 = vsub.f32 %v310, %v311
    %v313 = vand.u32 %v312, 4294901760
    %314 = vmatpush.msra.mxu0 %v313
    %v315 = vand.u32 %v83, 4294901760
    %v316 = vsub.f32 %v83, %v315
    %v317 = vand.u32 %v316, 4294901760
    %v318 = vsub.f32 %v316, %v317
    %v319 = vand.u32 %v318, 4294901760
    %320 = vmatpush.msra.mxu0 %v319
    %v321 = vand.u32 %v82, 4294901760
    %v322 = vsub.f32 %v82, %v321
    %v323 = vand.u32 %v322, 4294901760
    %v324 = vsub.f32 %v322, %v323
    %v325 = vand.u32 %v324, 4294901760
    %326 = vmatpush.msra.mxu0 %v325
    %v327 = vand.u32 %v81, 4294901760
    %v328 = vsub.f32 %v81, %v327
    %v329 = vand.u32 %v328, 4294901760
    %v330 = vsub.f32 %v328, %v329
    %v331 = vand.u32 %v330, 4294901760
    %332 = vmatpush.msra.mxu0 %v331
    %v333 = vand.u32 %v80, 4294901760
    %v334 = vsub.f32 %v80, %v333
    %v335 = vand.u32 %v334, 4294901760
    %v336 = vsub.f32 %v334, %v335
    %v337 = vand.u32 %v336, 4294901760
    %338 = vmatpush.msra.mxu0 %v337
    %v339 = vand.u32 %v79, 4294901760
    %v340 = vsub.f32 %v79, %v339
    %v341 = vand.u32 %v340, 4294901760
    %v342 = vsub.f32 %v340, %v341
    %v343 = vand.u32 %v342, 4294901760
    %344 = vmatpush.msra.mxu0 %v343
    %v345 = vand.u32 %v78, 4294901760
    %v346 = vsub.f32 %v78, %v345
    %v347 = vand.u32 %v346, 4294901760
    %v348 = vsub.f32 %v346, %v347
    %v349 = vand.u32 %v348, 4294901760
    %350 = vmatpush.msra.mxu0 %v349
    %v351 = vand.u32 %v62, 4294901760
    %352 = vmatmul.f32.gmra.mxu0 %v351
    %v353 = vpop.f32.mrf.mxu0
    %v354 = vadd.f32 %v133, %v353
    %v355 = vand.u32 %v63, 4294901760
    %356 = vmatmul.f32.gmra.mxu0 %v355
    %v357 = vpop.f32.mrf.mxu0
    %v358 = vadd.f32 %v141, %v357
    %v359 = vand.u32 %v64, 4294901760
    %360 = vmatmul.f32.gmra.mxu0 %v359
    %v361 = vpop.f32.mrf.mxu0
    %v362 = vadd.f32 %v149, %v361
    %v363 = vand.u32 %v65, 4294901760
    %364 = vmatmul.f32.gmra.mxu0 %v363
    %v365 = vpop.f32.mrf.mxu0
    %v366 = vadd.f32 %v157, %v365
    %v367 = vand.u32 %v66, 4294901760
    %368 = vmatmul.f32.gmra.mxu0 %v367
    %v369 = vpop.f32.mrf.mxu0
    %v370 = vadd.f32 %v165, %v369
    %v371 = vand.u32 %v67, 4294901760
    %372 = vmatmul.f32.gmra.mxu0 %v371
    %v373 = vpop.f32.mrf.mxu0
    %v374 = vadd.f32 %v173, %v373
    %v375 = vand.u32 %v68, 4294901760
    %376 = vmatmul.f32.gmra.mxu0 %v375
    %v377 = vpop.f32.mrf.mxu0
    %v378 = vadd.f32 %v181, %v377
    %v379 = vand.u32 %v69, 4294901760
    %380 = vmatmul.f32.gmra.mxu0 %v379
    %v381 = vpop.f32.mrf.mxu0
    %v382 = vadd.f32 %v189, %v381
    %v383 = vand.u32 %v70, 4294901760
    %384 = vmatmul.f32.gmra.mxu0 %v383
    %v385 = vpop.f32.mrf.mxu0
    %v386 = vadd.f32 %v197, %v385
    %v387 = vand.u32 %v71, 4294901760
    %388 = vmatmul.f32.gmra.mxu0 %v387
    %v389 = vpop.f32.mrf.mxu0
    %v390 = vadd.f32 %v205, %v389
    %v391 = vand.u32 %v72, 4294901760
    %392 = vmatmul.f32.gmra.mxu0 %v391
    %v393 = vpop.f32.mrf.mxu0
    %v394 = vadd.f32 %v213, %v393
    %v395 = vand.u32 %v73, 4294901760
    %396 = vmatmul.f32.gmra.mxu0 %v395
    %v397 = vpop.f32.mrf.mxu0
    %v398 = vadd.f32 %v221, %v397
    %v399 = vand.u32 %v74, 4294901760
    %400 = vmatmul.f32.gmra.mxu0 %v399
    %v401 = vpop.f32.mrf.mxu0
    %v402 = vadd.f32 %v229, %v401
    %v403 = vand.u32 %v75, 4294901760
    %404 = vmatmul.f32.gmra.mxu0 %v403
    %v405 = vpop.f32.mrf.mxu0
    %v406 = vadd.f32 %v237, %v405
    %v407 = vand.u32 %v76, 4294901760
    %408 = vmatmul.f32.gmra.mxu0 %v407
    %v409 = vpop.f32.mrf.mxu0
    %v410 = vadd.f32 %v245, %v409
    %v411 = vand.u32 %v77, 4294901760
    %412 = vmatmul.f32.gmra.mxu0 %v411
    %v413 = vpop.f32.mrf.mxu0
    %v414 = vadd.f32 %v253, %v413
    %415 = vdwg.mxu0
    %v416 = vand.u32 %v93, 4294901760
    %v417 = vsub.f32 %v93, %v416
    %418 = vmatpush.msra.mxu0 %v417
    %v419 = vand.u32 %v92, 4294901760
    %v420 = vsub.f32 %v92, %v419
    %421 = vmatpush.msra.mxu0 %v420
    %v422 = vand.u32 %v91, 4294901760
    %v423 = vsub.f32 %v91, %v422
    %424 = vmatpush.msra.mxu0 %v423
    %v425 = vand.u32 %v90, 4294901760
    %v426 = vsub.f32 %v90, %v425
    %427 = vmatpush.msra.mxu0 %v426
    %v428 = vand.u32 %v89, 4294901760
    %v429 = vsub.f32 %v89, %v428
    %430 = vmatpush.msra.mxu0 %v429
    %v431 = vand.u32 %v88, 4294901760
    %v432 = vsub.f32 %v88, %v431
    %433 = vmatpush.msra.mxu0 %v432
    %v434 = vand.u32 %v87, 4294901760
    %v435 = vsub.f32 %v87, %v434
    %436 = vmatpush.msra.mxu0 %v435
    %v437 = vand.u32 %v86, 4294901760
    %v438 = vsub.f32 %v86, %v437
    %439 = vmatpush.msra.mxu0 %v438
    %v440 = vand.u32 %v85, 4294901760
    %v441 = vsub.f32 %v85, %v440
    %442 = vmatpush.msra.mxu0 %v441
    %v443 = vand.u32 %v84, 4294901760
    %v444 = vsub.f32 %v84, %v443
    %445 = vmatpush.msra.mxu0 %v444
    %v446 = vand.u32 %v83, 4294901760
    %v447 = vsub.f32 %v83, %v446
    %448 = vmatpush.msra.mxu0 %v447
    %v449 = vand.u32 %v82, 4294901760
    %v450 = vsub.f32 %v82, %v449
    %451 = vmatpush.msra.mxu0 %v450
    %v452 = vand.u32 %v81, 4294901760
    %v453 = vsub.f32 %v81, %v452
    %454 = vmatpush.msra.mxu0 %v453
    %v455 = vand.u32 %v80, 4294901760
    %v456 = vsub.f32 %v80, %v455
    %457 = vmatpush.msra.mxu0 %v456
    %v458 = vand.u32 %v79, 4294901760
    %v459 = vsub.f32 %v79, %v458
    %460 = vmatpush.msra.mxu0 %v459
    %v461 = vand.u32 %v78, 4294901760
    %v462 = vsub.f32 %v78, %v461
    %463 = vmatpush.msra.mxu0 %v462
    %v464 = vand.u32 %v62, 4294901760
    %v465 = vsub.f32 %v62, %v464
    %466 = vmatmul.f32.gmra.mxu0 %v465
    %v467 = vpop.f32.mrf.mxu0
    %v468 = vadd.f32 %v354, %v467
    %v469 = vand.u32 %v63, 4294901760
    %v470 = vsub.f32 %v63, %v469
    %471 = vmatmul.f32.gmra.mxu0 %v470
    %v472 = vpop.f32.mrf.mxu0
    %v473 = vadd.f32 %v358, %v472
    %v474 = vand.u32 %v64, 4294901760
    %v475 = vsub.f32 %v64, %v474
    %476 = vmatmul.f32.gmra.mxu0 %v475
    %v477 = vpop.f32.mrf.mxu0
    %v478 = vadd.f32 %v362, %v477
    %v479 = vand.u32 %v65, 4294901760
    %v480 = vsub.f32 %v65, %v479
    %481 = vmatmul.f32.gmra.mxu0 %v480
    %v482 = vpop.f32.mrf.mxu0
    %v483 = vadd.f32 %v366, %v482
    %v484 = vand.u32 %v66, 4294901760
    %v485 = vsub.f32 %v66, %v484
    %486 = vmatmul.f32.gmra.mxu0 %v485
    %v487 = vpop.f32.mrf.mxu0
    %v488 = vadd.f32 %v370, %v487
    %v489 = vand.u32 %v67, 4294901760
    %v490 = vsub.f32 %v67, %v489
    %491 = vmatmul.f32.gmra.mxu0 %v490
    %v492 = vpop.f32.mrf.mxu0
    %v493 = vadd.f32 %v374, %v492
    %v494 = vand.u32 %v68, 4294901760
    %v495 = vsub.f32 %v68, %v494
    %496 = vmatmul.f32.gmra.mxu0 %v495
    %v497 = vpop.f32.mrf.mxu0
    %v498 = vadd.f32 %v378, %v497
    %v499 = vand.u32 %v69, 4294901760
    %v500 = vsub.f32 %v69, %v499
    %501 = vmatmul.f32.gmra.mxu0 %v500
    %v502 = vpop.f32.mrf.mxu0
    %v503 = vadd.f32 %v382, %v502
    %v504 = vand.u32 %v70, 4294901760
    %v505 = vsub.f32 %v70, %v504
    %506 = vmatmul.f32.gmra.mxu0 %v505
    %v507 = vpop.f32.mrf.mxu0
    %v508 = vadd.f32 %v386, %v507
    %v509 = vand.u32 %v71, 4294901760
    %v510 = vsub.f32 %v71, %v509
    %511 = vmatmul.f32.gmra.mxu0 %v510
    %v512 = vpop.f32.mrf.mxu0
    %v513 = vadd.f32 %v390, %v512
    %v514 = vand.u32 %v72, 4294901760
    %v515 = vsub.f32 %v72, %v514
    %516 = vmatmul.f32.gmra.mxu0 %v515
    %v517 = vpop.f32.mrf.mxu0
    %v518 = vadd.f32 %v394, %v517
    %v519 = vand.u32 %v73, 4294901760
    %v520 = vsub.f32 %v73, %v519
    %521 = vmatmul.f32.gmra.mxu0 %v520
    %v522 = vpop.f32.mrf.mxu0
    %v523 = vadd.f32 %v398, %v522
    %v524 = vand.u32 %v74, 4294901760
    %v525 = vsub.f32 %v74, %v524
    %526 = vmatmul.f32.gmra.mxu0 %v525
    %v527 = vpop.f32.mrf.mxu0
    %v528 = vadd.f32 %v402, %v527
    %v529 = vand.u32 %v75, 4294901760
    %v530 = vsub.f32 %v75, %v529
    %531 = vmatmul.f32.gmra.mxu0 %v530
    %v532 = vpop.f32.mrf.mxu0
    %v533 = vadd.f32 %v406, %v532
    %v534 = vand.u32 %v76, 4294901760
    %v535 = vsub.f32 %v76, %v534
    %536 = vmatmul.f32.gmra.mxu0 %v535
    %v537 = vpop.f32.mrf.mxu0
    %v538 = vadd.f32 %v410, %v537
    %v539 = vand.u32 %v77, 4294901760
    %v540 = vsub.f32 %v77, %v539
    %541 = vmatmul.f32.gmra.mxu0 %v540
    %v542 = vpop.f32.mrf.mxu0
    %v543 = vadd.f32 %v414, %v542
    %544 = vdwg.mxu0
    %v545 = vand.u32 %v93, 4294901760
    %546 = vmatpush.msra.mxu0 %v545
    %v547 = vand.u32 %v92, 4294901760
    %548 = vmatpush.msra.mxu0 %v547
    %v549 = vand.u32 %v91, 4294901760
    %550 = vmatpush.msra.mxu0 %v549
    %v551 = vand.u32 %v90, 4294901760
    %552 = vmatpush.msra.mxu0 %v551
    %v553 = vand.u32 %v89, 4294901760
    %554 = vmatpush.msra.mxu0 %v553
    %v555 = vand.u32 %v88, 4294901760
    %556 = vmatpush.msra.mxu0 %v555
    %v557 = vand.u32 %v87, 4294901760
    %558 = vmatpush.msra.mxu0 %v557
    %v559 = vand.u32 %v86, 4294901760
    %560 = vmatpush.msra.mxu0 %v559
    %v561 = vand.u32 %v85, 4294901760
    %562 = vmatpush.msra.mxu0 %v561
    %v563 = vand.u32 %v84, 4294901760
    %564 = vmatpush.msra.mxu0 %v563
    %v565 = vand.u32 %v83, 4294901760
    %566 = vmatpush.msra.mxu0 %v565
    %v567 = vand.u32 %v82, 4294901760
    %568 = vmatpush.msra.mxu0 %v567
    %v569 = vand.u32 %v81, 4294901760
    %570 = vmatpush.msra.mxu0 %v569
    %v571 = vand.u32 %v80, 4294901760
    %572 = vmatpush.msra.mxu0 %v571
    %v573 = vand.u32 %v79, 4294901760
    %574 = vmatpush.msra.mxu0 %v573
    %v575 = vand.u32 %v78, 4294901760
    %576 = vmatpush.msra.mxu0 %v575
    %v577 = vand.u32 %v62, 4294901760
    %v578 = vsub.f32 %v62, %v577
    %v579 = vand.u32 %v578, 4294901760
    %580 = vmatmul.f32.gmra.mxu0 %v579
    %v581 = vpop.f32.mrf.mxu0
    %v582 = vadd.f32 %v468, %v581
    %v583 = vand.u32 %v63, 4294901760
    %v584 = vsub.f32 %v63, %v583
    %v585 = vand.u32 %v584, 4294901760
    %586 = vmatmul.f32.gmra.mxu0 %v585
    %v587 = vpop.f32.mrf.mxu0
    %v588 = vadd.f32 %v473, %v587
    %v589 = vand.u32 %v64, 4294901760
    %v590 = vsub.f32 %v64, %v589
    %v591 = vand.u32 %v590, 4294901760
    %592 = vmatmul.f32.gmra.mxu0 %v591
    %v593 = vpop.f32.mrf.mxu0
    %v594 = vadd.f32 %v478, %v593
    %v595 = vand.u32 %v65, 4294901760
    %v596 = vsub.f32 %v65, %v595
    %v597 = vand.u32 %v596, 4294901760
    %598 = vmatmul.f32.gmra.mxu0 %v597
    %v599 = vpop.f32.mrf.mxu0
    %v600 = vadd.f32 %v483, %v599
    %v601 = vand.u32 %v66, 4294901760
    %v602 = vsub.f32 %v66, %v601
    %v603 = vand.u32 %v602, 4294901760
    %604 = vmatmul.f32.gmra.mxu0 %v603
    %v605 = vpop.f32.mrf.mxu0
    %v606 = vadd.f32 %v488, %v605
    %v607 = vand.u32 %v67, 4294901760
    %v608 = vsub.f32 %v67, %v607
    %v609 = vand.u32 %v608, 4294901760
    %610 = vmatmul.f32.gmra.mxu0 %v609
    %v611 = vpop.f32.mrf.mxu0
    %v612 = vadd.f32 %v493, %v611
    %v613 = vand.u32 %v68, 4294901760
    %v614 = vsub.f32 %v68, %v613
    %v615 = vand.u32 %v614, 4294901760
    %616 = vmatmul.f32.gmra.mxu0 %v615
    %v617 = vpop.f32.mrf.mxu0
    %v618 = vadd.f32 %v498, %v617
    %v619 = vand.u32 %v69, 4294901760
    %v620 = vsub.f32 %v69, %v619
    %v621 = vand.u32 %v620, 4294901760
    %622 = vmatmul.f32.gmra.mxu0 %v621
    %v623 = vpop.f32.mrf.mxu0
    %v624 = vadd.f32 %v503, %v623
    %v625 = vand.u32 %v70, 4294901760
    %v626 = vsub.f32 %v70, %v625
    %v627 = vand.u32 %v626, 4294901760
    %628 = vmatmul.f32.gmra.mxu0 %v627
    %v629 = vpop.f32.mrf.mxu0
    %v630 = vadd.f32 %v508, %v629
    %v631 = vand.u32 %v71, 4294901760
    %v632 = vsub.f32 %v71, %v631
    %v633 = vand.u32 %v632, 4294901760
    %634 = vmatmul.f32.gmra.mxu0 %v633
    %v635 = vpop.f32.mrf.mxu0
    %v636 = vadd.f32 %v513, %v635
    %v637 = vand.u32 %v72, 4294901760
    %v638 = vsub.f32 %v72, %v637
    %v639 = vand.u32 %v638, 4294901760
    %640 = vmatmul.f32.gmra.mxu0 %v639
    %v641 = vpop.f32.mrf.mxu0
    %v642 = vadd.f32 %v518, %v641
    %v643 = vand.u32 %v73, 4294901760
    %v644 = vsub.f32 %v73, %v643
    %v645 = vand.u32 %v644, 4294901760
    %646 = vmatmul.f32.gmra.mxu0 %v645
    %v647 = vpop.f32.mrf.mxu0
    %v648 = vadd.f32 %v523, %v647
    %v649 = vand.u32 %v74, 4294901760
    %v650 = vsub.f32 %v74, %v649
    %v651 = vand.u32 %v650, 4294901760
    %652 = vmatmul.f32.gmra.mxu0 %v651
    %v653 = vpop.f32.mrf.mxu0
    %v654 = vadd.f32 %v528, %v653
    %v655 = vand.u32 %v75, 4294901760
    %v656 = vsub.f32 %v75, %v655
    %v657 = vand.u32 %v656, 4294901760
    %658 = vmatmul.f32.gmra.mxu0 %v657
    %v659 = vpop.f32.mrf.mxu0
    %v660 = vadd.f32 %v533, %v659
    %v661 = vand.u32 %v76, 4294901760
    %v662 = vsub.f32 %v76, %v661
    %v663 = vand.u32 %v662, 4294901760
    %664 = vmatmul.f32.gmra.mxu0 %v663
    %v665 = vpop.f32.mrf.mxu0
    %v666 = vadd.f32 %v538, %v665
    %v667 = vand.u32 %v77, 4294901760
    %v668 = vsub.f32 %v77, %v667
    %v669 = vand.u32 %v668, 4294901760
    %670 = vmatmul.f32.gmra.mxu0 %v669
    %v671 = vpop.f32.mrf.mxu0
    %v672 = vadd.f32 %v543, %v671
    %673 = vdwg.mxu0
    %v674 = vand.u32 %v93, 4294901760
    %v675 = vsub.f32 %v93, %v674
    %v676 = vand.u32 %v675, 4294901760
    %677 = vmatpush.msra.mxu0 %v676
    %v678 = vand.u32 %v92, 4294901760
    %v679 = vsub.f32 %v92, %v678
    %v680 = vand.u32 %v679, 4294901760
    %681 = vmatpush.msra.mxu0 %v680
    %v682 = vand.u32 %v91, 4294901760
    %v683 = vsub.f32 %v91, %v682
    %v684 = vand.u32 %v683, 4294901760
    %685 = vmatpush.msra.mxu0 %v684
    %v686 = vand.u32 %v90, 4294901760
    %v687 = vsub.f32 %v90, %v686
    %v688 = vand.u32 %v687, 4294901760
    %689 = vmatpush.msra.mxu0 %v688
    %v690 = vand.u32 %v89, 4294901760
    %v691 = vsub.f32 %v89, %v690
    %v692 = vand.u32 %v691, 4294901760
    %693 = vmatpush.msra.mxu0 %v692
    %v694 = vand.u32 %v88, 4294901760
    %v695 = vsub.f32 %v88, %v694
    %v696 = vand.u32 %v695, 4294901760
    %697 = vmatpush.msra.mxu0 %v696
    %v698 = vand.u32 %v87, 4294901760
    %v699 = vsub.f32 %v87, %v698
    %v700 = vand.u32 %v699, 4294901760
    %701 = vmatpush.msra.mxu0 %v700
    %v702 = vand.u32 %v86, 4294901760
    %v703 = vsub.f32 %v86, %v702
    %v704 = vand.u32 %v703, 4294901760
    %705 = vmatpush.msra.mxu0 %v704
    %v706 = vand.u32 %v85, 4294901760
    %v707 = vsub.f32 %v85, %v706
    %v708 = vand.u32 %v707, 4294901760
    %709 = vmatpush.msra.mxu0 %v708
    %v710 = vand.u32 %v84, 4294901760
    %v711 = vsub.f32 %v84, %v710
    %v712 = vand.u32 %v711, 4294901760
    %713 = vmatpush.msra.mxu0 %v712
    %v714 = vand.u32 %v83, 4294901760
    %v715 = vsub.f32 %v83, %v714
    %v716 = vand.u32 %v715, 4294901760
    %717 = vmatpush.msra.mxu0 %v716
    %v718 = vand.u32 %v82, 4294901760
    %v719 = vsub.f32 %v82, %v718
    %v720 = vand.u32 %v719, 4294901760
    %721 = vmatpush.msra.mxu0 %v720
    %v722 = vand.u32 %v81, 4294901760
    %v723 = vsub.f32 %v81, %v722
    %v724 = vand.u32 %v723, 4294901760
    %725 = vmatpush.msra.mxu0 %v724
    %v726 = vand.u32 %v80, 4294901760
    %v727 = vsub.f32 %v80, %v726
    %v728 = vand.u32 %v727, 4294901760
    %729 = vmatpush.msra.mxu0 %v728
    %v730 = vand.u32 %v79, 4294901760
    %v731 = vsub.f32 %v79, %v730
    %v732 = vand.u32 %v731, 4294901760
    %733 = vmatpush.msra.mxu0 %v732
    %v734 = vand.u32 %v78, 4294901760
    %v735 = vsub.f32 %v78, %v734
    %v736 = vand.u32 %v735, 4294901760
    %737 = vmatpush.msra.mxu0 %v736
    %v738 = vand.u32 %v62, 4294901760
    %739 = vmatmul.f32.gmra.mxu0 %v738
    %v740 = vpop.f32.mrf.mxu0
    %v741 = vadd.f32 %v582, %v740
    %v742 = vand.u32 %v63, 4294901760
    %743 = vmatmul.f32.gmra.mxu0 %v742
    %v744 = vpop.f32.mrf.mxu0
    %v745 = vadd.f32 %v588, %v744
    %v746 = vand.u32 %v64, 4294901760
    %747 = vmatmul.f32.gmra.mxu0 %v746
    %v748 = vpop.f32.mrf.mxu0
    %v749 = vadd.f32 %v594, %v748
    %v750 = vand.u32 %v65, 4294901760
    %751 = vmatmul.f32.gmra.mxu0 %v750
    %v752 = vpop.f32.mrf.mxu0
    %v753 = vadd.f32 %v600, %v752
    %v754 = vand.u32 %v66, 4294901760
    %755 = vmatmul.f32.gmra.mxu0 %v754
    %v756 = vpop.f32.mrf.mxu0
    %v757 = vadd.f32 %v606, %v756
    %v758 = vand.u32 %v67, 4294901760
    %759 = vmatmul.f32.gmra.mxu0 %v758
    %v760 = vpop.f32.mrf.mxu0
    %v761 = vadd.f32 %v612, %v760
    %v762 = vand.u32 %v68, 4294901760
    %763 = vmatmul.f32.gmra.mxu0 %v762
    %v764 = vpop.f32.mrf.mxu0
    %v765 = vadd.f32 %v618, %v764
    %v766 = vand.u32 %v69, 4294901760
    %767 = vmatmul.f32.gmra.mxu0 %v766
    %v768 = vpop.f32.mrf.mxu0
    %v769 = vadd.f32 %v624, %v768
    %v770 = vand.u32 %v70, 4294901760
    %771 = vmatmul.f32.gmra.mxu0 %v770
    %v772 = vpop.f32.mrf.mxu0
    %v773 = vadd.f32 %v630, %v772
    %v774 = vand.u32 %v71, 4294901760
    %775 = vmatmul.f32.gmra.mxu0 %v774
    %v776 = vpop.f32.mrf.mxu0
    %v777 = vadd.f32 %v636, %v776
    %v778 = vand.u32 %v72, 4294901760
    %779 = vmatmul.f32.gmra.mxu0 %v778
    %v780 = vpop.f32.mrf.mxu0
    %v781 = vadd.f32 %v642, %v780
    %v782 = vand.u32 %v73, 4294901760
    %783 = vmatmul.f32.gmra.mxu0 %v782
    %v784 = vpop.f32.mrf.mxu0
    %v785 = vadd.f32 %v648, %v784
    %v786 = vand.u32 %v74, 4294901760
    %787 = vmatmul.f32.gmra.mxu0 %v786
    %v788 = vpop.f32.mrf.mxu0
    %v789 = vadd.f32 %v654, %v788
    %v790 = vand.u32 %v75, 4294901760
    %791 = vmatmul.f32.gmra.mxu0 %v790
    %v792 = vpop.f32.mrf.mxu0
    %v793 = vadd.f32 %v660, %v792
    %v794 = vand.u32 %v76, 4294901760
    %795 = vmatmul.f32.gmra.mxu0 %v794
    %v796 = vpop.f32.mrf.mxu0
    %v797 = vadd.f32 %v666, %v796
    %v798 = vand.u32 %v77, 4294901760
    %799 = vmatmul.f32.gmra.mxu0 %v798
    %v800 = vpop.f32.mrf.mxu0
    %v801 = vadd.f32 %v672, %v800
    %802 = vdwg.mxu0
    %v803 = vand.u32 %v93, 4294901760
    %804 = vmatpush.msra.mxu0 %v803
    %v805 = vand.u32 %v92, 4294901760
    %806 = vmatpush.msra.mxu0 %v805
    %v807 = vand.u32 %v91, 4294901760
    %808 = vmatpush.msra.mxu0 %v807
    %v809 = vand.u32 %v90, 4294901760
    %810 = vmatpush.msra.mxu0 %v809
    %v811 = vand.u32 %v89, 4294901760
    %812 = vmatpush.msra.mxu0 %v811
    %v813 = vand.u32 %v88, 4294901760
    %814 = vmatpush.msra.mxu0 %v813
    %v815 = vand.u32 %v87, 4294901760
    %816 = vmatpush.msra.mxu0 %v815
    %v817 = vand.u32 %v86, 4294901760
    %818 = vmatpush.msra.mxu0 %v817
    %v819 = vand.u32 %v85, 4294901760
    %820 = vmatpush.msra.mxu0 %v819
    %v821 = vand.u32 %v84, 4294901760
    %822 = vmatpush.msra.mxu0 %v821
    %v823 = vand.u32 %v83, 4294901760
    %824 = vmatpush.msra.mxu0 %v823
    %v825 = vand.u32 %v82, 4294901760
    %826 = vmatpush.msra.mxu0 %v825
    %v827 = vand.u32 %v81, 4294901760
    %828 = vmatpush.msra.mxu0 %v827
    %v829 = vand.u32 %v80, 4294901760
    %830 = vmatpush.msra.mxu0 %v829
    %v831 = vand.u32 %v79, 4294901760
    %832 = vmatpush.msra.mxu0 %v831
    %v833 = vand.u32 %v78, 4294901760
    %834 = vmatpush.msra.mxu0 %v833
    %v835 = vand.u32 %v62, 4294901760
    %836 = vmatmul.f32.gmra.mxu0 %v835
    %v837 = vpop.f32.mrf.mxu0
    %v838 = vadd.f32 %v741, %v837
    %v839 = vand.u32 %v63, 4294901760
    %840 = vmatmul.f32.gmra.mxu0 %v839
    %v841 = vpop.f32.mrf.mxu0
    %v842 = vadd.f32 %v745, %v841
    %v843 = vand.u32 %v64, 4294901760
    %844 = vmatmul.f32.gmra.mxu0 %v843
    %v845 = vpop.f32.mrf.mxu0
    %v846 = vadd.f32 %v749, %v845
    %v847 = vand.u32 %v65, 4294901760
    %848 = vmatmul.f32.gmra.mxu0 %v847
    %v849 = vpop.f32.mrf.mxu0
    %v850 = vadd.f32 %v753, %v849
    %v851 = vand.u32 %v66, 4294901760
    %852 = vmatmul.f32.gmra.mxu0 %v851
    %v853 = vpop.f32.mrf.mxu0
    %v854 = vadd.f32 %v757, %v853
    %v855 = vand.u32 %v67, 4294901760
    %856 = vmatmul.f32.gmra.mxu0 %v855
    %v857 = vpop.f32.mrf.mxu0
    %v858 = vadd.f32 %v761, %v857
    %v859 = vand.u32 %v68, 4294901760
    %860 = vmatmul.f32.gmra.mxu0 %v859
    %v861 = vpop.f32.mrf.mxu0
    %v862 = vadd.f32 %v765, %v861
    %v863 = vand.u32 %v69, 4294901760
    %864 = vmatmul.f32.gmra.mxu0 %v863
    %v865 = vpop.f32.mrf.mxu0
    %v866 = vadd.f32 %v769, %v865
    %v867 = vand.u32 %v70, 4294901760
    %868 = vmatmul.f32.gmra.mxu0 %v867
    %v869 = vpop.f32.mrf.mxu0
    %v870 = vadd.f32 %v773, %v869
    %v871 = vand.u32 %v71, 4294901760
    %872 = vmatmul.f32.gmra.mxu0 %v871
    %v873 = vpop.f32.mrf.mxu0
    %v874 = vadd.f32 %v777, %v873
    %v875 = vand.u32 %v72, 4294901760
    %876 = vmatmul.f32.gmra.mxu0 %v875
    %v877 = vpop.f32.mrf.mxu0
    %v878 = vadd.f32 %v781, %v877
    %v879 = vand.u32 %v73, 4294901760
    %880 = vmatmul.f32.gmra.mxu0 %v879
    %v881 = vpop.f32.mrf.mxu0
    %v882 = vadd.f32 %v785, %v881
    %v883 = vand.u32 %v74, 4294901760
    %884 = vmatmul.f32.gmra.mxu0 %v883
    %v885 = vpop.f32.mrf.mxu0
    %v886 = vadd.f32 %v789, %v885
    %v887 = vand.u32 %v75, 4294901760
    %888 = vmatmul.f32.gmra.mxu0 %v887
    %v889 = vpop.f32.mrf.mxu0
    %v890 = vadd.f32 %v793, %v889
    %v891 = vand.u32 %v76, 4294901760
    %892 = vmatmul.f32.gmra.mxu0 %v891
    %v893 = vpop.f32.mrf.mxu0
    %v894 = vadd.f32 %v797, %v893
    %v895 = vand.u32 %v77, 4294901760
    %896 = vmatmul.f32.gmra.mxu0 %v895
    %v897 = vpop.f32.mrf.mxu0
    %v898 = vadd.f32 %v801, %v897
    %899 = vdwg.mxu0
    %v900 = vld [vmem:[#allocation7] sm:$0x1]
    %v901 = vld [vmem:[#allocation7 + $0x1] sm:$0x1]
    %v902 = vand.u32 %v898, 4294901760
    %903 = vmatpush.msra.mxu0 %v902
    %v904 = vand.u32 %v894, 4294901760
    %905 = vmatpush.msra.mxu0 %v904
    %v906 = vand.u32 %v890, 4294901760
    %907 = vmatpush.msra.mxu0 %v906
    %v908 = vand.u32 %v886, 4294901760
    %909 = vmatpush.msra.mxu0 %v908
    %v910 = vand.u32 %v882, 4294901760
    %911 = vmatpush.msra.mxu0 %v910
    %v912 = vand.u32 %v878, 4294901760
    %913 = vmatpush.msra.mxu0 %v912
    %v914 = vand.u32 %v874, 4294901760
    %915 = vmatpush.msra.mxu0 %v914
    %v916 = vand.u32 %v870, 4294901760
    %917 = vmatpush.msra.mxu0 %v916
    %v918 = vand.u32 %v866, 4294901760
    %919 = vmatpush.msra.mxu0 %v918
    %v920 = vand.u32 %v862, 4294901760
    %921 = vmatpush.msra.mxu0 %v920
    %v922 = vand.u32 %v858, 4294901760
    %923 = vmatpush.msra.mxu0 %v922
    %v924 = vand.u32 %v854, 4294901760
    %925 = vmatpush.msra.mxu0 %v924
    %v926 = vand.u32 %v850, 4294901760
    %927 = vmatpush.msra.mxu0 %v926
    %v928 = vand.u32 %v846, 4294901760
    %929 = vmatpush.msra.mxu0 %v928
    %v930 = vand.u32 %v842, 4294901760
    %931 = vmatpush.msra.mxu0 %v930
    %v932 = vand.u32 %v838, 4294901760
    %933 = vmatpush.msra.mxu0 %v932
    %934 = vmatmul.f32.gmra.mxu0 0.0
    %v935 = vpop.f32.mrf.mxu0
    %v936 = vadd.f32 0.0, %v935
    %937 = vdwg.mxu0
    %v938 = vand.u32 %v898, 4294901760
    %v939 = vsub.f32 %v898, %v938
    %v940 = vand.u32 %v939, 4294901760
    %v941 = vsub.f32 %v939, %v940
    %v942 = vand.u32 %v941, 4294901760
    %943 = vmatpush.msra.mxu0 %v942
    %v944 = vand.u32 %v894, 4294901760
    %v945 = vsub.f32 %v894, %v944
    %v946 = vand.u32 %v945, 4294901760
    %v947 = vsub.f32 %v945, %v946
    %v948 = vand.u32 %v947, 4294901760
    %949 = vmatpush.msra.mxu0 %v948
    %v950 = vand.u32 %v890, 4294901760
    %v951 = vsub.f32 %v890, %v950
    %v952 = vand.u32 %v951, 4294901760
    %v953 = vsub.f32 %v951, %v952
    %v954 = vand.u32 %v953, 4294901760
    %955 = vmatpush.msra.mxu0 %v954
    %v956 = vand.u32 %v886, 4294901760
    %v957 = vsub.f32 %v886, %v956
    %v958 = vand.u32 %v957, 4294901760
    %v959 = vsub.f32 %v957, %v958
    %v960 = vand.u32 %v959, 4294901760
    %961 = vmatpush.msra.mxu0 %v960
    %v962 = vand.u32 %v882, 4294901760
    %v963 = vsub.f32 %v882, %v962
    %v964 = vand.u32 %v963, 4294901760
    %v965 = vsub.f32 %v963, %v964
    %v966 = vand.u32 %v965, 4294901760
    %967 = vmatpush.msra.mxu0 %v966
    %v968 = vand.u32 %v878, 4294901760
    %v969 = vsub.f32 %v878, %v968
    %v970 = vand.u32 %v969, 4294901760
    %v971 = vsub.f32 %v969, %v970
    %v972 = vand.u32 %v971, 4294901760
    %973 = vmatpush.msra.mxu0 %v972
    %v974 = vand.u32 %v874, 4294901760
    %v975 = vsub.f32 %v874, %v974
    %v976 = vand.u32 %v975, 4294901760
    %v977 = vsub.f32 %v975, %v976
    %v978 = vand.u32 %v977, 4294901760
    %979 = vmatpush.msra.mxu0 %v978
    %v980 = vand.u32 %v870, 4294901760
    %v981 = vsub.f32 %v870, %v980
    %v982 = vand.u32 %v981, 4294901760
    %v983 = vsub.f32 %v981, %v982
    %v984 = vand.u32 %v983, 4294901760
    %985 = vmatpush.msra.mxu0 %v984
    %v986 = vand.u32 %v866, 4294901760
    %v987 = vsub.f32 %v866, %v986
    %v988 = vand.u32 %v987, 4294901760
    %v989 = vsub.f32 %v987, %v988
    %v990 = vand.u32 %v989, 4294901760
    %991 = vmatpush.msra.mxu0 %v990
    %v992 = vand.u32 %v862, 4294901760
    %v993 = vsub.f32 %v862, %v992
    %v994 = vand.u32 %v993, 4294901760
    %v995 = vsub.f32 %v993, %v994
    %v996 = vand.u32 %v995, 4294901760
    %997 = vmatpush.msra.mxu0 %v996
    %v998 = vand.u32 %v858, 4294901760
    %v999 = vsub.f32 %v858, %v998
    %v1000 = vand.u32 %v999, 4294901760
    %v1001 = vsub.f32 %v999, %v1000
    %v1002 = vand.u32 %v1001, 4294901760
    %1003 = vmatpush.msra.mxu0 %v1002
    %v1004 = vand.u32 %v854, 4294901760
    %v1005 = vsub.f32 %v854, %v1004
    %v1006 = vand.u32 %v1005, 4294901760
    %v1007 = vsub.f32 %v1005, %v1006
    %v1008 = vand.u32 %v1007, 4294901760
    %1009 = vmatpush.msra.mxu0 %v1008
    %v1010 = vand.u32 %v850, 4294901760
    %v1011 = vsub.f32 %v850, %v1010
    %v1012 = vand.u32 %v1011, 4294901760
    %v1013 = vsub.f32 %v1011, %v1012
    %v1014 = vand.u32 %v1013, 4294901760
    %1015 = vmatpush.msra.mxu0 %v1014
    %v1016 = vand.u32 %v846, 4294901760
    %v1017 = vsub.f32 %v846, %v1016
    %v1018 = vand.u32 %v1017, 4294901760
    %v1019 = vsub.f32 %v1017, %v1018
    %v1020 = vand.u32 %v1019, 4294901760
    %1021 = vmatpush.msra.mxu0 %v1020
    %v1022 = vand.u32 %v842, 4294901760
    %v1023 = vsub.f32 %v842, %v1022
    %v1024 = vand.u32 %v1023, 4294901760
    %v1025 = vsub.f32 %v1023, %v1024
    %v1026 = vand.u32 %v1025, 4294901760
    %1027 = vmatpush.msra.mxu0 %v1026
    %v1028 = vand.u32 %v838, 4294901760
    %v1029 = vsub.f32 %v838, %v1028
    %v1030 = vand.u32 %v1029, 4294901760
    %v1031 = vsub.f32 %v1029, %v1030
    %v1032 = vand.u32 %v1031, 4294901760
    %1033 = vmatpush.msra.mxu0 %v1032
    %1034 = vmatmul.f32.gmra.mxu0 1.0
    %v1035 = vpop.f32.mrf.mxu0
    %v1036 = vadd.f32 %v936, %v1035
    %1037 = vdwg.mxu0
    %v1038 = vand.u32 %v898, 4294901760
    %v1039 = vsub.f32 %v898, %v1038
    %1040 = vmatpush.msra.mxu0 %v1039
    %v1041 = vand.u32 %v894, 4294901760
    %v1042 = vsub.f32 %v894, %v1041
    %1043 = vmatpush.msra.mxu0 %v1042
    %v1044 = vand.u32 %v890, 4294901760
    %v1045 = vsub.f32 %v890, %v1044
    %1046 = vmatpush.msra.mxu0 %v1045
    %v1047 = vand.u32 %v886, 4294901760
    %v1048 = vsub.f32 %v886, %v1047
    %1049 = vmatpush.msra.mxu0 %v1048
    %v1050 = vand.u32 %v882, 4294901760
    %v1051 = vsub.f32 %v882, %v1050
    %1052 = vmatpush.msra.mxu0 %v1051
    %v1053 = vand.u32 %v878, 4294901760
    %v1054 = vsub.f32 %v878, %v1053
    %1055 = vmatpush.msra.mxu0 %v1054
    %v1056 = vand.u32 %v874, 4294901760
    %v1057 = vsub.f32 %v874, %v1056
    %1058 = vmatpush.msra.mxu0 %v1057
    %v1059 = vand.u32 %v870, 4294901760
    %v1060 = vsub.f32 %v870, %v1059
    %1061 = vmatpush.msra.mxu0 %v1060
    %v1062 = vand.u32 %v866, 4294901760
    %v1063 = vsub.f32 %v866, %v1062
    %1064 = vmatpush.msra.mxu0 %v1063
    %v1065 = vand.u32 %v862, 4294901760
    %v1066 = vsub.f32 %v862, %v1065
    %1067 = vmatpush.msra.mxu0 %v1066
    %v1068 = vand.u32 %v858, 4294901760
    %v1069 = vsub.f32 %v858, %v1068
    %1070 = vmatpush.msra.mxu0 %v1069
    %v1071 = vand.u32 %v854, 4294901760
    %v1072 = vsub.f32 %v854, %v1071
    %1073 = vmatpush.msra.mxu0 %v1072
    %v1074 = vand.u32 %v850, 4294901760
    %v1075 = vsub.f32 %v850, %v1074
    %1076 = vmatpush.msra.mxu0 %v1075
    %v1077 = vand.u32 %v846, 4294901760
    %v1078 = vsub.f32 %v846, %v1077
    %1079 = vmatpush.msra.mxu0 %v1078
    %v1080 = vand.u32 %v842, 4294901760
    %v1081 = vsub.f32 %v842, %v1080
    %1082 = vmatpush.msra.mxu0 %v1081
    %v1083 = vand.u32 %v838, 4294901760
    %v1084 = vsub.f32 %v838, %v1083
    %1085 = vmatpush.msra.mxu0 %v1084
    %1086 = vmatmul.f32.gmra.mxu0 0.0
    %v1087 = vpop.f32.mrf.mxu0
    %v1088 = vadd.f32 %v1036, %v1087
    %1089 = vdwg.mxu0
    %v1090 = vand.u32 %v898, 4294901760
    %1091 = vmatpush.msra.mxu0 %v1090
    %v1092 = vand.u32 %v894, 4294901760
    %1093 = vmatpush.msra.mxu0 %v1092
    %v1094 = vand.u32 %v890, 4294901760
    %1095 = vmatpush.msra.mxu0 %v1094
    %v1096 = vand.u32 %v886, 4294901760
    %1097 = vmatpush.msra.mxu0 %v1096
    %v1098 = vand.u32 %v882, 4294901760
    %1099 = vmatpush.msra.mxu0 %v1098
    %v1100 = vand.u32 %v878, 4294901760
    %1101 = vmatpush.msra.mxu0 %v1100
    %v1102 = vand.u32 %v874, 4294901760
    %1103 = vmatpush.msra.mxu0 %v1102
    %v1104 = vand.u32 %v870, 4294901760
    %1105 = vmatpush.msra.mxu0 %v1104
    %v1106 = vand.u32 %v866, 4294901760
    %1107 = vmatpush.msra.mxu0 %v1106
    %v1108 = vand.u32 %v862, 4294901760
    %1109 = vmatpush.msra.mxu0 %v1108
    %v1110 = vand.u32 %v858, 4294901760
    %1111 = vmatpush.msra.mxu0 %v1110
    %v1112 = vand.u32 %v854, 4294901760
    %1113 = vmatpush.msra.mxu0 %v1112
    %v1114 = vand.u32 %v850, 4294901760
    %1115 = vmatpush.msra.mxu0 %v1114
    %v1116 = vand.u32 %v846, 4294901760
    %1117 = vmatpush.msra.mxu0 %v1116
    %v1118 = vand.u32 %v842, 4294901760
    %1119 = vmatpush.msra.mxu0 %v1118
    %v1120 = vand.u32 %v838, 4294901760
    %1121 = vmatpush.msra.mxu0 %v1120
    %1122 = vmatmul.f32.gmra.mxu0 0.0
    %v1123 = vpop.f32.mrf.mxu0
    %v1124 = vadd.f32 %v1088, %v1123
    %1125 = vdwg.mxu0
    %v1126 = vand.u32 %v898, 4294901760
    %v1127 = vsub.f32 %v898, %v1126
    %v1128 = vand.u32 %v1127, 4294901760
    %1129 = vmatpush.msra.mxu0 %v1128
    %v1130 = vand.u32 %v894, 4294901760
    %v1131 = vsub.f32 %v894, %v1130
    %v1132 = vand.u32 %v1131, 4294901760
    %1133 = vmatpush.msra.mxu0 %v1132
    %v1134 = vand.u32 %v890, 4294901760
    %v1135 = vsub.f32 %v890, %v1134
    %v1136 = vand.u32 %v1135, 4294901760
    %1137 = vmatpush.msra.mxu0 %v1136
    %v1138 = vand.u32 %v886, 4294901760
    %v1139 = vsub.f32 %v886, %v1138
    %v1140 = vand.u32 %v1139, 4294901760
    %1141 = vmatpush.msra.mxu0 %v1140
    %v1142 = vand.u32 %v882, 4294901760
    %v1143 = vsub.f32 %v882, %v1142
    %v1144 = vand.u32 %v1143, 4294901760
    %1145 = vmatpush.msra.mxu0 %v1144
    %v1146 = vand.u32 %v878, 4294901760
    %v1147 = vsub.f32 %v878, %v1146
    %v1148 = vand.u32 %v1147, 4294901760
    %1149 = vmatpush.msra.mxu0 %v1148
    %v1150 = vand.u32 %v874, 4294901760
    %v1151 = vsub.f32 %v874, %v1150
    %v1152 = vand.u32 %v1151, 4294901760
    %1153 = vmatpush.msra.mxu0 %v1152
    %v1154 = vand.u32 %v870, 4294901760
    %v1155 = vsub.f32 %v870, %v1154
    %v1156 = vand.u32 %v1155, 4294901760
    %1157 = vmatpush.msra.mxu0 %v1156
    %v1158 = vand.u32 %v866, 4294901760
    %v1159 = vsub.f32 %v866, %v1158
    %v1160 = vand.u32 %v1159, 4294901760
    %1161 = vmatpush.msra.mxu0 %v1160
    %v1162 = vand.u32 %v862, 4294901760
    %v1163 = vsub.f32 %v862, %v1162
    %v1164 = vand.u32 %v1163, 4294901760
    %1165 = vmatpush.msra.mxu0 %v1164
    %v1166 = vand.u32 %v858, 4294901760
    %v1167 = vsub.f32 %v858, %v1166
    %v1168 = vand.u32 %v1167, 4294901760
    %1169 = vmatpush.msra.mxu0 %v1168
    %v1170 = vand.u32 %v854, 4294901760
    %v1171 = vsub.f32 %v854, %v1170
    %v1172 = vand.u32 %v1171, 4294901760
    %1173 = vmatpush.msra.mxu0 %v1172
    %v1174 = vand.u32 %v850, 4294901760
    %v1175 = vsub.f32 %v850, %v1174
    %v1176 = vand.u32 %v1175, 4294901760
    %1177 = vmatpush.msra.mxu0 %v1176
    %v1178 = vand.u32 %v846, 4294901760
    %v1179 = vsub.f32 %v846, %v1178
    %v1180 = vand.u32 %v1179, 4294901760
    %1181 = vmatpush.msra.mxu0 %v1180
    %v1182 = vand.u32 %v842, 4294901760
    %v1183 = vsub.f32 %v842, %v1182
    %v1184 = vand.u32 %v1183, 4294901760
    %1185 = vmatpush.msra.mxu0 %v1184
    %v1186 = vand.u32 %v838, 4294901760
    %v1187 = vsub.f32 %v838, %v1186
    %v1188 = vand.u32 %v1187, 4294901760
    %1189 = vmatpush.msra.mxu0 %v1188
    %1190 = vmatmul.f32.gmra.mxu0 1.0
    %v1191 = vpop.f32.mrf.mxu0
    %v1192 = vadd.f32 %v1124, %v1191
    %1193 = vdwg.mxu0
    %v1194 = vand.u32 %v898, 4294901760
    %1195 = vmatpush.msra.mxu0 %v1194
    %v1196 = vand.u32 %v894, 4294901760
    %1197 = vmatpush.msra.mxu0 %v1196
    %v1198 = vand.u32 %v890, 4294901760
    %1199 = vmatpush.msra.mxu0 %v1198
    %v1200 = vand.u32 %v886, 4294901760
    %1201 = vmatpush.msra.mxu0 %v1200
    %v1202 = vand.u32 %v882, 4294901760
    %1203 = vmatpush.msra.mxu0 %v1202
    %v1204 = vand.u32 %v878, 4294901760
    %1205 = vmatpush.msra.mxu0 %v1204
    %v1206 = vand.u32 %v874, 4294901760
    %1207 = vmatpush.msra.mxu0 %v1206
    %v1208 = vand.u32 %v870, 4294901760
    %1209 = vmatpush.msra.mxu0 %v1208
    %v1210 = vand.u32 %v866, 4294901760
    %1211 = vmatpush.msra.mxu0 %v1210
    %v1212 = vand.u32 %v862, 4294901760
    %1213 = vmatpush.msra.mxu0 %v1212
    %v1214 = vand.u32 %v858, 4294901760
    %1215 = vmatpush.msra.mxu0 %v1214
    %v1216 = vand.u32 %v854, 4294901760
    %1217 = vmatpush.msra.mxu0 %v1216
    %v1218 = vand.u32 %v850, 4294901760
    %1219 = vmatpush.msra.mxu0 %v1218
    %v1220 = vand.u32 %v846, 4294901760
    %1221 = vmatpush.msra.mxu0 %v1220
    %v1222 = vand.u32 %v842, 4294901760
    %1223 = vmatpush.msra.mxu0 %v1222
    %v1224 = vand.u32 %v838, 4294901760
    %1225 = vmatpush.msra.mxu0 %v1224
    %1226 = vmatmul.f32.gmra.mxu0 1.0
    %v1227 = vpop.f32.mrf.mxu0
    %v1228 = vadd.f32 %v1192, %v1227
    %1229 = vdwg.mxu0
    %v1230 = vmul.f32 %v838, %v838
    %v1231 = vmul.f32 %v842, %v842
    %v1232 = vmul.f32 %v846, %v846
    %v1233 = vmul.f32 %v850, %v850
    %v1234 = vmul.f32 %v854, %v854
    %v1235 = vmul.f32 %v858, %v858
    %v1236 = vmul.f32 %v862, %v862
    %v1237 = vmul.f32 %v866, %v866
    %v1238 = vmul.f32 %v870, %v870
    %v1239 = vmul.f32 %v874, %v874
    %v1240 = vmul.f32 %v878, %v878
    %v1241 = vmul.f32 %v882, %v882
    %v1242 = vmul.f32 %v886, %v886
    %v1243 = vmul.f32 %v890, %v890
    %v1244 = vmul.f32 %v894, %v894
    %v1245 = vmul.f32 %v898, %v898
    %v1246 = vand.u32 %v1245, 4294901760
    %1247 = vmatpush.msra.mxu0 %v1246
    %v1248 = vand.u32 %v1244, 4294901760
    %1249 = vmatpush.msra.mxu0 %v1248
    %v1250 = vand.u32 %v1243, 4294901760
    %1251 = vmatpush.msra.mxu0 %v1250
    %v1252 = vand.u32 %v1242, 4294901760
    %1253 = vmatpush.msra.mxu0 %v1252
    %v1254 = vand.u32 %v1241, 4294901760
    %1255 = vmatpush.msra.mxu0 %v1254
    %v1256 = vand.u32 %v1240, 4294901760
    %1257 = vmatpush.msra.mxu0 %v1256
    %v1258 = vand.u32 %v1239, 4294901760
    %1259 = vmatpush.msra.mxu0 %v1258
    %v1260 = vand.u32 %v1238, 4294901760
    %1261 = vmatpush.msra.mxu0 %v1260
    %v1262 = vand.u32 %v1237, 4294901760
    %1263 = vmatpush.msra.mxu0 %v1262
    %v1264 = vand.u32 %v1236, 4294901760
    %1265 = vmatpush.msra.mxu0 %v1264
    %v1266 = vand.u32 %v1235, 4294901760
    %1267 = vmatpush.msra.mxu0 %v1266
    %v1268 = vand.u32 %v1234, 4294901760
    %1269 = vmatpush.msra.mxu0 %v1268
    %v1270 = vand.u32 %v1233, 4294901760
    %1271 = vmatpush.msra.mxu0 %v1270
    %v1272 = vand.u32 %v1232, 4294901760
    %1273 = vmatpush.msra.mxu0 %v1272
    %v1274 = vand.u32 %v1231, 4294901760
    %1275 = vmatpush.msra.mxu0 %v1274
    %v1276 = vand.u32 %v1230, 4294901760
    %1277 = vmatpush.msra.mxu0 %v1276
    %1278 = vmatmul.f32.gmra.mxu0 0.0
    %v1279 = vpop.f32.mrf.mxu0
    %v1280 = vadd.f32 0.0, %v1279
    %1281 = vdwg.mxu0
    %v1282 = vand.u32 %v1245, 4294901760
    %v1283 = vsub.f32 %v1245, %v1282
    %v1284 = vand.u32 %v1283, 4294901760
    %v1285 = vsub.f32 %v1283, %v1284
    %v1286 = vand.u32 %v1285, 4294901760
    %1287 = vmatpush.msra.mxu0 %v1286
    %v1288 = vand.u32 %v1244, 4294901760
    %v1289 = vsub.f32 %v1244, %v1288
    %v1290 = vand.u32 %v1289, 4294901760
    %v1291 = vsub.f32 %v1289, %v1290
    %v1292 = vand.u32 %v1291, 4294901760
    %1293 = vmatpush.msra.mxu0 %v1292
    %v1294 = vand.u32 %v1243, 4294901760
    %v1295 = vsub.f32 %v1243, %v1294
    %v1296 = vand.u32 %v1295, 4294901760
    %v1297 = vsub.f32 %v1295, %v1296
    %v1298 = vand.u32 %v1297, 4294901760
    %1299 = vmatpush.msra.mxu0 %v1298
    %v1300 = vand.u32 %v1242, 4294901760
    %v1301 = vsub.f32 %v1242, %v1300
    %v1302 = vand.u32 %v1301, 4294901760
    %v1303 = vsub.f32 %v1301, %v1302
    %v1304 = vand.u32 %v1303, 4294901760
    %1305 = vmatpush.msra.mxu0 %v1304
    %v1306 = vand.u32 %v1241, 4294901760
    %v1307 = vsub.f32 %v1241, %v1306
    %v1308 = vand.u32 %v1307, 4294901760
    %v1309 = vsub.f32 %v1307, %v1308
    %v1310 = vand.u32 %v1309, 4294901760
    %1311 = vmatpush.msra.mxu0 %v1310
    %v1312 = vand.u32 %v1240, 4294901760
    %v1313 = vsub.f32 %v1240, %v1312
    %v1314 = vand.u32 %v1313, 4294901760
    %v1315 = vsub.f32 %v1313, %v1314
    %v1316 = vand.u32 %v1315, 4294901760
    %1317 = vmatpush.msra.mxu0 %v1316
    %v1318 = vand.u32 %v1239, 4294901760
    %v1319 = vsub.f32 %v1239, %v1318
    %v1320 = vand.u32 %v1319, 4294901760
    %v1321 = vsub.f32 %v1319, %v1320
    %v1322 = vand.u32 %v1321, 4294901760
    %1323 = vmatpush.msra.mxu0 %v1322
    %v1324 = vand.u32 %v1238, 4294901760
    %v1325 = vsub.f32 %v1238, %v1324
    %v1326 = vand.u32 %v1325, 4294901760
    %v1327 = vsub.f32 %v1325, %v1326
    %v1328 = vand.u32 %v1327, 4294901760
    %1329 = vmatpush.msra.mxu0 %v1328
    %v1330 = vand.u32 %v1237, 4294901760
    %v1331 = vsub.f32 %v1237, %v1330
    %v1332 = vand.u32 %v1331, 4294901760
    %v1333 = vsub.f32 %v1331, %v1332
    %v1334 = vand.u32 %v1333, 4294901760
    %1335 = vmatpush.msra.mxu0 %v1334
    %v1336 = vand.u32 %v1236, 4294901760
    %v1337 = vsub.f32 %v1236, %v1336
    %v1338 = vand.u32 %v1337, 4294901760
    %v1339 = vsub.f32 %v1337, %v1338
    %v1340 = vand.u32 %v1339, 4294901760
    %1341 = vmatpush.msra.mxu0 %v1340
    %v1342 = vand.u32 %v1235, 4294901760
    %v1343 = vsub.f32 %v1235, %v1342
    %v1344 = vand.u32 %v1343, 4294901760
    %v1345 = vsub.f32 %v1343, %v1344
    %v1346 = vand.u32 %v1345, 4294901760
    %1347 = vmatpush.msra.mxu0 %v1346
    %v1348 = vand.u32 %v1234, 4294901760
    %v1349 = vsub.f32 %v1234, %v1348
    %v1350 = vand.u32 %v1349, 4294901760
    %v1351 = vsub.f32 %v1349, %v1350
    %v1352 = vand.u32 %v1351, 4294901760
    %1353 = vmatpush.msra.mxu0 %v1352
    %v1354 = vand.u32 %v1233, 4294901760
    %v1355 = vsub.f32 %v1233, %v1354
    %v1356 = vand.u32 %v1355, 4294901760
    %v1357 = vsub.f32 %v1355, %v1356
    %v1358 = vand.u32 %v1357, 4294901760
    %1359 = vmatpush.msra.mxu0 %v1358
    %v1360 = vand.u32 %v1232, 4294901760
    %v1361 = vsub.f32 %v1232, %v1360
    %v1362 = vand.u32 %v1361, 4294901760
    %v1363 = vsub.f32 %v1361, %v1362
    %v1364 = vand.u32 %v1363, 4294901760
    %1365 = vmatpush.msra.mxu0 %v1364
    %v1366 = vand.u32 %v1231, 4294901760
    %v1367 = vsub.f32 %v1231, %v1366
    %v1368 = vand.u32 %v1367, 4294901760
    %v1369 = vsub.f32 %v1367, %v1368
    %v1370 = vand.u32 %v1369, 4294901760
    %1371 = vmatpush.msra.mxu0 %v1370
    %v1372 = vand.u32 %v1230, 4294901760
    %v1373 = vsub.f32 %v1230, %v1372
    %v1374 = vand.u32 %v1373, 4294901760
    %v1375 = vsub.f32 %v1373, %v1374
    %v1376 = vand.u32 %v1375, 4294901760
    %1377 = vmatpush.msra.mxu0 %v1376
    %1378 = vmatmul.f32.gmra.mxu0 1.0
    %v1379 = vpop.f32.mrf.mxu0
    %v1380 = vadd.f32 %v1280, %v1379
    %1381 = vdwg.mxu0
    %v1382 = vand.u32 %v1245, 4294901760
    %v1383 = vsub.f32 %v1245, %v1382
    %1384 = vmatpush.msra.mxu0 %v1383
    %v1385 = vand.u32 %v1244, 4294901760
    %v1386 = vsub.f32 %v1244, %v1385
    %1387 = vmatpush.msra.mxu0 %v1386
    %v1388 = vand.u32 %v1243, 4294901760
    %v1389 = vsub.f32 %v1243, %v1388
    %1390 = vmatpush.msra.mxu0 %v1389
    %v1391 = vand.u32 %v1242, 4294901760
    %v1392 = vsub.f32 %v1242, %v1391
    %1393 = vmatpush.msra.mxu0 %v1392
    %v1394 = vand.u32 %v1241, 4294901760
    %v1395 = vsub.f32 %v1241, %v1394
    %1396 = vmatpush.msra.mxu0 %v1395
    %v1397 = vand.u32 %v1240, 4294901760
    %v1398 = vsub.f32 %v1240, %v1397
    %1399 = vmatpush.msra.mxu0 %v1398
    %v1400 = vand.u32 %v1239, 4294901760
    %v1401 = vsub.f32 %v1239, %v1400
    %1402 = vmatpush.msra.mxu0 %v1401
    %v1403 = vand.u32 %v1238, 4294901760
    %v1404 = vsub.f32 %v1238, %v1403
    %1405 = vmatpush.msra.mxu0 %v1404
    %v1406 = vand.u32 %v1237, 4294901760
    %v1407 = vsub.f32 %v1237, %v1406
    %1408 = vmatpush.msra.mxu0 %v1407
    %v1409 = vand.u32 %v1236, 4294901760
    %v1410 = vsub.f32 %v1236, %v1409
    %1411 = vmatpush.msra.mxu0 %v1410
    %v1412 = vand.u32 %v1235, 4294901760
    %v1413 = vsub.f32 %v1235, %v1412
    %1414 = vmatpush.msra.mxu0 %v1413
    %v1415 = vand.u32 %v1234, 4294901760
    %v1416 = vsub.f32 %v1234, %v1415
    %1417 = vmatpush.msra.mxu0 %v1416
    %v1418 = vand.u32 %v1233, 4294901760
    %v1419 = vsub.f32 %v1233, %v1418
    %1420 = vmatpush.msra.mxu0 %v1419
    %v1421 = vand.u32 %v1232, 4294901760
    %v1422 = vsub.f32 %v1232, %v1421
    %1423 = vmatpush.msra.mxu0 %v1422
    %v1424 = vand.u32 %v1231, 4294901760
    %v1425 = vsub.f32 %v1231, %v1424
    %1426 = vmatpush.msra.mxu0 %v1425
    %v1427 = vand.u32 %v1230, 4294901760
    %v1428 = vsub.f32 %v1230, %v1427
    %1429 = vmatpush.msra.mxu0 %v1428
    %1430 = vmatmul.f32.gmra.mxu0 0.0
    %v1431 = vpop.f32.mrf.mxu0
    %v1432 = vadd.f32 %v1380, %v1431
    %1433 = vdwg.mxu0
    %v1434 = vand.u32 %v1245, 4294901760
    %1435 = vmatpush.msra.mxu0 %v1434
    %v1436 = vand.u32 %v1244, 4294901760
    %1437 = vmatpush.msra.mxu0 %v1436
    %v1438 = vand.u32 %v1243, 4294901760
    %1439 = vmatpush.msra.mxu0 %v1438
    %v1440 = vand.u32 %v1242, 4294901760
    %1441 = vmatpush.msra.mxu0 %v1440
    %v1442 = vand.u32 %v1241, 4294901760
    %1443 = vmatpush.msra.mxu0 %v1442
    %v1444 = vand.u32 %v1240, 4294901760
    %1445 = vmatpush.msra.mxu0 %v1444
    %v1446 = vand.u32 %v1239, 4294901760
    %1447 = vmatpush.msra.mxu0 %v1446
    %v1448 = vand.u32 %v1238, 4294901760
    %1449 = vmatpush.msra.mxu0 %v1448
    %v1450 = vand.u32 %v1237, 4294901760
    %1451 = vmatpush.msra.mxu0 %v1450
    %v1452 = vand.u32 %v1236, 4294901760
    %1453 = vmatpush.msra.mxu0 %v1452
    %v1454 = vand.u32 %v1235, 4294901760
    %1455 = vmatpush.msra.mxu0 %v1454
    %v1456 = vand.u32 %v1234, 4294901760
    %1457 = vmatpush.msra.mxu0 %v1456
    %v1458 = vand.u32 %v1233, 4294901760
    %1459 = vmatpush.msra.mxu0 %v1458
    %v1460 = vand.u32 %v1232, 4294901760
    %1461 = vmatpush.msra.mxu0 %v1460
    %v1462 = vand.u32 %v1231, 4294901760
    %1463 = vmatpush.msra.mxu0 %v1462
    %v1464 = vand.u32 %v1230, 4294901760
    %1465 = vmatpush.msra.mxu0 %v1464
    %1466 = vmatmul.f32.gmra.mxu0 0.0
    %v1467 = vpop.f32.mrf.mxu0
    %v1468 = vadd.f32 %v1432, %v1467
    %1469 = vdwg.mxu0
    %v1470 = vand.u32 %v1245, 4294901760
    %v1471 = vsub.f32 %v1245, %v1470
    %v1472 = vand.u32 %v1471, 4294901760
    %1473 = vmatpush.msra.mxu0 %v1472
    %v1474 = vand.u32 %v1244, 4294901760
    %v1475 = vsub.f32 %v1244, %v1474
    %v1476 = vand.u32 %v1475, 4294901760
    %1477 = vmatpush.msra.mxu0 %v1476
    %v1478 = vand.u32 %v1243, 4294901760
    %v1479 = vsub.f32 %v1243, %v1478
    %v1480 = vand.u32 %v1479, 4294901760
    %1481 = vmatpush.msra.mxu0 %v1480
    %v1482 = vand.u32 %v1242, 4294901760
    %v1483 = vsub.f32 %v1242, %v1482
    %v1484 = vand.u32 %v1483, 4294901760
    %1485 = vmatpush.msra.mxu0 %v1484
    %v1486 = vand.u32 %v1241, 4294901760
    %v1487 = vsub.f32 %v1241, %v1486
    %v1488 = vand.u32 %v1487, 4294901760
    %1489 = vmatpush.msra.mxu0 %v1488
    %v1490 = vand.u32 %v1240, 4294901760
    %v1491 = vsub.f32 %v1240, %v1490
    %v1492 = vand.u32 %v1491, 4294901760
    %1493 = vmatpush.msra.mxu0 %v1492
    %v1494 = vand.u32 %v1239, 4294901760
    %v1495 = vsub.f32 %v1239, %v1494
    %v1496 = vand.u32 %v1495, 4294901760
    %1497 = vmatpush.msra.mxu0 %v1496
    %v1498 = vand.u32 %v1238, 4294901760
    %v1499 = vsub.f32 %v1238, %v1498
    %v1500 = vand.u32 %v1499, 4294901760
    %1501 = vmatpush.msra.mxu0 %v1500
    %v1502 = vand.u32 %v1237, 4294901760
    %v1503 = vsub.f32 %v1237, %v1502
    %v1504 = vand.u32 %v1503, 4294901760
    %1505 = vmatpush.msra.mxu0 %v1504
    %v1506 = vand.u32 %v1236, 4294901760
    %v1507 = vsub.f32 %v1236, %v1506
    %v1508 = vand.u32 %v1507, 4294901760
    %1509 = vmatpush.msra.mxu0 %v1508
    %v1510 = vand.u32 %v1235, 4294901760
    %v1511 = vsub.f32 %v1235, %v1510
    %v1512 = vand.u32 %v1511, 4294901760
    %1513 = vmatpush.msra.mxu0 %v1512
    %v1514 = vand.u32 %v1234, 4294901760
    %v1515 = vsub.f32 %v1234, %v1514
    %v1516 = vand.u32 %v1515, 4294901760
    %1517 = vmatpush.msra.mxu0 %v1516
    %v1518 = vand.u32 %v1233, 4294901760
    %v1519 = vsub.f32 %v1233, %v1518
    %v1520 = vand.u32 %v1519, 4294901760
    %1521 = vmatpush.msra.mxu0 %v1520
    %v1522 = vand.u32 %v1232, 4294901760
    %v1523 = vsub.f32 %v1232, %v1522
    %v1524 = vand.u32 %v1523, 4294901760
    %1525 = vmatpush.msra.mxu0 %v1524
    %v1526 = vand.u32 %v1231, 4294901760
    %v1527 = vsub.f32 %v1231, %v1526
    %v1528 = vand.u32 %v1527, 4294901760
    %1529 = vmatpush.msra.mxu0 %v1528
    %v1530 = vand.u32 %v1230, 4294901760
    %v1531 = vsub.f32 %v1230, %v1530
    %v1532 = vand.u32 %v1531, 4294901760
    %1533 = vmatpush.msra.mxu0 %v1532
    %1534 = vmatmul.f32.gmra.mxu0 1.0
    %v1535 = vpop.f32.mrf.mxu0
    %v1536 = vadd.f32 %v1468, %v1535
    %1537 = vdwg.mxu0
    %v1538 = vand.u32 %v1245, 4294901760
    %1539 = vmatpush.msra.mxu0 %v1538
    %v1540 = vand.u32 %v1244, 4294901760
    %1541 = vmatpush.msra.mxu0 %v1540
    %v1542 = vand.u32 %v1243, 4294901760
    %1543 = vmatpush.msra.mxu0 %v1542
    %v1544 = vand.u32 %v1242, 4294901760
    %1545 = vmatpush.msra.mxu0 %v1544
    %v1546 = vand.u32 %v1241, 4294901760
    %1547 = vmatpush.msra.mxu0 %v1546
    %v1548 = vand.u32 %v1240, 4294901760
    %1549 = vmatpush.msra.mxu0 %v1548
    %v1550 = vand.u32 %v1239, 4294901760
    %1551 = vmatpush.msra.mxu0 %v1550
    %v1552 = vand.u32 %v1238, 4294901760
    %1553 = vmatpush.msra.mxu0 %v1552
    %v1554 = vand.u32 %v1237, 4294901760
    %1555 = vmatpush.msra.mxu0 %v1554
    %v1556 = vand.u32 %v1236, 4294901760
    %1557 = vmatpush.msra.mxu0 %v1556
    %v1558 = vand.u32 %v1235, 4294901760
    %1559 = vmatpush.msra.mxu0 %v1558
    %v1560 = vand.u32 %v1234, 4294901760
    %1561 = vmatpush.msra.mxu0 %v1560
    %v1562 = vand.u32 %v1233, 4294901760
    %1563 = vmatpush.msra.mxu0 %v1562
    %v1564 = vand.u32 %v1232, 4294901760
    %1565 = vmatpush.msra.mxu0 %v1564
    %v1566 = vand.u32 %v1231, 4294901760
    %1567 = vmatpush.msra.mxu0 %v1566
    %v1568 = vand.u32 %v1230, 4294901760
    %1569 = vmatpush.msra.mxu0 %v1568
    %1570 = vmatmul.f32.gmra.mxu0 1.0
    %v1571 = vpop.f32.mrf.mxu0
    %v1572 = vadd.f32 %v1536, %v1571
    %1573 = vdwg.mxu0
    %v1574 = vmul.f32 %v1228, 0.0078125
    %v1575 = vmul.f32 %v1572, 0.0078125
    %v1576 = vmul.f32 %v1574, %v1574
    %v1577 = vsub.f32 %v1575, %v1576
    %v1578 = vmax.f32 %v1577, 0.0
    %v1579 = vadd.f32 %v1578, 1e-05
    %v1580 = vrsqrt.pop %v1579
    %v1581 = vmul.f32 %v1580, %v1579
    %v1582 = vmul.f32 %v1581, %v1580
    %v1583 = vmul.f32 0.5, %v1582
    %v1584 = vsub.f32 1.5, %v1583
    %v1585 = vmul.f32 %v1580, %v1584
    %vm1586 = vweird.f32 %v1579
    %vm1587 = vweird.f32 %v1580
    %vm1588 = vmor %vm1586, %vm1587
    %v1589 = vsel %vm1588, %v1580, %v1585
    %v1590 = vmul.f32 %v900, %v1589
    %v1591 = vmul.f32 %v1574, %v1590
    %v1592 = vsub.f32 %v901, %v1591
    %v1593 = vperm.slane %v1590, 0
    %v1594 = vmul.f32 %v838, %v1593
    %v1595 = vmul.f32 %v842, %v1593
    %v1596 = vmul.f32 %v846, %v1593
    %v1597 = vmul.f32 %v850, %v1593
    %v1598 = vmul.f32 %v854, %v1593
    %v1599 = vmul.f32 %v858, %v1593
    %v1600 = vmul.f32 %v862, %v1593
    %v1601 = vmul.f32 %v866, %v1593
    %v1602 = vmul.f32 %v870, %v1593
    %v1603 = vmul.f32 %v874, %v1593
    %v1604 = vmul.f32 %v878, %v1593
    %v1605 = vmul.f32 %v882, %v1593
    %v1606 = vmul.f32 %v886, %v1593
    %v1607 = vmul.f32 %v890, %v1593
    %v1608 = vmul.f32 %v894, %v1593
    %v1609 = vmul.f32 %v898, %v1593
    %v1610 = vperm.slane %v1592, 0
    %v1611 = vadd.f32 %v1594, %v1610
    %v1612 = vadd.f32 %v1595, %v1610
    %v1613 = vadd.f32 %v1596, %v1610
    %v1614 = vadd.f32 %v1597, %v1610
    %v1615 = vadd.f32 %v1598, %v1610
    %v1616 = vadd.f32 %v1599, %v1610
    %v1617 = vadd.f32 %v1600, %v1610
    %v1618 = vadd.f32 %v1601, %v1610
    %v1619 = vadd.f32 %v1602, %v1610
    %v1620 = vadd.f32 %v1603, %v1610
    %v1621 = vadd.f32 %v1604, %v1610
    %v1622 = vadd.f32 %v1605, %v1610
    %v1623 = vadd.f32 %v1606, %v1610
    %v1624 = vadd.f32 %v1607, %v1610
    %v1625 = vadd.f32 %v1608, %v1610
    %v1626 = vadd.f32 %v1609, %v1610
    %v1627 = vmax.f32 %v1611, 0.0
    %v1628 = vmax.f32 %v1612, 0.0
    %v1629 = vmax.f32 %v1613, 0.0
    %v1630 = vmax.f32 %v1614, 0.0
    %v1631 = vmax.f32 %v1615, 0.0
    %v1632 = vmax.f32 %v1616, 0.0
    %v1633 = vmax.f32 %v1617, 0.0
    %v1634 = vmax.f32 %v1618, 0.0
    %v1635 = vmax.f32 %v1619, 0.0
    %v1636 = vmax.f32 %v1620, 0.0
    %v1637 = vmax.f32 %v1621, 0.0
    %v1638 = vmax.f32 %v1622, 0.0
    %v1639 = vmax.f32 %v1623, 0.0
    %v1640 = vmax.f32 %v1624, 0.0
    %v1641 = vmax.f32 %v1625, 0.0
    %v1642 = vmax.f32 %v1626, 0.0
    %s1643 = scalar_lea.vmem [#allocation5], 128
    %v1644 = vld [vmem:[%s1643] sm:$0xff]
    %v1645 = vld [vmem:[%s1643 + $0x8] sm:$0xff]
    %v1646 = vld [vmem:[%s1643 + $0x10] sm:$0xff]
    %v1647 = vld [vmem:[%s1643 + $0x18] sm:$0xff]
    %v1648 = vld [vmem:[%s1643 + $0x20] sm:$0xff]
    %v1649 = vld [vmem:[%s1643 + $0x28] sm:$0xff]
    %v1650 = vld [vmem:[%s1643 + $0x30] sm:$0xff]
    %v1651 = vld [vmem:[%s1643 + $0x38] sm:$0xff]
    %v1652 = vld [vmem:[%s1643 + $0x40] sm:$0xff]
    %v1653 = vld [vmem:[%s1643 + $0x48] sm:$0xff]
    %v1654 = vld [vmem:[%s1643 + $0x50] sm:$0xff]
    %v1655 = vld [vmem:[%s1643 + $0x58] sm:$0xff]
    %v1656 = vld [vmem:[%s1643 + $0x60] sm:$0xff]
    %v1657 = vld [vmem:[%s1643 + $0x68] sm:$0xff]
    %v1658 = vld [vmem:[%s1643 + $0x70] sm:$0xff]
    %v1659 = vld [vmem:[%s1643 + $0x78] sm:$0xff]
    %v1660 = vld [vmem:[#allocation7 + $0x2] sm:$0x1]
    %v1661 = vperm.slane %v1660, 0
    %v1662 = vand.u32 %v1659, 4294901760
    %1663 = vmatpush.msra.mxu0 %v1662
    %v1664 = vand.u32 %v1658, 4294901760
    %1665 = vmatpush.msra.mxu0 %v1664
    %v1666 = vand.u32 %v1657, 4294901760
    %1667 = vmatpush.msra.mxu0 %v1666
    %v1668 = vand.u32 %v1656, 4294901760
    %1669 = vmatpush.msra.mxu0 %v1668
    %v1670 = vand.u32 %v1655, 4294901760
    %1671 = vmatpush.msra.mxu0 %v1670
    %v1672 = vand.u32 %v1654, 4294901760
    %1673 = vmatpush.msra.mxu0 %v1672
    %v1674 = vand.u32 %v1653, 4294901760
    %1675 = vmatpush.msra.mxu0 %v1674
    %v1676 = vand.u32 %v1652, 4294901760
    %1677 = vmatpush.msra.mxu0 %v1676
    %v1678 = vand.u32 %v1651, 4294901760
    %1679 = vmatpush.msra.mxu0 %v1678
    %v1680 = vand.u32 %v1650, 4294901760
    %1681 = vmatpush.msra.mxu0 %v1680
    %v1682 = vand.u32 %v1649, 4294901760
    %1683 = vmatpush.msra.mxu0 %v1682
    %v1684 = vand.u32 %v1648, 4294901760
    %1685 = vmatpush.msra.mxu0 %v1684
    %v1686 = vand.u32 %v1647, 4294901760
    %1687 = vmatpush.msra.mxu0 %v1686
    %v1688 = vand.u32 %v1646, 4294901760
    %1689 = vmatpush.msra.mxu0 %v1688
    %v1690 = vand.u32 %v1645, 4294901760
    %1691 = vmatpush.msra.mxu0 %v1690
    %v1692 = vand.u32 %v1644, 4294901760
    %1693 = vmatpush.msra.mxu0 %v1692
    %v1694 = vand.u32 %v1627, 4294901760
    %v1695 = vsub.f32 %v1627, %v1694
    %v1696 = vand.u32 %v1695, 4294901760
    %v1697 = vsub.f32 %v1695, %v1696
    %v1698 = vand.u32 %v1697, 4294901760
    %1699 = vmatmul.f32.gmra.mxu0 %v1698
    %v1700 = vpop.f32.mrf.mxu0
    %v1701 = vadd.f32 %v1661, %v1700
    %v1702 = vand.u32 %v1628, 4294901760
    %v1703 = vsub.f32 %v1628, %v1702
    %v1704 = vand.u32 %v1703, 4294901760
    %v1705 = vsub.f32 %v1703, %v1704
    %v1706 = vand.u32 %v1705, 4294901760
    %1707 = vmatmul.f32.gmra.mxu0 %v1706
    %v1708 = vpop.f32.mrf.mxu0
    %v1709 = vadd.f32 %v1661, %v1708
    %v1710 = vand.u32 %v1629, 4294901760
    %v1711 = vsub.f32 %v1629, %v1710
    %v1712 = vand.u32 %v1711, 4294901760
    %v1713 = vsub.f32 %v1711, %v1712
    %v1714 = vand.u32 %v1713, 4294901760
    %1715 = vmatmul.f32.gmra.mxu0 %v1714
    %v1716 = vpop.f32.mrf.mxu0
    %v1717 = vadd.f32 %v1661, %v1716
    %v1718 = vand.u32 %v1630, 4294901760
    %v1719 = vsub.f32 %v1630, %v1718
    %v1720 = vand.u32 %v1719, 4294901760
    %v1721 = vsub.f32 %v1719, %v1720
    %v1722 = vand.u32 %v1721, 4294901760
    %1723 = vmatmul.f32.gmra.mxu0 %v1722
    %v1724 = vpop.f32.mrf.mxu0
    %v1725 = vadd.f32 %v1661, %v1724
    %v1726 = vand.u32 %v1631, 4294901760
    %v1727 = vsub.f32 %v1631, %v1726
    %v1728 = vand.u32 %v1727, 4294901760
    %v1729 = vsub.f32 %v1727, %v1728
    %v1730 = vand.u32 %v1729, 4294901760
    %1731 = vmatmul.f32.gmra.mxu0 %v1730
    %v1732 = vpop.f32.mrf.mxu0
    %v1733 = vadd.f32 %v1661, %v1732
    %v1734 = vand.u32 %v1632, 4294901760
    %v1735 = vsub.f32 %v1632, %v1734
    %v1736 = vand.u32 %v1735, 4294901760
    %v1737 = vsub.f32 %v1735, %v1736
    %v1738 = vand.u32 %v1737, 4294901760
    %1739 = vmatmul.f32.gmra.mxu0 %v1738
    %v1740 = vpop.f32.mrf.mxu0
    %v1741 = vadd.f32 %v1661, %v1740
    %v1742 = vand.u32 %v1633, 4294901760
    %v1743 = vsub.f32 %v1633, %v1742
    %v1744 = vand.u32 %v1743, 4294901760
    %v1745 = vsub.f32 %v1743, %v1744
    %v1746 = vand.u32 %v1745, 4294901760
    %1747 = vmatmul.f32.gmra.mxu0 %v1746
    %v1748 = vpop.f32.mrf.mxu0
    %v1749 = vadd.f32 %v1661, %v1748
    %v1750 = vand.u32 %v1634, 4294901760
    %v1751 = vsub.f32 %v1634, %v1750
    %v1752 = vand.u32 %v1751, 4294901760
    %v1753 = vsub.f32 %v1751, %v1752
    %v1754 = vand.u32 %v1753, 4294901760
    %1755 = vmatmul.f32.gmra.mxu0 %v1754
    %v1756 = vpop.f32.mrf.mxu0
    %v1757 = vadd.f32 %v1661, %v1756
    %v1758 = vand.u32 %v1635, 4294901760
    %v1759 = vsub.f32 %v1635, %v1758
    %v1760 = vand.u32 %v1759, 4294901760
    %v1761 = vsub.f32 %v1759, %v1760
    %v1762 = vand.u32 %v1761, 4294901760
    %1763 = vmatmul.f32.gmra.mxu0 %v1762
    %v1764 = vpop.f32.mrf.mxu0
    %v1765 = vadd.f32 %v1661, %v1764
    %v1766 = vand.u32 %v1636, 4294901760
    %v1767 = vsub.f32 %v1636, %v1766
    %v1768 = vand.u32 %v1767, 4294901760
    %v1769 = vsub.f32 %v1767, %v1768
    %v1770 = vand.u32 %v1769, 4294901760
    %1771 = vmatmul.f32.gmra.mxu0 %v1770
    %v1772 = vpop.f32.mrf.mxu0
    %v1773 = vadd.f32 %v1661, %v1772
    %v1774 = vand.u32 %v1637, 4294901760
    %v1775 = vsub.f32 %v1637, %v1774
    %v1776 = vand.u32 %v1775, 4294901760
    %v1777 = vsub.f32 %v1775, %v1776
    %v1778 = vand.u32 %v1777, 4294901760
    %1779 = vmatmul.f32.gmra.mxu0 %v1778
    %v1780 = vpop.f32.mrf.mxu0
    %v1781 = vadd.f32 %v1661, %v1780
    %v1782 = vand.u32 %v1638, 4294901760
    %v1783 = vsub.f32 %v1638, %v1782
    %v1784 = vand.u32 %v1783, 4294901760
    %v1785 = vsub.f32 %v1783, %v1784
    %v1786 = vand.u32 %v1785, 4294901760
    %1787 = vmatmul.f32.gmra.mxu0 %v1786
    %v1788 = vpop.f32.mrf.mxu0
    %v1789 = vadd.f32 %v1661, %v1788
    %v1790 = vand.u32 %v1639, 4294901760
    %v1791 = vsub.f32 %v1639, %v1790
    %v1792 = vand.u32 %v1791, 4294901760
    %v1793 = vsub.f32 %v1791, %v1792
    %v1794 = vand.u32 %v1793, 4294901760
    %1795 = vmatmul.f32.gmra.mxu0 %v1794
    %v1796 = vpop.f32.mrf.mxu0
    %v1797 = vadd.f32 %v1661, %v1796
    %v1798 = vand.u32 %v1640, 4294901760
    %v1799 = vsub.f32 %v1640, %v1798
    %v1800 = vand.u32 %v1799, 4294901760
    %v1801 = vsub.f32 %v1799, %v1800
    %v1802 = vand.u32 %v1801, 4294901760
    %1803 = vmatmul.f32.gmra.mxu0 %v1802
    %v1804 = vpop.f32.mrf.mxu0
    %v1805 = vadd.f32 %v1661, %v1804
    %v1806 = vand.u32 %v1641, 4294901760
    %v1807 = vsub.f32 %v1641, %v1806
    %v1808 = vand.u32 %v1807, 4294901760
    %v1809 = vsub.f32 %v1807, %v1808
    %v1810 = vand.u32 %v1809, 4294901760
    %1811 = vmatmul.f32.gmra.mxu0 %v1810
    %v1812 = vpop.f32.mrf.mxu0
    %v1813 = vadd.f32 %v1661, %v1812
    %v1814 = vand.u32 %v1642, 4294901760
    %v1815 = vsub.f32 %v1642, %v1814
    %v1816 = vand.u32 %v1815, 4294901760
    %v1817 = vsub.f32 %v1815, %v1816
    %v1818 = vand.u32 %v1817, 4294901760
    %1819 = vmatmul.f32.gmra.mxu0 %v1818
    %v1820 = vpop.f32.mrf.mxu0
    %v1821 = vadd.f32 %v1661, %v1820
    %1822 = vdwg.mxu0
    %v1823 = vand.u32 %v1659, 4294901760
    %v1824 = vsub.f32 %v1659, %v1823
    %v1825 = vand.u32 %v1824, 4294901760
    %v1826 = vsub.f32 %v1824, %v1825
    %v1827 = vand.u32 %v1826, 4294901760
    %1828 = vmatpush.msra.mxu0 %v1827
    %v1829 = vand.u32 %v1658, 4294901760
    %v1830 = vsub.f32 %v1658, %v1829
    %v1831 = vand.u32 %v1830, 4294901760
    %v1832 = vsub.f32 %v1830, %v1831
    %v1833 = vand.u32 %v1832, 4294901760
    %1834 = vmatpush.msra.mxu0 %v1833
    %v1835 = vand.u32 %v1657, 4294901760
    %v1836 = vsub.f32 %v1657, %v1835
    %v1837 = vand.u32 %v1836, 4294901760
    %v1838 = vsub.f32 %v1836, %v1837
    %v1839 = vand.u32 %v1838, 4294901760
    %1840 = vmatpush.msra.mxu0 %v1839
    %v1841 = vand.u32 %v1656, 4294901760
    %v1842 = vsub.f32 %v1656, %v1841
    %v1843 = vand.u32 %v1842, 4294901760
    %v1844 = vsub.f32 %v1842, %v1843
    %v1845 = vand.u32 %v1844, 4294901760
    %1846 = vmatpush.msra.mxu0 %v1845
    %v1847 = vand.u32 %v1655, 4294901760
    %v1848 = vsub.f32 %v1655, %v1847
    %v1849 = vand.u32 %v1848, 4294901760
    %v1850 = vsub.f32 %v1848, %v1849
    %v1851 = vand.u32 %v1850, 4294901760
    %1852 = vmatpush.msra.mxu0 %v1851
    %v1853 = vand.u32 %v1654, 4294901760
    %v1854 = vsub.f32 %v1654, %v1853
    %v1855 = vand.u32 %v1854, 4294901760
    %v1856 = vsub.f32 %v1854, %v1855
    %v1857 = vand.u32 %v1856, 4294901760
    %1858 = vmatpush.msra.mxu0 %v1857
    %v1859 = vand.u32 %v1653, 4294901760
    %v1860 = vsub.f32 %v1653, %v1859
    %v1861 = vand.u32 %v1860, 4294901760
    %v1862 = vsub.f32 %v1860, %v1861
    %v1863 = vand.u32 %v1862, 4294901760
    %1864 = vmatpush.msra.mxu0 %v1863
    %v1865 = vand.u32 %v1652, 4294901760
    %v1866 = vsub.f32 %v1652, %v1865
    %v1867 = vand.u32 %v1866, 4294901760
    %v1868 = vsub.f32 %v1866, %v1867
    %v1869 = vand.u32 %v1868, 4294901760
    %1870 = vmatpush.msra.mxu0 %v1869
    %v1871 = vand.u32 %v1651, 4294901760
    %v1872 = vsub.f32 %v1651, %v1871
    %v1873 = vand.u32 %v1872, 4294901760
    %v1874 = vsub.f32 %v1872, %v1873
    %v1875 = vand.u32 %v1874, 4294901760
    %1876 = vmatpush.msra.mxu0 %v1875
    %v1877 = vand.u32 %v1650, 4294901760
    %v1878 = vsub.f32 %v1650, %v1877
    %v1879 = vand.u32 %v1878, 4294901760
    %v1880 = vsub.f32 %v1878, %v1879
    %v1881 = vand.u32 %v1880, 4294901760
    %1882 = vmatpush.msra.mxu0 %v1881
    %v1883 = vand.u32 %v1649, 4294901760
    %v1884 = vsub.f32 %v1649, %v1883
    %v1885 = vand.u32 %v1884, 4294901760
    %v1886 = vsub.f32 %v1884, %v1885
    %v1887 = vand.u32 %v1886, 4294901760
    %1888 = vmatpush.msra.mxu0 %v1887
    %v1889 = vand.u32 %v1648, 4294901760
    %v1890 = vsub.f32 %v1648, %v1889
    %v1891 = vand.u32 %v1890, 4294901760
    %v1892 = vsub.f32 %v1890, %v1891
    %v1893 = vand.u32 %v1892, 4294901760
    %1894 = vmatpush.msra.mxu0 %v1893
    %v1895 = vand.u32 %v1647, 4294901760
    %v1896 = vsub.f32 %v1647, %v1895
    %v1897 = vand.u32 %v1896, 4294901760
    %v1898 = vsub.f32 %v1896, %v1897
    %v1899 = vand.u32 %v1898, 4294901760
    %1900 = vmatpush.msra.mxu0 %v1899
    %v1901 = vand.u32 %v1646, 4294901760
    %v1902 = vsub.f32 %v1646, %v1901
    %v1903 = vand.u32 %v1902, 4294901760
    %v1904 = vsub.f32 %v1902, %v1903
    %v1905 = vand.u32 %v1904, 4294901760
    %1906 = vmatpush.msra.mxu0 %v1905
    %v1907 = vand.u32 %v1645, 4294901760
    %v1908 = vsub.f32 %v1645, %v1907
    %v1909 = vand.u32 %v1908, 4294901760
    %v1910 = vsub.f32 %v1908, %v1909
    %v1911 = vand.u32 %v1910, 4294901760
    %1912 = vmatpush.msra.mxu0 %v1911
    %v1913 = vand.u32 %v1644, 4294901760
    %v1914 = vsub.f32 %v1644, %v1913
    %v1915 = vand.u32 %v1914, 4294901760
    %v1916 = vsub.f32 %v1914, %v1915
    %v1917 = vand.u32 %v1916, 4294901760
    %1918 = vmatpush.msra.mxu0 %v1917
    %v1919 = vand.u32 %v1627, 4294901760
    %1920 = vmatmul.f32.gmra.mxu0 %v1919
    %v1921 = vpop.f32.mrf.mxu0
    %v1922 = vadd.f32 %v1701, %v1921
    %v1923 = vand.u32 %v1628, 4294901760
    %1924 = vmatmul.f32.gmra.mxu0 %v1923
    %v1925 = vpop.f32.mrf.mxu0
    %v1926 = vadd.f32 %v1709, %v1925
    %v1927 = vand.u32 %v1629, 4294901760
    %1928 = vmatmul.f32.gmra.mxu0 %v1927
    %v1929 = vpop.f32.mrf.mxu0
    %v1930 = vadd.f32 %v1717, %v1929
    %v1931 = vand.u32 %v1630, 4294901760
    %1932 = vmatmul.f32.gmra.mxu0 %v1931
    %v1933 = vpop.f32.mrf.mxu0
    %v1934 = vadd.f32 %v1725, %v1933
    %v1935 = vand.u32 %v1631, 4294901760
    %1936 = vmatmul.f32.gmra.mxu0 %v1935
    %v1937 = vpop.f32.mrf.mxu0
    %v1938 = vadd.f32 %v1733, %v1937
    %v1939 = vand.u32 %v1632, 4294901760
    %1940 = vmatmul.f32.gmra.mxu0 %v1939
    %v1941 = vpop.f32.mrf.mxu0
    %v1942 = vadd.f32 %v1741, %v1941
    %v1943 = vand.u32 %v1633, 4294901760
    %1944 = vmatmul.f32.gmra.mxu0 %v1943
    %v1945 = vpop.f32.mrf.mxu0
    %v1946 = vadd.f32 %v1749, %v1945
    %v1947 = vand.u32 %v1634, 4294901760
    %1948 = vmatmul.f32.gmra.mxu0 %v1947
    %v1949 = vpop.f32.mrf.mxu0
    %v1950 = vadd.f32 %v1757, %v1949
    %v1951 = vand.u32 %v1635, 4294901760
    %1952 = vmatmul.f32.gmra.mxu0 %v1951
    %v1953 = vpop.f32.mrf.mxu0
    %v1954 = vadd.f32 %v1765, %v1953
    %v1955 = vand.u32 %v1636, 4294901760
    %1956 = vmatmul.f32.gmra.mxu0 %v1955
    %v1957 = vpop.f32.mrf.mxu0
    %v1958 = vadd.f32 %v1773, %v1957
    %v1959 = vand.u32 %v1637, 4294901760
    %1960 = vmatmul.f32.gmra.mxu0 %v1959
    %v1961 = vpop.f32.mrf.mxu0
    %v1962 = vadd.f32 %v1781, %v1961
    %v1963 = vand.u32 %v1638, 4294901760
    %1964 = vmatmul.f32.gmra.mxu0 %v1963
    %v1965 = vpop.f32.mrf.mxu0
    %v1966 = vadd.f32 %v1789, %v1965
    %v1967 = vand.u32 %v1639, 4294901760
    %1968 = vmatmul.f32.gmra.mxu0 %v1967
    %v1969 = vpop.f32.mrf.mxu0
    %v1970 = vadd.f32 %v1797, %v1969
    %v1971 = vand.u32 %v1640, 4294901760
    %1972 = vmatmul.f32.gmra.mxu0 %v1971
    %v1973 = vpop.f32.mrf.mxu0
    %v1974 = vadd.f32 %v1805, %v1973
    %v1975 = vand.u32 %v1641, 4294901760
    %1976 = vmatmul.f32.gmra.mxu0 %v1975
    %v1977 = vpop.f32.mrf.mxu0
    %v1978 = vadd.f32 %v1813, %v1977
    %v1979 = vand.u32 %v1642, 4294901760
    %1980 = vmatmul.f32.gmra.mxu0 %v1979
    %v1981 = vpop.f32.mrf.mxu0
    %v1982 = vadd.f32 %v1821, %v1981
    %1983 = vdwg.mxu0
    %v1984 = vand.u32 %v1659, 4294901760
    %v1985 = vsub.f32 %v1659, %v1984
    %1986 = vmatpush.msra.mxu0 %v1985
    %v1987 = vand.u32 %v1658, 4294901760
    %v1988 = vsub.f32 %v1658, %v1987
    %1989 = vmatpush.msra.mxu0 %v1988
    %v1990 = vand.u32 %v1657, 4294901760
    %v1991 = vsub.f32 %v1657, %v1990
    %1992 = vmatpush.msra.mxu0 %v1991
    %v1993 = vand.u32 %v1656, 4294901760
    %v1994 = vsub.f32 %v1656, %v1993
    %1995 = vmatpush.msra.mxu0 %v1994
    %v1996 = vand.u32 %v1655, 4294901760
    %v1997 = vsub.f32 %v1655, %v1996
    %1998 = vmatpush.msra.mxu0 %v1997
    %v1999 = vand.u32 %v1654, 4294901760
    %v2000 = vsub.f32 %v1654, %v1999
    %2001 = vmatpush.msra.mxu0 %v2000
    %v2002 = vand.u32 %v1653, 4294901760
    %v2003 = vsub.f32 %v1653, %v2002
    %2004 = vmatpush.msra.mxu0 %v2003
    %v2005 = vand.u32 %v1652, 4294901760
    %v2006 = vsub.f32 %v1652, %v2005
    %2007 = vmatpush.msra.mxu0 %v2006
    %v2008 = vand.u32 %v1651, 4294901760
    %v2009 = vsub.f32 %v1651, %v2008
    %2010 = vmatpush.msra.mxu0 %v2009
    %v2011 = vand.u32 %v1650, 4294901760
    %v2012 = vsub.f32 %v1650, %v2011
    %2013 = vmatpush.msra.mxu0 %v2012
    %v2014 = vand.u32 %v1649, 4294901760
    %v2015 = vsub.f32 %v1649, %v2014
    %2016 = vmatpush.msra.mxu0 %v2015
    %v2017 = vand.u32 %v1648, 4294901760
    %v2018 = vsub.f32 %v1648, %v2017
    %2019 = vmatpush.msra.mxu0 %v2018
    %v2020 = vand.u32 %v1647, 4294901760
    %v2021 = vsub.f32 %v1647, %v2020
    %2022 = vmatpush.msra.mxu0 %v2021
    %v2023 = vand.u32 %v1646, 4294901760
    %v2024 = vsub.f32 %v1646, %v2023
    %2025 = vmatpush.msra.mxu0 %v2024
    %v2026 = vand.u32 %v1645, 4294901760
    %v2027 = vsub.f32 %v1645, %v2026
    %2028 = vmatpush.msra.mxu0 %v2027
    %v2029 = vand.u32 %v1644, 4294901760
    %v2030 = vsub.f32 %v1644, %v2029
    %2031 = vmatpush.msra.mxu0 %v2030
    %v2032 = vand.u32 %v1627, 4294901760
    %v2033 = vsub.f32 %v1627, %v2032
    %2034 = vmatmul.f32.gmra.mxu0 %v2033
    %v2035 = vpop.f32.mrf.mxu0
    %v2036 = vadd.f32 %v1922, %v2035
    %v2037 = vand.u32 %v1628, 4294901760
    %v2038 = vsub.f32 %v1628, %v2037
    %2039 = vmatmul.f32.gmra.mxu0 %v2038
    %v2040 = vpop.f32.mrf.mxu0
    %v2041 = vadd.f32 %v1926, %v2040
    %v2042 = vand.u32 %v1629, 4294901760
    %v2043 = vsub.f32 %v1629, %v2042
    %2044 = vmatmul.f32.gmra.mxu0 %v2043
    %v2045 = vpop.f32.mrf.mxu0
    %v2046 = vadd.f32 %v1930, %v2045
    %v2047 = vand.u32 %v1630, 4294901760
    %v2048 = vsub.f32 %v1630, %v2047
    %2049 = vmatmul.f32.gmra.mxu0 %v2048
    %v2050 = vpop.f32.mrf.mxu0
    %v2051 = vadd.f32 %v1934, %v2050
    %v2052 = vand.u32 %v1631, 4294901760
    %v2053 = vsub.f32 %v1631, %v2052
    %2054 = vmatmul.f32.gmra.mxu0 %v2053
    %v2055 = vpop.f32.mrf.mxu0
    %v2056 = vadd.f32 %v1938, %v2055
    %v2057 = vand.u32 %v1632, 4294901760
    %v2058 = vsub.f32 %v1632, %v2057
    %2059 = vmatmul.f32.gmra.mxu0 %v2058
    %v2060 = vpop.f32.mrf.mxu0
    %v2061 = vadd.f32 %v1942, %v2060
    %v2062 = vand.u32 %v1633, 4294901760
    %v2063 = vsub.f32 %v1633, %v2062
    %2064 = vmatmul.f32.gmra.mxu0 %v2063
    %v2065 = vpop.f32.mrf.mxu0
    %v2066 = vadd.f32 %v1946, %v2065
    %v2067 = vand.u32 %v1634, 4294901760
    %v2068 = vsub.f32 %v1634, %v2067
    %2069 = vmatmul.f32.gmra.mxu0 %v2068
    %v2070 = vpop.f32.mrf.mxu0
    %v2071 = vadd.f32 %v1950, %v2070
    %v2072 = vand.u32 %v1635, 4294901760
    %v2073 = vsub.f32 %v1635, %v2072
    %2074 = vmatmul.f32.gmra.mxu0 %v2073
    %v2075 = vpop.f32.mrf.mxu0
    %v2076 = vadd.f32 %v1954, %v2075
    %v2077 = vand.u32 %v1636, 4294901760
    %v2078 = vsub.f32 %v1636, %v2077
    %2079 = vmatmul.f32.gmra.mxu0 %v2078
    %v2080 = vpop.f32.mrf.mxu0
    %v2081 = vadd.f32 %v1958, %v2080
    %v2082 = vand.u32 %v1637, 4294901760
    %v2083 = vsub.f32 %v1637, %v2082
    %2084 = vmatmul.f32.gmra.mxu0 %v2083
    %v2085 = vpop.f32.mrf.mxu0
    %v2086 = vadd.f32 %v1962, %v2085
    %v2087 = vand.u32 %v1638, 4294901760
    %v2088 = vsub.f32 %v1638, %v2087
    %2089 = vmatmul.f32.gmra.mxu0 %v2088
    %v2090 = vpop.f32.mrf.mxu0
    %v2091 = vadd.f32 %v1966, %v2090
    %v2092 = vand.u32 %v1639, 4294901760
    %v2093 = vsub.f32 %v1639, %v2092
    %2094 = vmatmul.f32.gmra.mxu0 %v2093
    %v2095 = vpop.f32.mrf.mxu0
    %v2096 = vadd.f32 %v1970, %v2095
    %v2097 = vand.u32 %v1640, 4294901760
    %v2098 = vsub.f32 %v1640, %v2097
    %2099 = vmatmul.f32.gmra.mxu0 %v2098
    %v2100 = vpop.f32.mrf.mxu0
    %v2101 = vadd.f32 %v1974, %v2100
    %v2102 = vand.u32 %v1641, 4294901760
    %v2103 = vsub.f32 %v1641, %v2102
    %2104 = vmatmul.f32.gmra.mxu0 %v2103
    %v2105 = vpop.f32.mrf.mxu0
    %v2106 = vadd.f32 %v1978, %v2105
    %v2107 = vand.u32 %v1642, 4294901760
    %v2108 = vsub.f32 %v1642, %v2107
    %2109 = vmatmul.f32.gmra.mxu0 %v2108
    %v2110 = vpop.f32.mrf.mxu0
    %v2111 = vadd.f32 %v1982, %v2110
    %2112 = vdwg.mxu0
    %v2113 = vand.u32 %v1659, 4294901760
    %2114 = vmatpush.msra.mxu0 %v2113
    %v2115 = vand.u32 %v1658, 4294901760
    %2116 = vmatpush.msra.mxu0 %v2115
    %v2117 = vand.u32 %v1657, 4294901760
    %2118 = vmatpush.msra.mxu0 %v2117
    %v2119 = vand.u32 %v1656, 4294901760
    %2120 = vmatpush.msra.mxu0 %v2119
    %v2121 = vand.u32 %v1655, 4294901760
    %2122 = vmatpush.msra.mxu0 %v2121
    %v2123 = vand.u32 %v1654, 4294901760
    %2124 = vmatpush.msra.mxu0 %v2123
    %v2125 = vand.u32 %v1653, 4294901760
    %2126 = vmatpush.msra.mxu0 %v2125
    %v2127 = vand.u32 %v1652, 4294901760
    %2128 = vmatpush.msra.mxu0 %v2127
    %v2129 = vand.u32 %v1651, 4294901760
    %2130 = vmatpush.msra.mxu0 %v2129
    %v2131 = vand.u32 %v1650, 4294901760
    %2132 = vmatpush.msra.mxu0 %v2131
    %v2133 = vand.u32 %v1649, 4294901760
    %2134 = vmatpush.msra.mxu0 %v2133
    %v2135 = vand.u32 %v1648, 4294901760
    %2136 = vmatpush.msra.mxu0 %v2135
    %v2137 = vand.u32 %v1647, 4294901760
    %2138 = vmatpush.msra.mxu0 %v2137
    %v2139 = vand.u32 %v1646, 4294901760
    %2140 = vmatpush.msra.mxu0 %v2139
    %v2141 = vand.u32 %v1645, 4294901760
    %2142 = vmatpush.msra.mxu0 %v2141
    %v2143 = vand.u32 %v1644, 4294901760
    %2144 = vmatpush.msra.mxu0 %v2143
    %v2145 = vand.u32 %v1627, 4294901760
    %v2146 = vsub.f32 %v1627, %v2145
    %v2147 = vand.u32 %v2146, 4294901760
    %2148 = vmatmul.f32.gmra.mxu0 %v2147
    %v2149 = vpop.f32.mrf.mxu0
    %v2150 = vadd.f32 %v2036, %v2149
    %v2151 = vand.u32 %v1628, 4294901760
    %v2152 = vsub.f32 %v1628, %v2151
    %v2153 = vand.u32 %v2152, 4294901760
    %2154 = vmatmul.f32.gmra.mxu0 %v2153
    %v2155 = vpop.f32.mrf.mxu0
    %v2156 = vadd.f32 %v2041, %v2155
    %v2157 = vand.u32 %v1629, 4294901760
    %v2158 = vsub.f32 %v1629, %v2157
    %v2159 = vand.u32 %v2158, 4294901760
    %2160 = vmatmul.f32.gmra.mxu0 %v2159
    %v2161 = vpop.f32.mrf.mxu0
    %v2162 = vadd.f32 %v2046, %v2161
    %v2163 = vand.u32 %v1630, 4294901760
    %v2164 = vsub.f32 %v1630, %v2163
    %v2165 = vand.u32 %v2164, 4294901760
    %2166 = vmatmul.f32.gmra.mxu0 %v2165
    %v2167 = vpop.f32.mrf.mxu0
    %v2168 = vadd.f32 %v2051, %v2167
    %v2169 = vand.u32 %v1631, 4294901760
    %v2170 = vsub.f32 %v1631, %v2169
    %v2171 = vand.u32 %v2170, 4294901760
    %2172 = vmatmul.f32.gmra.mxu0 %v2171
    %v2173 = vpop.f32.mrf.mxu0
    %v2174 = vadd.f32 %v2056, %v2173
    %v2175 = vand.u32 %v1632, 4294901760
    %v2176 = vsub.f32 %v1632, %v2175
    %v2177 = vand.u32 %v2176, 4294901760
    %2178 = vmatmul.f32.gmra.mxu0 %v2177
    %v2179 = vpop.f32.mrf.mxu0
    %v2180 = vadd.f32 %v2061, %v2179
    %v2181 = vand.u32 %v1633, 4294901760
    %v2182 = vsub.f32 %v1633, %v2181
    %v2183 = vand.u32 %v2182, 4294901760
    %2184 = vmatmul.f32.gmra.mxu0 %v2183
    %v2185 = vpop.f32.mrf.mxu0
    %v2186 = vadd.f32 %v2066, %v2185
    %v2187 = vand.u32 %v1634, 4294901760
    %v2188 = vsub.f32 %v1634, %v2187
    %v2189 = vand.u32 %v2188, 4294901760
    %2190 = vmatmul.f32.gmra.mxu0 %v2189
    %v2191 = vpop.f32.mrf.mxu0
    %v2192 = vadd.f32 %v2071, %v2191
    %v2193 = vand.u32 %v1635, 4294901760
    %v2194 = vsub.f32 %v1635, %v2193
    %v2195 = vand.u32 %v2194, 4294901760
    %2196 = vmatmul.f32.gmra.mxu0 %v2195
    %v2197 = vpop.f32.mrf.mxu0
    %v2198 = vadd.f32 %v2076, %v2197
    %v2199 = vand.u32 %v1636, 4294901760
    %v2200 = vsub.f32 %v1636, %v2199
    %v2201 = vand.u32 %v2200, 4294901760
    %2202 = vmatmul.f32.gmra.mxu0 %v2201
    %v2203 = vpop.f32.mrf.mxu0
    %v2204 = vadd.f32 %v2081, %v2203
    %v2205 = vand.u32 %v1637, 4294901760
    %v2206 = vsub.f32 %v1637, %v2205
    %v2207 = vand.u32 %v2206, 4294901760
    %2208 = vmatmul.f32.gmra.mxu0 %v2207
    %v2209 = vpop.f32.mrf.mxu0
    %v2210 = vadd.f32 %v2086, %v2209
    %v2211 = vand.u32 %v1638, 4294901760
    %v2212 = vsub.f32 %v1638, %v2211
    %v2213 = vand.u32 %v2212, 4294901760
    %2214 = vmatmul.f32.gmra.mxu0 %v2213
    %v2215 = vpop.f32.mrf.mxu0
    %v2216 = vadd.f32 %v2091, %v2215
    %v2217 = vand.u32 %v1639, 4294901760
    %v2218 = vsub.f32 %v1639, %v2217
    %v2219 = vand.u32 %v2218, 4294901760
    %2220 = vmatmul.f32.gmra.mxu0 %v2219
    %v2221 = vpop.f32.mrf.mxu0
    %v2222 = vadd.f32 %v2096, %v2221
    %v2223 = vand.u32 %v1640, 4294901760
    %v2224 = vsub.f32 %v1640, %v2223
    %v2225 = vand.u32 %v2224, 4294901760
    %2226 = vmatmul.f32.gmra.mxu0 %v2225
    %v2227 = vpop.f32.mrf.mxu0
    %v2228 = vadd.f32 %v2101, %v2227
    %v2229 = vand.u32 %v1641, 4294901760
    %v2230 = vsub.f32 %v1641, %v2229
    %v2231 = vand.u32 %v2230, 4294901760
    %2232 = vmatmul.f32.gmra.mxu0 %v2231
    %v2233 = vpop.f32.mrf.mxu0
    %v2234 = vadd.f32 %v2106, %v2233
    %v2235 = vand.u32 %v1642, 4294901760
    %v2236 = vsub.f32 %v1642, %v2235
    %v2237 = vand.u32 %v2236, 4294901760
    %2238 = vmatmul.f32.gmra.mxu0 %v2237
    %v2239 = vpop.f32.mrf.mxu0
    %v2240 = vadd.f32 %v2111, %v2239
    %2241 = vdwg.mxu0
    %v2242 = vand.u32 %v1659, 4294901760
    %v2243 = vsub.f32 %v1659, %v2242
    %v2244 = vand.u32 %v2243, 4294901760
    %2245 = vmatpush.msra.mxu0 %v2244
    %v2246 = vand.u32 %v1658, 4294901760
    %v2247 = vsub.f32 %v1658, %v2246
    %v2248 = vand.u32 %v2247, 4294901760
    %2249 = vmatpush.msra.mxu0 %v2248
    %v2250 = vand.u32 %v1657, 4294901760
    %v2251 = vsub.f32 %v1657, %v2250
    %v2252 = vand.u32 %v2251, 4294901760
    %2253 = vmatpush.msra.mxu0 %v2252
    %v2254 = vand.u32 %v1656, 4294901760
    %v2255 = vsub.f32 %v1656, %v2254
    %v2256 = vand.u32 %v2255, 4294901760
    %2257 = vmatpush.msra.mxu0 %v2256
    %v2258 = vand.u32 %v1655, 4294901760
    %v2259 = vsub.f32 %v1655, %v2258
    %v2260 = vand.u32 %v2259, 4294901760
    %2261 = vmatpush.msra.mxu0 %v2260
    %v2262 = vand.u32 %v1654, 4294901760
    %v2263 = vsub.f32 %v1654, %v2262
    %v2264 = vand.u32 %v2263, 4294901760
    %2265 = vmatpush.msra.mxu0 %v2264
    %v2266 = vand.u32 %v1653, 4294901760
    %v2267 = vsub.f32 %v1653, %v2266
    %v2268 = vand.u32 %v2267, 4294901760
    %2269 = vmatpush.msra.mxu0 %v2268
    %v2270 = vand.u32 %v1652, 4294901760
    %v2271 = vsub.f32 %v1652, %v2270
    %v2272 = vand.u32 %v2271, 4294901760
    %2273 = vmatpush.msra.mxu0 %v2272
    %v2274 = vand.u32 %v1651, 4294901760
    %v2275 = vsub.f32 %v1651, %v2274
    %v2276 = vand.u32 %v2275, 4294901760
    %2277 = vmatpush.msra.mxu0 %v2276
    %v2278 = vand.u32 %v1650, 4294901760
    %v2279 = vsub.f32 %v1650, %v2278
    %v2280 = vand.u32 %v2279, 4294901760
    %2281 = vmatpush.msra.mxu0 %v2280
    %v2282 = vand.u32 %v1649, 4294901760
    %v2283 = vsub.f32 %v1649, %v2282
    %v2284 = vand.u32 %v2283, 4294901760
    %2285 = vmatpush.msra.mxu0 %v2284
    %v2286 = vand.u32 %v1648, 4294901760
    %v2287 = vsub.f32 %v1648, %v2286
    %v2288 = vand.u32 %v2287, 4294901760
    %2289 = vmatpush.msra.mxu0 %v2288
    %v2290 = vand.u32 %v1647, 4294901760
    %v2291 = vsub.f32 %v1647, %v2290
    %v2292 = vand.u32 %v2291, 4294901760
    %2293 = vmatpush.msra.mxu0 %v2292
    %v2294 = vand.u32 %v1646, 4294901760
    %v2295 = vsub.f32 %v1646, %v2294
    %v2296 = vand.u32 %v2295, 4294901760
    %2297 = vmatpush.msra.mxu0 %v2296
    %v2298 = vand.u32 %v1645, 4294901760
    %v2299 = vsub.f32 %v1645, %v2298
    %v2300 = vand.u32 %v2299, 4294901760
    %2301 = vmatpush.msra.mxu0 %v2300
    %v2302 = vand.u32 %v1644, 4294901760
    %v2303 = vsub.f32 %v1644, %v2302
    %v2304 = vand.u32 %v2303, 4294901760
    %2305 = vmatpush.msra.mxu0 %v2304
    %v2306 = vand.u32 %v1627, 4294901760
    %2307 = vmatmul.f32.gmra.mxu0 %v2306
    %v2308 = vpop.f32.mrf.mxu0
    %v2309 = vadd.f32 %v2150, %v2308
    %v2310 = vand.u32 %v1628, 4294901760
    %2311 = vmatmul.f32.gmra.mxu0 %v2310
    %v2312 = vpop.f32.mrf.mxu0
    %v2313 = vadd.f32 %v2156, %v2312
    %v2314 = vand.u32 %v1629, 4294901760
    %2315 = vmatmul.f32.gmra.mxu0 %v2314
    %v2316 = vpop.f32.mrf.mxu0
    %v2317 = vadd.f32 %v2162, %v2316
    %v2318 = vand.u32 %v1630, 4294901760
    %2319 = vmatmul.f32.gmra.mxu0 %v2318
    %v2320 = vpop.f32.mrf.mxu0
    %v2321 = vadd.f32 %v2168, %v2320
    %v2322 = vand.u32 %v1631, 4294901760
    %2323 = vmatmul.f32.gmra.mxu0 %v2322
    %v2324 = vpop.f32.mrf.mxu0
    %v2325 = vadd.f32 %v2174, %v2324
    %v2326 = vand.u32 %v1632, 4294901760
    %2327 = vmatmul.f32.gmra.mxu0 %v2326
    %v2328 = vpop.f32.mrf.mxu0
    %v2329 = vadd.f32 %v2180, %v2328
    %v2330 = vand.u32 %v1633, 4294901760
    %2331 = vmatmul.f32.gmra.mxu0 %v2330
    %v2332 = vpop.f32.mrf.mxu0
    %v2333 = vadd.f32 %v2186, %v2332
    %v2334 = vand.u32 %v1634, 4294901760
    %2335 = vmatmul.f32.gmra.mxu0 %v2334
    %v2336 = vpop.f32.mrf.mxu0
    %v2337 = vadd.f32 %v2192, %v2336
    %v2338 = vand.u32 %v1635, 4294901760
    %2339 = vmatmul.f32.gmra.mxu0 %v2338
    %v2340 = vpop.f32.mrf.mxu0
    %v2341 = vadd.f32 %v2198, %v2340
    %v2342 = vand.u32 %v1636, 4294901760
    %2343 = vmatmul.f32.gmra.mxu0 %v2342
    %v2344 = vpop.f32.mrf.mxu0
    %v2345 = vadd.f32 %v2204, %v2344
    %v2346 = vand.u32 %v1637, 4294901760
    %2347 = vmatmul.f32.gmra.mxu0 %v2346
    %v2348 = vpop.f32.mrf.mxu0
    %v2349 = vadd.f32 %v2210, %v2348
    %v2350 = vand.u32 %v1638, 4294901760
    %2351 = vmatmul.f32.gmra.mxu0 %v2350
    %v2352 = vpop.f32.mrf.mxu0
    %v2353 = vadd.f32 %v2216, %v2352
    %v2354 = vand.u32 %v1639, 4294901760
    %2355 = vmatmul.f32.gmra.mxu0 %v2354
    %v2356 = vpop.f32.mrf.mxu0
    %v2357 = vadd.f32 %v2222, %v2356
    %v2358 = vand.u32 %v1640, 4294901760
    %2359 = vmatmul.f32.gmra.mxu0 %v2358
    %v2360 = vpop.f32.mrf.mxu0
    %v2361 = vadd.f32 %v2228, %v2360
    %v2362 = vand.u32 %v1641, 4294901760
    %2363 = vmatmul.f32.gmra.mxu0 %v2362
    %v2364 = vpop.f32.mrf.mxu0
    %v2365 = vadd.f32 %v2234, %v2364
    %v2366 = vand.u32 %v1642, 4294901760
    %2367 = vmatmul.f32.gmra.mxu0 %v2366
    %v2368 = vpop.f32.mrf.mxu0
    %v2369 = vadd.f32 %v2240, %v2368
    %2370 = vdwg.mxu0
    %v2371 = vand.u32 %v1659, 4294901760
    %2372 = vmatpush.msra.mxu0 %v2371
    %v2373 = vand.u32 %v1658, 4294901760
    %2374 = vmatpush.msra.mxu0 %v2373
    %v2375 = vand.u32 %v1657, 4294901760
    %2376 = vmatpush.msra.mxu0 %v2375
    %v2377 = vand.u32 %v1656, 4294901760
    %2378 = vmatpush.msra.mxu0 %v2377
    %v2379 = vand.u32 %v1655, 4294901760
    %2380 = vmatpush.msra.mxu0 %v2379
    %v2381 = vand.u32 %v1654, 4294901760
    %2382 = vmatpush.msra.mxu0 %v2381
    %v2383 = vand.u32 %v1653, 4294901760
    %2384 = vmatpush.msra.mxu0 %v2383
    %v2385 = vand.u32 %v1652, 4294901760
    %2386 = vmatpush.msra.mxu0 %v2385
    %v2387 = vand.u32 %v1651, 4294901760
    %2388 = vmatpush.msra.mxu0 %v2387
    %v2389 = vand.u32 %v1650, 4294901760
    %2390 = vmatpush.msra.mxu0 %v2389
    %v2391 = vand.u32 %v1649, 4294901760
    %2392 = vmatpush.msra.mxu0 %v2391
    %v2393 = vand.u32 %v1648, 4294901760
    %2394 = vmatpush.msra.mxu0 %v2393
    %v2395 = vand.u32 %v1647, 4294901760
    %2396 = vmatpush.msra.mxu0 %v2395
    %v2397 = vand.u32 %v1646, 4294901760
    %2398 = vmatpush.msra.mxu0 %v2397
    %v2399 = vand.u32 %v1645, 4294901760
    %2400 = vmatpush.msra.mxu0 %v2399
    %v2401 = vand.u32 %v1644, 4294901760
    %2402 = vmatpush.msra.mxu0 %v2401
    %v2403 = vand.u32 %v1627, 4294901760
    %2404 = vmatmul.f32.gmra.mxu0 %v2403
    %v2405 = vpop.f32.mrf.mxu0
    %v2406 = vadd.f32 %v2309, %v2405
    %v2407 = vand.u32 %v1628, 4294901760
    %2408 = vmatmul.f32.gmra.mxu0 %v2407
    %v2409 = vpop.f32.mrf.mxu0
    %v2410 = vadd.f32 %v2313, %v2409
    %v2411 = vand.u32 %v1629, 4294901760
    %2412 = vmatmul.f32.gmra.mxu0 %v2411
    %v2413 = vpop.f32.mrf.mxu0
    %v2414 = vadd.f32 %v2317, %v2413
    %v2415 = vand.u32 %v1630, 4294901760
    %2416 = vmatmul.f32.gmra.mxu0 %v2415
    %v2417 = vpop.f32.mrf.mxu0
    %v2418 = vadd.f32 %v2321, %v2417
    %v2419 = vand.u32 %v1631, 4294901760
    %2420 = vmatmul.f32.gmra.mxu0 %v2419
    %v2421 = vpop.f32.mrf.mxu0
    %v2422 = vadd.f32 %v2325, %v2421
    %v2423 = vand.u32 %v1632, 4294901760
    %2424 = vmatmul.f32.gmra.mxu0 %v2423
    %v2425 = vpop.f32.mrf.mxu0
    %v2426 = vadd.f32 %v2329, %v2425
    %v2427 = vand.u32 %v1633, 4294901760
    %2428 = vmatmul.f32.gmra.mxu0 %v2427
    %v2429 = vpop.f32.mrf.mxu0
    %v2430 = vadd.f32 %v2333, %v2429
    %v2431 = vand.u32 %v1634, 4294901760
    %2432 = vmatmul.f32.gmra.mxu0 %v2431
    %v2433 = vpop.f32.mrf.mxu0
    %v2434 = vadd.f32 %v2337, %v2433
    %v2435 = vand.u32 %v1635, 4294901760
    %2436 = vmatmul.f32.gmra.mxu0 %v2435
    %v2437 = vpop.f32.mrf.mxu0
    %v2438 = vadd.f32 %v2341, %v2437
    %v2439 = vand.u32 %v1636, 4294901760
    %2440 = vmatmul.f32.gmra.mxu0 %v2439
    %v2441 = vpop.f32.mrf.mxu0
    %v2442 = vadd.f32 %v2345, %v2441
    %v2443 = vand.u32 %v1637, 4294901760
    %2444 = vmatmul.f32.gmra.mxu0 %v2443
    %v2445 = vpop.f32.mrf.mxu0
    %v2446 = vadd.f32 %v2349, %v2445
    %v2447 = vand.u32 %v1638, 4294901760
    %2448 = vmatmul.f32.gmra.mxu0 %v2447
    %v2449 = vpop.f32.mrf.mxu0
    %v2450 = vadd.f32 %v2353, %v2449
    %v2451 = vand.u32 %v1639, 4294901760
    %2452 = vmatmul.f32.gmra.mxu0 %v2451
    %v2453 = vpop.f32.mrf.mxu0
    %v2454 = vadd.f32 %v2357, %v2453
    %v2455 = vand.u32 %v1640, 4294901760
    %2456 = vmatmul.f32.gmra.mxu0 %v2455
    %v2457 = vpop.f32.mrf.mxu0
    %v2458 = vadd.f32 %v2361, %v2457
    %v2459 = vand.u32 %v1641, 4294901760
    %2460 = vmatmul.f32.gmra.mxu0 %v2459
    %v2461 = vpop.f32.mrf.mxu0
    %v2462 = vadd.f32 %v2365, %v2461
    %v2463 = vand.u32 %v1642, 4294901760
    %2464 = vmatmul.f32.gmra.mxu0 %v2463
    %v2465 = vpop.f32.mrf.mxu0
    %v2466 = vadd.f32 %v2369, %v2465
    %2467 = vdwg.mxu0
    %vm2468 = vcmp.ge.s32.totalorder %v61, 32
    %vm2469 = vcmp.lt.s32.totalorder %v61, 48
    %vm2470 = vmand %vm2468, %vm2469
    %v2471 = vsel %vm2470, %v2406, -1e+30
    %v2472 = vsel %vm2470, %v2410, -1e+30
    %v2473 = vsel %vm2470, %v2414, -1e+30
    %v2474 = vsel %vm2470, %v2418, -1e+30
    %v2475 = vsel %vm2470, %v2422, -1e+30
    %v2476 = vsel %vm2470, %v2426, -1e+30
    %v2477 = vsel %vm2470, %v2430, -1e+30
    %v2478 = vsel %vm2470, %v2434, -1e+30
    %v2479 = vsel %vm2470, %v2438, -1e+30
    %v2480 = vsel %vm2470, %v2442, -1e+30
    %v2481 = vsel %vm2470, %v2446, -1e+30
    %v2482 = vsel %vm2470, %v2450, -1e+30
    %v2483 = vsel %vm2470, %v2454, -1e+30
    %v2484 = vsel %vm2470, %v2458, -1e+30
    %v2485 = vsel %vm2470, %v2462, -1e+30
    %v2486 = vsel %vm2470, %v2466, -1e+30
    %2487 = vmax.xlane.f32.xlu0 %v2471
    %v2488 = vpop.xlane.xlu0 %2487
    %2489 = vmax.xlane.f32.xlu0 %v2472
    %v2490 = vpop.xlane.xlu0 %2489
    %2491 = vmax.xlane.f32.xlu0 %v2473
    %v2492 = vpop.xlane.xlu0 %2491
    %2493 = vmax.xlane.f32.xlu0 %v2474
    %v2494 = vpop.xlane.xlu0 %2493
    %2495 = vmax.xlane.f32.xlu0 %v2475
    %v2496 = vpop.xlane.xlu0 %2495
    %2497 = vmax.xlane.f32.xlu0 %v2476
    %v2498 = vpop.xlane.xlu0 %2497
    %2499 = vmax.xlane.f32.xlu0 %v2477
    %v2500 = vpop.xlane.xlu0 %2499
    %2501 = vmax.xlane.f32.xlu0 %v2478
    %v2502 = vpop.xlane.xlu0 %2501
    %2503 = vmax.xlane.f32.xlu0 %v2479
    %v2504 = vpop.xlane.xlu0 %2503
    %2505 = vmax.xlane.f32.xlu0 %v2480
    %v2506 = vpop.xlane.xlu0 %2505
    %2507 = vmax.xlane.f32.xlu0 %v2481
    %v2508 = vpop.xlane.xlu0 %2507
    %2509 = vmax.xlane.f32.xlu0 %v2482
    %v2510 = vpop.xlane.xlu0 %2509
    %2511 = vmax.xlane.f32.xlu0 %v2483
    %v2512 = vpop.xlane.xlu0 %2511
    %2513 = vmax.xlane.f32.xlu0 %v2484
    %v2514 = vpop.xlane.xlu0 %2513
    %2515 = vmax.xlane.f32.xlu0 %v2485
    %v2516 = vpop.xlane.xlu0 %2515
    %2517 = vmax.xlane.f32.xlu0 %v2486
    %v2518 = vpop.xlane.xlu0 %2517
    %v2519 = vsub.f32 %v2471, %v2488
    %v2520 = vsub.f32 %v2472, %v2490
    %v2521 = vsub.f32 %v2473, %v2492
    %v2522 = vsub.f32 %v2474, %v2494
    %v2523 = vsub.f32 %v2475, %v2496
    %v2524 = vsub.f32 %v2476, %v2498
    %v2525 = vsub.f32 %v2477, %v2500
    %v2526 = vsub.f32 %v2478, %v2502
    %v2527 = vsub.f32 %v2479, %v2504
    %v2528 = vsub.f32 %v2480, %v2506
    %v2529 = vsub.f32 %v2481, %v2508
    %v2530 = vsub.f32 %v2482, %v2510
    %v2531 = vsub.f32 %v2483, %v2512
    %v2532 = vsub.f32 %v2484, %v2514
    %v2533 = vsub.f32 %v2485, %v2516
    %v2534 = vsub.f32 %v2486, %v2518
    %v2535 = vmul.f32 %v2519, 1.442695
    %v2536 = vpow.pop %v2535
    %v2537 = vmul.f32 %v2520, 1.442695
    %v2538 = vpow.pop %v2537
    %v2539 = vmul.f32 %v2521, 1.442695
    %v2540 = vpow.pop %v2539
    %v2541 = vmul.f32 %v2522, 1.442695
    %v2542 = vpow.pop %v2541
    %v2543 = vmul.f32 %v2523, 1.442695
    %v2544 = vpow.pop %v2543
    %v2545 = vmul.f32 %v2524, 1.442695
    %v2546 = vpow.pop %v2545
    %v2547 = vmul.f32 %v2525, 1.442695
    %v2548 = vpow.pop %v2547
    %v2549 = vmul.f32 %v2526, 1.442695
    %v2550 = vpow.pop %v2549
    %v2551 = vmul.f32 %v2527, 1.442695
    %v2552 = vpow.pop %v2551
    %v2553 = vmul.f32 %v2528, 1.442695
    %v2554 = vpow.pop %v2553
    %v2555 = vmul.f32 %v2529, 1.442695
    %v2556 = vpow.pop %v2555
    %v2557 = vmul.f32 %v2530, 1.442695
    %v2558 = vpow.pop %v2557
    %v2559 = vmul.f32 %v2531, 1.442695
    %v2560 = vpow.pop %v2559
    %v2561 = vmul.f32 %v2532, 1.442695
    %v2562 = vpow.pop %v2561
    %v2563 = vmul.f32 %v2533, 1.442695
    %v2564 = vpow.pop %v2563
    %v2565 = vmul.f32 %v2534, 1.442695
    %v2566 = vpow.pop %v2565
    %v2567 = vsel %vm2470, %v2536, 0.0
    %v2568 = vsel %vm2470, %v2538, 0.0
    %v2569 = vsel %vm2470, %v2540, 0.0
    %v2570 = vsel %vm2470, %v2542, 0.0
    %v2571 = vsel %vm2470, %v2544, 0.0
    %v2572 = vsel %vm2470, %v2546, 0.0
    %v2573 = vsel %vm2470, %v2548, 0.0
    %v2574 = vsel %vm2470, %v2550, 0.0
    %v2575 = vsel %vm2470, %v2552, 0.0
    %v2576 = vsel %vm2470, %v2554, 0.0
    %v2577 = vsel %vm2470, %v2556, 0.0
    %v2578 = vsel %vm2470, %v2558, 0.0
    %v2579 = vsel %vm2470, %v2560, 0.0
    %v2580 = vsel %vm2470, %v2562, 0.0
    %v2581 = vsel %vm2470, %v2564, 0.0
    %v2582 = vsel %vm2470, %v2566, 0.0
    %2583 = vadd.xlane.f32.xlu0 %v2567
    %v2584 = vpop.xlane.xlu0 %2583
    %2585 = vadd.xlane.f32.xlu0 %v2568
    %v2586 = vpop.xlane.xlu0 %2585
    %2587 = vadd.xlane.f32.xlu0 %v2569
    %v2588 = vpop.xlane.xlu0 %2587
    %2589 = vadd.xlane.f32.xlu0 %v2570
    %v2590 = vpop.xlane.xlu0 %2589
    %2591 = vadd.xlane.f32.xlu0 %v2571
    %v2592 = vpop.xlane.xlu0 %2591
    %2593 = vadd.xlane.f32.xlu0 %v2572
    %v2594 = vpop.xlane.xlu0 %2593
    %2595 = vadd.xlane.f32.xlu0 %v2573
    %v2596 = vpop.xlane.xlu0 %2595
    %2597 = vadd.xlane.f32.xlu0 %v2574
    %v2598 = vpop.xlane.xlu0 %2597
    %2599 = vadd.xlane.f32.xlu0 %v2575
    %v2600 = vpop.xlane.xlu0 %2599
    %2601 = vadd.xlane.f32.xlu0 %v2576
    %v2602 = vpop.xlane.xlu0 %2601
    %2603 = vadd.xlane.f32.xlu0 %v2577
    %v2604 = vpop.xlane.xlu0 %2603
    %2605 = vadd.xlane.f32.xlu0 %v2578
    %v2606 = vpop.xlane.xlu0 %2605
    %2607 = vadd.xlane.f32.xlu0 %v2579
    %v2608 = vpop.xlane.xlu0 %2607
    %2609 = vadd.xlane.f32.xlu0 %v2580
    %v2610 = vpop.xlane.xlu0 %2609
    %2611 = vadd.xlane.f32.xlu0 %v2581
    %v2612 = vpop.xlane.xlu0 %2611
    %2613 = vadd.xlane.f32.xlu0 %v2582
    %v2614 = vpop.xlane.xlu0 %2613
    %v2615 = vrcp.pop %v2584
    %v2616 = vmul.f32 %v2584, %v2615
    %v2617 = vsub.f32 1.0, %v2616
    %v2618 = vmul.f32 %v2615, %v2617
    %v2619 = vadd.f32 %v2615, %v2618
    %vm2620 = vweird.f32 %v2584
    %vm2621 = vweird.f32 %v2615
    %vm2622 = vmor %vm2620, %vm2621
    %v2623 = vsel %vm2622, %v2615, %v2619
    %v2624 = vand.u32 2147483647, %v2584
    %vm2625 = vcmp.eq.f32.partialorder %v2624, 8.507059e+37
    %v2626 = vand.u32 %v2584, 2147483648
    %v2627 = vor.u32 1.1754944e-38, %v2626
    %v2628 = vsel %vm2625, %v2627, %v2623
    %v2629 = vmul.f32 %v2567, %v2628
    %v2630 = vrcp.pop %v2586
    %v2631 = vmul.f32 %v2586, %v2630
    %v2632 = vsub.f32 1.0, %v2631
    %v2633 = vmul.f32 %v2630, %v2632
    %v2634 = vadd.f32 %v2630, %v2633
    %vm2635 = vweird.f32 %v2586
    %vm2636 = vweird.f32 %v2630
    %vm2637 = vmor %vm2635, %vm2636
    %v2638 = vsel %vm2637, %v2630, %v2634
    %v2639 = vand.u32 2147483647, %v2586
    %vm2640 = vcmp.eq.f32.partialorder %v2639, 8.507059e+37
    %v2641 = vand.u32 %v2586, 2147483648
    %v2642 = vor.u32 1.1754944e-38, %v2641
    %v2643 = vsel %vm2640, %v2642, %v2638
    %v2644 = vmul.f32 %v2568, %v2643
    %v2645 = vrcp.pop %v2588
    %v2646 = vmul.f32 %v2588, %v2645
    %v2647 = vsub.f32 1.0, %v2646
    %v2648 = vmul.f32 %v2645, %v2647
    %v2649 = vadd.f32 %v2645, %v2648
    %vm2650 = vweird.f32 %v2588
    %vm2651 = vweird.f32 %v2645
    %vm2652 = vmor %vm2650, %vm2651
    %v2653 = vsel %vm2652, %v2645, %v2649
    %v2654 = vand.u32 2147483647, %v2588
    %vm2655 = vcmp.eq.f32.partialorder %v2654, 8.507059e+37
    %v2656 = vand.u32 %v2588, 2147483648
    %v2657 = vor.u32 1.1754944e-38, %v2656
    %v2658 = vsel %vm2655, %v2657, %v2653
    %v2659 = vmul.f32 %v2569, %v2658
    %v2660 = vrcp.pop %v2590
    %v2661 = vmul.f32 %v2590, %v2660
    %v2662 = vsub.f32 1.0, %v2661
    %v2663 = vmul.f32 %v2660, %v2662
    %v2664 = vadd.f32 %v2660, %v2663
    %vm2665 = vweird.f32 %v2590
    %vm2666 = vweird.f32 %v2660
    %vm2667 = vmor %vm2665, %vm2666
    %v2668 = vsel %vm2667, %v2660, %v2664
    %v2669 = vand.u32 2147483647, %v2590
    %vm2670 = vcmp.eq.f32.partialorder %v2669, 8.507059e+37
    %v2671 = vand.u32 %v2590, 2147483648
    %v2672 = vor.u32 1.1754944e-38, %v2671
    %v2673 = vsel %vm2670, %v2672, %v2668
    %v2674 = vmul.f32 %v2570, %v2673
    %v2675 = vrcp.pop %v2592
    %v2676 = vmul.f32 %v2592, %v2675
    %v2677 = vsub.f32 1.0, %v2676
    %v2678 = vmul.f32 %v2675, %v2677
    %v2679 = vadd.f32 %v2675, %v2678
    %vm2680 = vweird.f32 %v2592
    %vm2681 = vweird.f32 %v2675
    %vm2682 = vmor %vm2680, %vm2681
    %v2683 = vsel %vm2682, %v2675, %v2679
    %v2684 = vand.u32 2147483647, %v2592
    %vm2685 = vcmp.eq.f32.partialorder %v2684, 8.507059e+37
    %v2686 = vand.u32 %v2592, 2147483648
    %v2687 = vor.u32 1.1754944e-38, %v2686
    %v2688 = vsel %vm2685, %v2687, %v2683
    %v2689 = vmul.f32 %v2571, %v2688
    %v2690 = vrcp.pop %v2594
    %v2691 = vmul.f32 %v2594, %v2690
    %v2692 = vsub.f32 1.0, %v2691
    %v2693 = vmul.f32 %v2690, %v2692
    %v2694 = vadd.f32 %v2690, %v2693
    %vm2695 = vweird.f32 %v2594
    %vm2696 = vweird.f32 %v2690
    %vm2697 = vmor %vm2695, %vm2696
    %v2698 = vsel %vm2697, %v2690, %v2694
    %v2699 = vand.u32 2147483647, %v2594
    %vm2700 = vcmp.eq.f32.partialorder %v2699, 8.507059e+37
    %v2701 = vand.u32 %v2594, 2147483648
    %v2702 = vor.u32 1.1754944e-38, %v2701
    %v2703 = vsel %vm2700, %v2702, %v2698
    %v2704 = vmul.f32 %v2572, %v2703
    %v2705 = vrcp.pop %v2596
    %v2706 = vmul.f32 %v2596, %v2705
    %v2707 = vsub.f32 1.0, %v2706
    %v2708 = vmul.f32 %v2705, %v2707
    %v2709 = vadd.f32 %v2705, %v2708
    %vm2710 = vweird.f32 %v2596
    %vm2711 = vweird.f32 %v2705
    %vm2712 = vmor %vm2710, %vm2711
    %v2713 = vsel %vm2712, %v2705, %v2709
    %v2714 = vand.u32 2147483647, %v2596
    %vm2715 = vcmp.eq.f32.partialorder %v2714, 8.507059e+37
    %v2716 = vand.u32 %v2596, 2147483648
    %v2717 = vor.u32 1.1754944e-38, %v2716
    %v2718 = vsel %vm2715, %v2717, %v2713
    %v2719 = vmul.f32 %v2573, %v2718
    %v2720 = vrcp.pop %v2598
    %v2721 = vmul.f32 %v2598, %v2720
    %v2722 = vsub.f32 1.0, %v2721
    %v2723 = vmul.f32 %v2720, %v2722
    %v2724 = vadd.f32 %v2720, %v2723
    %vm2725 = vweird.f32 %v2598
    %vm2726 = vweird.f32 %v2720
    %vm2727 = vmor %vm2725, %vm2726
    %v2728 = vsel %vm2727, %v2720, %v2724
    %v2729 = vand.u32 2147483647, %v2598
    %vm2730 = vcmp.eq.f32.partialorder %v2729, 8.507059e+37
    %v2731 = vand.u32 %v2598, 2147483648
    %v2732 = vor.u32 1.1754944e-38, %v2731
    %v2733 = vsel %vm2730, %v2732, %v2728
    %v2734 = vmul.f32 %v2574, %v2733
    %v2735 = vrcp.pop %v2600
    %v2736 = vmul.f32 %v2600, %v2735
    %v2737 = vsub.f32 1.0, %v2736
    %v2738 = vmul.f32 %v2735, %v2737
    %v2739 = vadd.f32 %v2735, %v2738
    %vm2740 = vweird.f32 %v2600
    %vm2741 = vweird.f32 %v2735
    %vm2742 = vmor %vm2740, %vm2741
    %v2743 = vsel %vm2742, %v2735, %v2739
    %v2744 = vand.u32 2147483647, %v2600
    %vm2745 = vcmp.eq.f32.partialorder %v2744, 8.507059e+37
    %v2746 = vand.u32 %v2600, 2147483648
    %v2747 = vor.u32 1.1754944e-38, %v2746
    %v2748 = vsel %vm2745, %v2747, %v2743
    %v2749 = vmul.f32 %v2575, %v2748
    %v2750 = vrcp.pop %v2602
    %v2751 = vmul.f32 %v2602, %v2750
    %v2752 = vsub.f32 1.0, %v2751
    %v2753 = vmul.f32 %v2750, %v2752
    %v2754 = vadd.f32 %v2750, %v2753
    %vm2755 = vweird.f32 %v2602
    %vm2756 = vweird.f32 %v2750
    %vm2757 = vmor %vm2755, %vm2756
    %v2758 = vsel %vm2757, %v2750, %v2754
    %v2759 = vand.u32 2147483647, %v2602
    %vm2760 = vcmp.eq.f32.partialorder %v2759, 8.507059e+37
    %v2761 = vand.u32 %v2602, 2147483648
    %v2762 = vor.u32 1.1754944e-38, %v2761
    %v2763 = vsel %vm2760, %v2762, %v2758
    %v2764 = vmul.f32 %v2576, %v2763
    %v2765 = vrcp.pop %v2604
    %v2766 = vmul.f32 %v2604, %v2765
    %v2767 = vsub.f32 1.0, %v2766
    %v2768 = vmul.f32 %v2765, %v2767
    %v2769 = vadd.f32 %v2765, %v2768
    %vm2770 = vweird.f32 %v2604
    %vm2771 = vweird.f32 %v2765
    %vm2772 = vmor %vm2770, %vm2771
    %v2773 = vsel %vm2772, %v2765, %v2769
    %v2774 = vand.u32 2147483647, %v2604
    %vm2775 = vcmp.eq.f32.partialorder %v2774, 8.507059e+37
    %v2776 = vand.u32 %v2604, 2147483648
    %v2777 = vor.u32 1.1754944e-38, %v2776
    %v2778 = vsel %vm2775, %v2777, %v2773
    %v2779 = vmul.f32 %v2577, %v2778
    %v2780 = vrcp.pop %v2606
    %v2781 = vmul.f32 %v2606, %v2780
    %v2782 = vsub.f32 1.0, %v2781
    %v2783 = vmul.f32 %v2780, %v2782
    %v2784 = vadd.f32 %v2780, %v2783
    %vm2785 = vweird.f32 %v2606
    %vm2786 = vweird.f32 %v2780
    %vm2787 = vmor %vm2785, %vm2786
    %v2788 = vsel %vm2787, %v2780, %v2784
    %v2789 = vand.u32 2147483647, %v2606
    %vm2790 = vcmp.eq.f32.partialorder %v2789, 8.507059e+37
    %v2791 = vand.u32 %v2606, 2147483648
    %v2792 = vor.u32 1.1754944e-38, %v2791
    %v2793 = vsel %vm2790, %v2792, %v2788
    %v2794 = vmul.f32 %v2578, %v2793
    %v2795 = vrcp.pop %v2608
    %v2796 = vmul.f32 %v2608, %v2795
    %v2797 = vsub.f32 1.0, %v2796
    %v2798 = vmul.f32 %v2795, %v2797
    %v2799 = vadd.f32 %v2795, %v2798
    %vm2800 = vweird.f32 %v2608
    %vm2801 = vweird.f32 %v2795
    %vm2802 = vmor %vm2800, %vm2801
    %v2803 = vsel %vm2802, %v2795, %v2799
    %v2804 = vand.u32 2147483647, %v2608
    %vm2805 = vcmp.eq.f32.partialorder %v2804, 8.507059e+37
    %v2806 = vand.u32 %v2608, 2147483648
    %v2807 = vor.u32 1.1754944e-38, %v2806
    %v2808 = vsel %vm2805, %v2807, %v2803
    %v2809 = vmul.f32 %v2579, %v2808
    %v2810 = vrcp.pop %v2610
    %v2811 = vmul.f32 %v2610, %v2810
    %v2812 = vsub.f32 1.0, %v2811
    %v2813 = vmul.f32 %v2810, %v2812
    %v2814 = vadd.f32 %v2810, %v2813
    %vm2815 = vweird.f32 %v2610
    %vm2816 = vweird.f32 %v2810
    %vm2817 = vmor %vm2815, %vm2816
    %v2818 = vsel %vm2817, %v2810, %v2814
    %v2819 = vand.u32 2147483647, %v2610
    %vm2820 = vcmp.eq.f32.partialorder %v2819, 8.507059e+37
    %v2821 = vand.u32 %v2610, 2147483648
    %v2822 = vor.u32 1.1754944e-38, %v2821
    %v2823 = vsel %vm2820, %v2822, %v2818
    %v2824 = vmul.f32 %v2580, %v2823
    %v2825 = vrcp.pop %v2612
    %v2826 = vmul.f32 %v2612, %v2825
    %v2827 = vsub.f32 1.0, %v2826
    %v2828 = vmul.f32 %v2825, %v2827
    %v2829 = vadd.f32 %v2825, %v2828
    %vm2830 = vweird.f32 %v2612
    %vm2831 = vweird.f32 %v2825
    %vm2832 = vmor %vm2830, %vm2831
    %v2833 = vsel %vm2832, %v2825, %v2829
    %v2834 = vand.u32 2147483647, %v2612
    %vm2835 = vcmp.eq.f32.partialorder %v2834, 8.507059e+37
    %v2836 = vand.u32 %v2612, 2147483648
    %v2837 = vor.u32 1.1754944e-38, %v2836
    %v2838 = vsel %vm2835, %v2837, %v2833
    %v2839 = vmul.f32 %v2581, %v2838
    %v2840 = vrcp.pop %v2614
    %v2841 = vmul.f32 %v2614, %v2840
    %v2842 = vsub.f32 1.0, %v2841
    %v2843 = vmul.f32 %v2840, %v2842
    %v2844 = vadd.f32 %v2840, %v2843
    %vm2845 = vweird.f32 %v2614
    %vm2846 = vweird.f32 %v2840
    %vm2847 = vmor %vm2845, %vm2846
    %v2848 = vsel %vm2847, %v2840, %v2844
    %v2849 = vand.u32 2147483647, %v2614
    %vm2850 = vcmp.eq.f32.partialorder %v2849, 8.507059e+37
    %v2851 = vand.u32 %v2614, 2147483648
    %v2852 = vor.u32 1.1754944e-38, %v2851
    %v2853 = vsel %vm2850, %v2852, %v2848
    %v2854 = vmul.f32 %v2582, %v2853
    %s2855 = scalar_lea.vmem [#allocation5], 256
    %v2856 = vld [vmem:[%s2855] sm:$0xff]
    %v2857 = vld [vmem:[%s2855 + $0x8] sm:$0xff]
    %v2858 = vld [vmem:[%s2855 + $0x10] sm:$0xff]
    %v2859 = vld [vmem:[%s2855 + $0x18] sm:$0xff]
    %v2860 = vld [vmem:[%s2855 + $0x20] sm:$0xff]
    %v2861 = vld [vmem:[%s2855 + $0x28] sm:$0xff]
    %v2862 = vld [vmem:[%s2855 + $0x30] sm:$0xff]
    %v2863 = vld [vmem:[%s2855 + $0x38] sm:$0xff]
    %v2864 = vld [vmem:[%s2855 + $0x40] sm:$0xff]
    %v2865 = vld [vmem:[%s2855 + $0x48] sm:$0xff]
    %v2866 = vld [vmem:[%s2855 + $0x50] sm:$0xff]
    %v2867 = vld [vmem:[%s2855 + $0x58] sm:$0xff]
    %v2868 = vld [vmem:[%s2855 + $0x60] sm:$0xff]
    %v2869 = vld [vmem:[%s2855 + $0x68] sm:$0xff]
    %v2870 = vld [vmem:[%s2855 + $0x70] sm:$0xff]
    %v2871 = vld [vmem:[%s2855 + $0x78] sm:$0xff]
    %v2872 = vand.u32 %v2871, 4294901760
    %2873 = vmatpush.msra.mxu0 %v2872
    %v2874 = vand.u32 %v2870, 4294901760
    %2875 = vmatpush.msra.mxu0 %v2874
    %v2876 = vand.u32 %v2869, 4294901760
    %2877 = vmatpush.msra.mxu0 %v2876
    %v2878 = vand.u32 %v2868, 4294901760
    %2879 = vmatpush.msra.mxu0 %v2878
    %v2880 = vand.u32 %v2867, 4294901760
    %2881 = vmatpush.msra.mxu0 %v2880
    %v2882 = vand.u32 %v2866, 4294901760
    %2883 = vmatpush.msra.mxu0 %v2882
    %v2884 = vand.u32 %v2865, 4294901760
    %2885 = vmatpush.msra.mxu0 %v2884
    %v2886 = vand.u32 %v2864, 4294901760
    %2887 = vmatpush.msra.mxu0 %v2886
    %v2888 = vand.u32 %v2863, 4294901760
    %2889 = vmatpush.msra.mxu0 %v2888
    %v2890 = vand.u32 %v2862, 4294901760
    %2891 = vmatpush.msra.mxu0 %v2890
    %v2892 = vand.u32 %v2861, 4294901760
    %2893 = vmatpush.msra.mxu0 %v2892
    %v2894 = vand.u32 %v2860, 4294901760
    %2895 = vmatpush.msra.mxu0 %v2894
    %v2896 = vand.u32 %v2859, 4294901760
    %2897 = vmatpush.msra.mxu0 %v2896
    %v2898 = vand.u32 %v2858, 4294901760
    %2899 = vmatpush.msra.mxu0 %v2898
    %v2900 = vand.u32 %v2857, 4294901760
    %2901 = vmatpush.msra.mxu0 %v2900
    %v2902 = vand.u32 %v2856, 4294901760
    %2903 = vmatpush.msra.mxu0 %v2902
    %v2904 = vand.u32 %v2629, 4294901760
    %v2905 = vsub.f32 %v2629, %v2904
    %v2906 = vand.u32 %v2905, 4294901760
    %v2907 = vsub.f32 %v2905, %v2906
    %v2908 = vand.u32 %v2907, 4294901760
    %2909 = vmatmul.f32.gmra.mxu0 %v2908
    %v2910 = vpop.f32.mrf.mxu0
    %v2911 = vadd.f32 0.0, %v2910
    %v2912 = vand.u32 %v2644, 4294901760
    %v2913 = vsub.f32 %v2644, %v2912
    %v2914 = vand.u32 %v2913, 4294901760
    %v2915 = vsub.f32 %v2913, %v2914
    %v2916 = vand.u32 %v2915, 4294901760
    %2917 = vmatmul.f32.gmra.mxu0 %v2916
    %v2918 = vpop.f32.mrf.mxu0
    %v2919 = vadd.f32 0.0, %v2918
    %v2920 = vand.u32 %v2659, 4294901760
    %v2921 = vsub.f32 %v2659, %v2920
    %v2922 = vand.u32 %v2921, 4294901760
    %v2923 = vsub.f32 %v2921, %v2922
    %v2924 = vand.u32 %v2923, 4294901760
    %2925 = vmatmul.f32.gmra.mxu0 %v2924
    %v2926 = vpop.f32.mrf.mxu0
    %v2927 = vadd.f32 0.0, %v2926
    %v2928 = vand.u32 %v2674, 4294901760
    %v2929 = vsub.f32 %v2674, %v2928
    %v2930 = vand.u32 %v2929, 4294901760
    %v2931 = vsub.f32 %v2929, %v2930
    %v2932 = vand.u32 %v2931, 4294901760
    %2933 = vmatmul.f32.gmra.mxu0 %v2932
    %v2934 = vpop.f32.mrf.mxu0
    %v2935 = vadd.f32 0.0, %v2934
    %v2936 = vand.u32 %v2689, 4294901760
    %v2937 = vsub.f32 %v2689, %v2936
    %v2938 = vand.u32 %v2937, 4294901760
    %v2939 = vsub.f32 %v2937, %v2938
    %v2940 = vand.u32 %v2939, 4294901760
    %2941 = vmatmul.f32.gmra.mxu0 %v2940
    %v2942 = vpop.f32.mrf.mxu0
    %v2943 = vadd.f32 0.0, %v2942
    %v2944 = vand.u32 %v2704, 4294901760
    %v2945 = vsub.f32 %v2704, %v2944
    %v2946 = vand.u32 %v2945, 4294901760
    %v2947 = vsub.f32 %v2945, %v2946
    %v2948 = vand.u32 %v2947, 4294901760
    %2949 = vmatmul.f32.gmra.mxu0 %v2948
    %v2950 = vpop.f32.mrf.mxu0
    %v2951 = vadd.f32 0.0, %v2950
    %v2952 = vand.u32 %v2719, 4294901760
    %v2953 = vsub.f32 %v2719, %v2952
    %v2954 = vand.u32 %v2953, 4294901760
    %v2955 = vsub.f32 %v2953, %v2954
    %v2956 = vand.u32 %v2955, 4294901760
    %2957 = vmatmul.f32.gmra.mxu0 %v2956
    %v2958 = vpop.f32.mrf.mxu0
    %v2959 = vadd.f32 0.0, %v2958
    %v2960 = vand.u32 %v2734, 4294901760
    %v2961 = vsub.f32 %v2734, %v2960
    %v2962 = vand.u32 %v2961, 4294901760
    %v2963 = vsub.f32 %v2961, %v2962
    %v2964 = vand.u32 %v2963, 4294901760
    %2965 = vmatmul.f32.gmra.mxu0 %v2964
    %v2966 = vpop.f32.mrf.mxu0
    %v2967 = vadd.f32 0.0, %v2966
    %v2968 = vand.u32 %v2749, 4294901760
    %v2969 = vsub.f32 %v2749, %v2968
    %v2970 = vand.u32 %v2969, 4294901760
    %v2971 = vsub.f32 %v2969, %v2970
    %v2972 = vand.u32 %v2971, 4294901760
    %2973 = vmatmul.f32.gmra.mxu0 %v2972
    %v2974 = vpop.f32.mrf.mxu0
    %v2975 = vadd.f32 0.0, %v2974
    %v2976 = vand.u32 %v2764, 4294901760
    %v2977 = vsub.f32 %v2764, %v2976
    %v2978 = vand.u32 %v2977, 4294901760
    %v2979 = vsub.f32 %v2977, %v2978
    %v2980 = vand.u32 %v2979, 4294901760
    %2981 = vmatmul.f32.gmra.mxu0 %v2980
    %v2982 = vpop.f32.mrf.mxu0
    %v2983 = vadd.f32 0.0, %v2982
    %v2984 = vand.u32 %v2779, 4294901760
    %v2985 = vsub.f32 %v2779, %v2984
    %v2986 = vand.u32 %v2985, 4294901760
    %v2987 = vsub.f32 %v2985, %v2986
    %v2988 = vand.u32 %v2987, 4294901760
    %2989 = vmatmul.f32.gmra.mxu0 %v2988
    %v2990 = vpop.f32.mrf.mxu0
    %v2991 = vadd.f32 0.0, %v2990
    %v2992 = vand.u32 %v2794, 4294901760
    %v2993 = vsub.f32 %v2794, %v2992
    %v2994 = vand.u32 %v2993, 4294901760
    %v2995 = vsub.f32 %v2993, %v2994
    %v2996 = vand.u32 %v2995, 4294901760
    %2997 = vmatmul.f32.gmra.mxu0 %v2996
    %v2998 = vpop.f32.mrf.mxu0
    %v2999 = vadd.f32 0.0, %v2998
    %v3000 = vand.u32 %v2809, 4294901760
    %v3001 = vsub.f32 %v2809, %v3000
    %v3002 = vand.u32 %v3001, 4294901760
    %v3003 = vsub.f32 %v3001, %v3002
    %v3004 = vand.u32 %v3003, 4294901760
    %3005 = vmatmul.f32.gmra.mxu0 %v3004
    %v3006 = vpop.f32.mrf.mxu0
    %v3007 = vadd.f32 0.0, %v3006
    %v3008 = vand.u32 %v2824, 4294901760
    %v3009 = vsub.f32 %v2824, %v3008
    %v3010 = vand.u32 %v3009, 4294901760
    %v3011 = vsub.f32 %v3009, %v3010
    %v3012 = vand.u32 %v3011, 4294901760
    %3013 = vmatmul.f32.gmra.mxu0 %v3012
    %v3014 = vpop.f32.mrf.mxu0
    %v3015 = vadd.f32 0.0, %v3014
    %v3016 = vand.u32 %v2839, 4294901760
    %v3017 = vsub.f32 %v2839, %v3016
    %v3018 = vand.u32 %v3017, 4294901760
    %v3019 = vsub.f32 %v3017, %v3018
    %v3020 = vand.u32 %v3019, 4294901760
    %3021 = vmatmul.f32.gmra.mxu0 %v3020
    %v3022 = vpop.f32.mrf.mxu0
    %v3023 = vadd.f32 0.0, %v3022
    %v3024 = vand.u32 %v2854, 4294901760
    %v3025 = vsub.f32 %v2854, %v3024
    %v3026 = vand.u32 %v3025, 4294901760
    %v3027 = vsub.f32 %v3025, %v3026
    %v3028 = vand.u32 %v3027, 4294901760
    %3029 = vmatmul.f32.gmra.mxu0 %v3028
    %v3030 = vpop.f32.mrf.mxu0
    %v3031 = vadd.f32 0.0, %v3030
    %3032 = vdwg.mxu0
    %v3033 = vand.u32 %v2871, 4294901760
    %v3034 = vsub.f32 %v2871, %v3033
    %v3035 = vand.u32 %v3034, 4294901760
    %v3036 = vsub.f32 %v3034, %v3035
    %v3037 = vand.u32 %v3036, 4294901760
    %3038 = vmatpush.msra.mxu0 %v3037
    %v3039 = vand.u32 %v2870, 4294901760
    %v3040 = vsub.f32 %v2870, %v3039
    %v3041 = vand.u32 %v3040, 4294901760
    %v3042 = vsub.f32 %v3040, %v3041
    %v3043 = vand.u32 %v3042, 4294901760
    %3044 = vmatpush.msra.mxu0 %v3043
    %v3045 = vand.u32 %v2869, 4294901760
    %v3046 = vsub.f32 %v2869, %v3045
    %v3047 = vand.u32 %v3046, 4294901760
    %v3048 = vsub.f32 %v3046, %v3047
    %v3049 = vand.u32 %v3048, 4294901760
    %3050 = vmatpush.msra.mxu0 %v3049
    %v3051 = vand.u32 %v2868, 4294901760
    %v3052 = vsub.f32 %v2868, %v3051
    %v3053 = vand.u32 %v3052, 4294901760
    %v3054 = vsub.f32 %v3052, %v3053
    %v3055 = vand.u32 %v3054, 4294901760
    %3056 = vmatpush.msra.mxu0 %v3055
    %v3057 = vand.u32 %v2867, 4294901760
    %v3058 = vsub.f32 %v2867, %v3057
    %v3059 = vand.u32 %v3058, 4294901760
    %v3060 = vsub.f32 %v3058, %v3059
    %v3061 = vand.u32 %v3060, 4294901760
    %3062 = vmatpush.msra.mxu0 %v3061
    %v3063 = vand.u32 %v2866, 4294901760
    %v3064 = vsub.f32 %v2866, %v3063
    %v3065 = vand.u32 %v3064, 4294901760
    %v3066 = vsub.f32 %v3064, %v3065
    %v3067 = vand.u32 %v3066, 4294901760
    %3068 = vmatpush.msra.mxu0 %v3067
    %v3069 = vand.u32 %v2865, 4294901760
    %v3070 = vsub.f32 %v2865, %v3069
    %v3071 = vand.u32 %v3070, 4294901760
    %v3072 = vsub.f32 %v3070, %v3071
    %v3073 = vand.u32 %v3072, 4294901760
    %3074 = vmatpush.msra.mxu0 %v3073
    %v3075 = vand.u32 %v2864, 4294901760
    %v3076 = vsub.f32 %v2864, %v3075
    %v3077 = vand.u32 %v3076, 4294901760
    %v3078 = vsub.f32 %v3076, %v3077
    %v3079 = vand.u32 %v3078, 4294901760
    %3080 = vmatpush.msra.mxu0 %v3079
    %v3081 = vand.u32 %v2863, 4294901760
    %v3082 = vsub.f32 %v2863, %v3081
    %v3083 = vand.u32 %v3082, 4294901760
    %v3084 = vsub.f32 %v3082, %v3083
    %v3085 = vand.u32 %v3084, 4294901760
    %3086 = vmatpush.msra.mxu0 %v3085
    %v3087 = vand.u32 %v2862, 4294901760
    %v3088 = vsub.f32 %v2862, %v3087
    %v3089 = vand.u32 %v3088, 4294901760
    %v3090 = vsub.f32 %v3088, %v3089
    %v3091 = vand.u32 %v3090, 4294901760
    %3092 = vmatpush.msra.mxu0 %v3091
    %v3093 = vand.u32 %v2861, 4294901760
    %v3094 = vsub.f32 %v2861, %v3093
    %v3095 = vand.u32 %v3094, 4294901760
    %v3096 = vsub.f32 %v3094, %v3095
    %v3097 = vand.u32 %v3096, 4294901760
    %3098 = vmatpush.msra.mxu0 %v3097
    %v3099 = vand.u32 %v2860, 4294901760
    %v3100 = vsub.f32 %v2860, %v3099
    %v3101 = vand.u32 %v3100, 4294901760
    %v3102 = vsub.f32 %v3100, %v3101
    %v3103 = vand.u32 %v3102, 4294901760
    %3104 = vmatpush.msra.mxu0 %v3103
    %v3105 = vand.u32 %v2859, 4294901760
    %v3106 = vsub.f32 %v2859, %v3105
    %v3107 = vand.u32 %v3106, 4294901760
    %v3108 = vsub.f32 %v3106, %v3107
    %v3109 = vand.u32 %v3108, 4294901760
    %3110 = vmatpush.msra.mxu0 %v3109
    %v3111 = vand.u32 %v2858, 4294901760
    %v3112 = vsub.f32 %v2858, %v3111
    %v3113 = vand.u32 %v3112, 4294901760
    %v3114 = vsub.f32 %v3112, %v3113
    %v3115 = vand.u32 %v3114, 4294901760
    %3116 = vmatpush.msra.mxu0 %v3115
    %v3117 = vand.u32 %v2857, 4294901760
    %v3118 = vsub.f32 %v2857, %v3117
    %v3119 = vand.u32 %v3118, 4294901760
    %v3120 = vsub.f32 %v3118, %v3119
    %v3121 = vand.u32 %v3120, 4294901760
    %3122 = vmatpush.msra.mxu0 %v3121
    %v3123 = vand.u32 %v2856, 4294901760
    %v3124 = vsub.f32 %v2856, %v3123
    %v3125 = vand.u32 %v3124, 4294901760
    %v3126 = vsub.f32 %v3124, %v3125
    %v3127 = vand.u32 %v3126, 4294901760
    %3128 = vmatpush.msra.mxu0 %v3127
    %v3129 = vand.u32 %v2629, 4294901760
    %3130 = vmatmul.f32.gmra.mxu0 %v3129
    %v3131 = vpop.f32.mrf.mxu0
    %v3132 = vadd.f32 %v2911, %v3131
    %v3133 = vand.u32 %v2644, 4294901760
    %3134 = vmatmul.f32.gmra.mxu0 %v3133
    %v3135 = vpop.f32.mrf.mxu0
    %v3136 = vadd.f32 %v2919, %v3135
    %v3137 = vand.u32 %v2659, 4294901760
    %3138 = vmatmul.f32.gmra.mxu0 %v3137
    %v3139 = vpop.f32.mrf.mxu0
    %v3140 = vadd.f32 %v2927, %v3139
    %v3141 = vand.u32 %v2674, 4294901760
    %3142 = vmatmul.f32.gmra.mxu0 %v3141
    %v3143 = vpop.f32.mrf.mxu0
    %v3144 = vadd.f32 %v2935, %v3143
    %v3145 = vand.u32 %v2689, 4294901760
    %3146 = vmatmul.f32.gmra.mxu0 %v3145
    %v3147 = vpop.f32.mrf.mxu0
    %v3148 = vadd.f32 %v2943, %v3147
    %v3149 = vand.u32 %v2704, 4294901760
    %3150 = vmatmul.f32.gmra.mxu0 %v3149
    %v3151 = vpop.f32.mrf.mxu0
    %v3152 = vadd.f32 %v2951, %v3151
    %v3153 = vand.u32 %v2719, 4294901760
    %3154 = vmatmul.f32.gmra.mxu0 %v3153
    %v3155 = vpop.f32.mrf.mxu0
    %v3156 = vadd.f32 %v2959, %v3155
    %v3157 = vand.u32 %v2734, 4294901760
    %3158 = vmatmul.f32.gmra.mxu0 %v3157
    %v3159 = vpop.f32.mrf.mxu0
    %v3160 = vadd.f32 %v2967, %v3159
    %v3161 = vand.u32 %v2749, 4294901760
    %3162 = vmatmul.f32.gmra.mxu0 %v3161
    %v3163 = vpop.f32.mrf.mxu0
    %v3164 = vadd.f32 %v2975, %v3163
    %v3165 = vand.u32 %v2764, 4294901760
    %3166 = vmatmul.f32.gmra.mxu0 %v3165
    %v3167 = vpop.f32.mrf.mxu0
    %v3168 = vadd.f32 %v2983, %v3167
    %v3169 = vand.u32 %v2779, 4294901760
    %3170 = vmatmul.f32.gmra.mxu0 %v3169
    %v3171 = vpop.f32.mrf.mxu0
    %v3172 = vadd.f32 %v2991, %v3171
    %v3173 = vand.u32 %v2794, 4294901760
    %3174 = vmatmul.f32.gmra.mxu0 %v3173
    %v3175 = vpop.f32.mrf.mxu0
    %v3176 = vadd.f32 %v2999, %v3175
    %v3177 = vand.u32 %v2809, 4294901760
    %3178 = vmatmul.f32.gmra.mxu0 %v3177
    %v3179 = vpop.f32.mrf.mxu0
    %v3180 = vadd.f32 %v3007, %v3179
    %v3181 = vand.u32 %v2824, 4294901760
    %3182 = vmatmul.f32.gmra.mxu0 %v3181
    %v3183 = vpop.f32.mrf.mxu0
    %v3184 = vadd.f32 %v3015, %v3183
    %v3185 = vand.u32 %v2839, 4294901760
    %3186 = vmatmul.f32.gmra.mxu0 %v3185
    %v3187 = vpop.f32.mrf.mxu0
    %v3188 = vadd.f32 %v3023, %v3187
    %v3189 = vand.u32 %v2854, 4294901760
    %3190 = vmatmul.f32.gmra.mxu0 %v3189
    %v3191 = vpop.f32.mrf.mxu0
    %v3192 = vadd.f32 %v3031, %v3191
    %3193 = vdwg.mxu0
    %v3194 = vand.u32 %v2871, 4294901760
    %v3195 = vsub.f32 %v2871, %v3194
    %3196 = vmatpush.msra.mxu0 %v3195
    %v3197 = vand.u32 %v2870, 4294901760
    %v3198 = vsub.f32 %v2870, %v3197
    %3199 = vmatpush.msra.mxu0 %v3198
    %v3200 = vand.u32 %v2869, 4294901760
    %v3201 = vsub.f32 %v2869, %v3200
    %3202 = vmatpush.msra.mxu0 %v3201
    %v3203 = vand.u32 %v2868, 4294901760
    %v3204 = vsub.f32 %v2868, %v3203
    %3205 = vmatpush.msra.mxu0 %v3204
    %v3206 = vand.u32 %v2867, 4294901760
    %v3207 = vsub.f32 %v2867, %v3206
    %3208 = vmatpush.msra.mxu0 %v3207
    %v3209 = vand.u32 %v2866, 4294901760
    %v3210 = vsub.f32 %v2866, %v3209
    %3211 = vmatpush.msra.mxu0 %v3210
    %v3212 = vand.u32 %v2865, 4294901760
    %v3213 = vsub.f32 %v2865, %v3212
    %3214 = vmatpush.msra.mxu0 %v3213
    %v3215 = vand.u32 %v2864, 4294901760
    %v3216 = vsub.f32 %v2864, %v3215
    %3217 = vmatpush.msra.mxu0 %v3216
    %v3218 = vand.u32 %v2863, 4294901760
    %v3219 = vsub.f32 %v2863, %v3218
    %3220 = vmatpush.msra.mxu0 %v3219
    %v3221 = vand.u32 %v2862, 4294901760
    %v3222 = vsub.f32 %v2862, %v3221
    %3223 = vmatpush.msra.mxu0 %v3222
    %v3224 = vand.u32 %v2861, 4294901760
    %v3225 = vsub.f32 %v2861, %v3224
    %3226 = vmatpush.msra.mxu0 %v3225
    %v3227 = vand.u32 %v2860, 4294901760
    %v3228 = vsub.f32 %v2860, %v3227
    %3229 = vmatpush.msra.mxu0 %v3228
    %v3230 = vand.u32 %v2859, 4294901760
    %v3231 = vsub.f32 %v2859, %v3230
    %3232 = vmatpush.msra.mxu0 %v3231
    %v3233 = vand.u32 %v2858, 4294901760
    %v3234 = vsub.f32 %v2858, %v3233
    %3235 = vmatpush.msra.mxu0 %v3234
    %v3236 = vand.u32 %v2857, 4294901760
    %v3237 = vsub.f32 %v2857, %v3236
    %3238 = vmatpush.msra.mxu0 %v3237
    %v3239 = vand.u32 %v2856, 4294901760
    %v3240 = vsub.f32 %v2856, %v3239
    %3241 = vmatpush.msra.mxu0 %v3240
    %v3242 = vand.u32 %v2629, 4294901760
    %v3243 = vsub.f32 %v2629, %v3242
    %3244 = vmatmul.f32.gmra.mxu0 %v3243
    %v3245 = vpop.f32.mrf.mxu0
    %v3246 = vadd.f32 %v3132, %v3245
    %v3247 = vand.u32 %v2644, 4294901760
    %v3248 = vsub.f32 %v2644, %v3247
    %3249 = vmatmul.f32.gmra.mxu0 %v3248
    %v3250 = vpop.f32.mrf.mxu0
    %v3251 = vadd.f32 %v3136, %v3250
    %v3252 = vand.u32 %v2659, 4294901760
    %v3253 = vsub.f32 %v2659, %v3252
    %3254 = vmatmul.f32.gmra.mxu0 %v3253
    %v3255 = vpop.f32.mrf.mxu0
    %v3256 = vadd.f32 %v3140, %v3255
    %v3257 = vand.u32 %v2674, 4294901760
    %v3258 = vsub.f32 %v2674, %v3257
    %3259 = vmatmul.f32.gmra.mxu0 %v3258
    %v3260 = vpop.f32.mrf.mxu0
    %v3261 = vadd.f32 %v3144, %v3260
    %v3262 = vand.u32 %v2689, 4294901760
    %v3263 = vsub.f32 %v2689, %v3262
    %3264 = vmatmul.f32.gmra.mxu0 %v3263
    %v3265 = vpop.f32.mrf.mxu0
    %v3266 = vadd.f32 %v3148, %v3265
    %v3267 = vand.u32 %v2704, 4294901760
    %v3268 = vsub.f32 %v2704, %v3267
    %3269 = vmatmul.f32.gmra.mxu0 %v3268
    %v3270 = vpop.f32.mrf.mxu0
    %v3271 = vadd.f32 %v3152, %v3270
    %v3272 = vand.u32 %v2719, 4294901760
    %v3273 = vsub.f32 %v2719, %v3272
    %3274 = vmatmul.f32.gmra.mxu0 %v3273
    %v3275 = vpop.f32.mrf.mxu0
    %v3276 = vadd.f32 %v3156, %v3275
    %v3277 = vand.u32 %v2734, 4294901760
    %v3278 = vsub.f32 %v2734, %v3277
    %3279 = vmatmul.f32.gmra.mxu0 %v3278
    %v3280 = vpop.f32.mrf.mxu0
    %v3281 = vadd.f32 %v3160, %v3280
    %v3282 = vand.u32 %v2749, 4294901760
    %v3283 = vsub.f32 %v2749, %v3282
    %3284 = vmatmul.f32.gmra.mxu0 %v3283
    %v3285 = vpop.f32.mrf.mxu0
    %v3286 = vadd.f32 %v3164, %v3285
    %v3287 = vand.u32 %v2764, 4294901760
    %v3288 = vsub.f32 %v2764, %v3287
    %3289 = vmatmul.f32.gmra.mxu0 %v3288
    %v3290 = vpop.f32.mrf.mxu0
    %v3291 = vadd.f32 %v3168, %v3290
    %v3292 = vand.u32 %v2779, 4294901760
    %v3293 = vsub.f32 %v2779, %v3292
    %3294 = vmatmul.f32.gmra.mxu0 %v3293
    %v3295 = vpop.f32.mrf.mxu0
    %v3296 = vadd.f32 %v3172, %v3295
    %v3297 = vand.u32 %v2794, 4294901760
    %v3298 = vsub.f32 %v2794, %v3297
    %3299 = vmatmul.f32.gmra.mxu0 %v3298
    %v3300 = vpop.f32.mrf.mxu0
    %v3301 = vadd.f32 %v3176, %v3300
    %v3302 = vand.u32 %v2809, 4294901760
    %v3303 = vsub.f32 %v2809, %v3302
    %3304 = vmatmul.f32.gmra.mxu0 %v3303
    %v3305 = vpop.f32.mrf.mxu0
    %v3306 = vadd.f32 %v3180, %v3305
    %v3307 = vand.u32 %v2824, 4294901760
    %v3308 = vsub.f32 %v2824, %v3307
    %3309 = vmatmul.f32.gmra.mxu0 %v3308
    %v3310 = vpop.f32.mrf.mxu0
    %v3311 = vadd.f32 %v3184, %v3310
    %v3312 = vand.u32 %v2839, 4294901760
    %v3313 = vsub.f32 %v2839, %v3312
    %3314 = vmatmul.f32.gmra.mxu0 %v3313
    %v3315 = vpop.f32.mrf.mxu0
    %v3316 = vadd.f32 %v3188, %v3315
    %v3317 = vand.u32 %v2854, 4294901760
    %v3318 = vsub.f32 %v2854, %v3317
    %3319 = vmatmul.f32.gmra.mxu0 %v3318
    %v3320 = vpop.f32.mrf.mxu0
    %v3321 = vadd.f32 %v3192, %v3320
    %3322 = vdwg.mxu0
    %v3323 = vand.u32 %v2871, 4294901760
    %3324 = vmatpush.msra.mxu0 %v3323
    %v3325 = vand.u32 %v2870, 4294901760
    %3326 = vmatpush.msra.mxu0 %v3325
    %v3327 = vand.u32 %v2869, 4294901760
    %3328 = vmatpush.msra.mxu0 %v3327
    %v3329 = vand.u32 %v2868, 4294901760
    %3330 = vmatpush.msra.mxu0 %v3329
    %v3331 = vand.u32 %v2867, 4294901760
    %3332 = vmatpush.msra.mxu0 %v3331
    %v3333 = vand.u32 %v2866, 4294901760
    %3334 = vmatpush.msra.mxu0 %v3333
    %v3335 = vand.u32 %v2865, 4294901760
    %3336 = vmatpush.msra.mxu0 %v3335
    %v3337 = vand.u32 %v2864, 4294901760
    %3338 = vmatpush.msra.mxu0 %v3337
    %v3339 = vand.u32 %v2863, 4294901760
    %3340 = vmatpush.msra.mxu0 %v3339
    %v3341 = vand.u32 %v2862, 4294901760
    %3342 = vmatpush.msra.mxu0 %v3341
    %v3343 = vand.u32 %v2861, 4294901760
    %3344 = vmatpush.msra.mxu0 %v3343
    %v3345 = vand.u32 %v2860, 4294901760
    %3346 = vmatpush.msra.mxu0 %v3345
    %v3347 = vand.u32 %v2859, 4294901760
    %3348 = vmatpush.msra.mxu0 %v3347
    %v3349 = vand.u32 %v2858, 4294901760
    %3350 = vmatpush.msra.mxu0 %v3349
    %v3351 = vand.u32 %v2857, 4294901760
    %3352 = vmatpush.msra.mxu0 %v3351
    %v3353 = vand.u32 %v2856, 4294901760
    %3354 = vmatpush.msra.mxu0 %v3353
    %v3355 = vand.u32 %v2629, 4294901760
    %v3356 = vsub.f32 %v2629, %v3355
    %v3357 = vand.u32 %v3356, 4294901760
    %3358 = vmatmul.f32.gmra.mxu0 %v3357
    %v3359 = vpop.f32.mrf.mxu0
    %v3360 = vadd.f32 %v3246, %v3359
    %v3361 = vand.u32 %v2644, 4294901760
    %v3362 = vsub.f32 %v2644, %v3361
    %v3363 = vand.u32 %v3362, 4294901760
    %3364 = vmatmul.f32.gmra.mxu0 %v3363
    %v3365 = vpop.f32.mrf.mxu0
    %v3366 = vadd.f32 %v3251, %v3365
    %v3367 = vand.u32 %v2659, 4294901760
    %v3368 = vsub.f32 %v2659, %v3367
    %v3369 = vand.u32 %v3368, 4294901760
    %3370 = vmatmul.f32.gmra.mxu0 %v3369
    %v3371 = vpop.f32.mrf.mxu0
    %v3372 = vadd.f32 %v3256, %v3371
    %v3373 = vand.u32 %v2674, 4294901760
    %v3374 = vsub.f32 %v2674, %v3373
    %v3375 = vand.u32 %v3374, 4294901760
    %3376 = vmatmul.f32.gmra.mxu0 %v3375
    %v3377 = vpop.f32.mrf.mxu0
    %v3378 = vadd.f32 %v3261, %v3377
    %v3379 = vand.u32 %v2689, 4294901760
    %v3380 = vsub.f32 %v2689, %v3379
    %v3381 = vand.u32 %v3380, 4294901760
    %3382 = vmatmul.f32.gmra.mxu0 %v3381
    %v3383 = vpop.f32.mrf.mxu0
    %v3384 = vadd.f32 %v3266, %v3383
    %v3385 = vand.u32 %v2704, 4294901760
    %v3386 = vsub.f32 %v2704, %v3385
    %v3387 = vand.u32 %v3386, 4294901760
    %3388 = vmatmul.f32.gmra.mxu0 %v3387
    %v3389 = vpop.f32.mrf.mxu0
    %v3390 = vadd.f32 %v3271, %v3389
    %v3391 = vand.u32 %v2719, 4294901760
    %v3392 = vsub.f32 %v2719, %v3391
    %v3393 = vand.u32 %v3392, 4294901760
    %3394 = vmatmul.f32.gmra.mxu0 %v3393
    %v3395 = vpop.f32.mrf.mxu0
    %v3396 = vadd.f32 %v3276, %v3395
    %v3397 = vand.u32 %v2734, 4294901760
    %v3398 = vsub.f32 %v2734, %v3397
    %v3399 = vand.u32 %v3398, 4294901760
    %3400 = vmatmul.f32.gmra.mxu0 %v3399
    %v3401 = vpop.f32.mrf.mxu0
    %v3402 = vadd.f32 %v3281, %v3401
    %v3403 = vand.u32 %v2749, 4294901760
    %v3404 = vsub.f32 %v2749, %v3403
    %v3405 = vand.u32 %v3404, 4294901760
    %3406 = vmatmul.f32.gmra.mxu0 %v3405
    %v3407 = vpop.f32.mrf.mxu0
    %v3408 = vadd.f32 %v3286, %v3407
    %v3409 = vand.u32 %v2764, 4294901760
    %v3410 = vsub.f32 %v2764, %v3409
    %v3411 = vand.u32 %v3410, 4294901760
    %3412 = vmatmul.f32.gmra.mxu0 %v3411
    %v3413 = vpop.f32.mrf.mxu0
    %v3414 = vadd.f32 %v3291, %v3413
    %v3415 = vand.u32 %v2779, 4294901760
    %v3416 = vsub.f32 %v2779, %v3415
    %v3417 = vand.u32 %v3416, 4294901760
    %3418 = vmatmul.f32.gmra.mxu0 %v3417
    %v3419 = vpop.f32.mrf.mxu0
    %v3420 = vadd.f32 %v3296, %v3419
    %v3421 = vand.u32 %v2794, 4294901760
    %v3422 = vsub.f32 %v2794, %v3421
    %v3423 = vand.u32 %v3422, 4294901760
    %3424 = vmatmul.f32.gmra.mxu0 %v3423
    %v3425 = vpop.f32.mrf.mxu0
    %v3426 = vadd.f32 %v3301, %v3425
    %v3427 = vand.u32 %v2809, 4294901760
    %v3428 = vsub.f32 %v2809, %v3427
    %v3429 = vand.u32 %v3428, 4294901760
    %3430 = vmatmul.f32.gmra.mxu0 %v3429
    %v3431 = vpop.f32.mrf.mxu0
    %v3432 = vadd.f32 %v3306, %v3431
    %v3433 = vand.u32 %v2824, 4294901760
    %v3434 = vsub.f32 %v2824, %v3433
    %v3435 = vand.u32 %v3434, 4294901760
    %3436 = vmatmul.f32.gmra.mxu0 %v3435
    %v3437 = vpop.f32.mrf.mxu0
    %v3438 = vadd.f32 %v3311, %v3437
    %v3439 = vand.u32 %v2839, 4294901760
    %v3440 = vsub.f32 %v2839, %v3439
    %v3441 = vand.u32 %v3440, 4294901760
    %3442 = vmatmul.f32.gmra.mxu0 %v3441
    %v3443 = vpop.f32.mrf.mxu0
    %v3444 = vadd.f32 %v3316, %v3443
    %v3445 = vand.u32 %v2854, 4294901760
    %v3446 = vsub.f32 %v2854, %v3445
    %v3447 = vand.u32 %v3446, 4294901760
    %3448 = vmatmul.f32.gmra.mxu0 %v3447
    %v3449 = vpop.f32.mrf.mxu0
    %v3450 = vadd.f32 %v3321, %v3449
    %3451 = vdwg.mxu0
    %v3452 = vand.u32 %v2871, 4294901760
    %v3453 = vsub.f32 %v2871, %v3452
    %v3454 = vand.u32 %v3453, 4294901760
    %3455 = vmatpush.msra.mxu0 %v3454
    %v3456 = vand.u32 %v2870, 4294901760
    %v3457 = vsub.f32 %v2870, %v3456
    %v3458 = vand.u32 %v3457, 4294901760
    %3459 = vmatpush.msra.mxu0 %v3458
    %v3460 = vand.u32 %v2869, 4294901760
    %v3461 = vsub.f32 %v2869, %v3460
    %v3462 = vand.u32 %v3461, 4294901760
    %3463 = vmatpush.msra.mxu0 %v3462
    %v3464 = vand.u32 %v2868, 4294901760
    %v3465 = vsub.f32 %v2868, %v3464
    %v3466 = vand.u32 %v3465, 4294901760
    %3467 = vmatpush.msra.mxu0 %v3466
    %v3468 = vand.u32 %v2867, 4294901760
    %v3469 = vsub.f32 %v2867, %v3468
    %v3470 = vand.u32 %v3469, 4294901760
    %3471 = vmatpush.msra.mxu0 %v3470
    %v3472 = vand.u32 %v2866, 4294901760
    %v3473 = vsub.f32 %v2866, %v3472
    %v3474 = vand.u32 %v3473, 4294901760
    %3475 = vmatpush.msra.mxu0 %v3474
    %v3476 = vand.u32 %v2865, 4294901760
    %v3477 = vsub.f32 %v2865, %v3476
    %v3478 = vand.u32 %v3477, 4294901760
    %3479 = vmatpush.msra.mxu0 %v3478
    %v3480 = vand.u32 %v2864, 4294901760
    %v3481 = vsub.f32 %v2864, %v3480
    %v3482 = vand.u32 %v3481, 4294901760
    %3483 = vmatpush.msra.mxu0 %v3482
    %v3484 = vand.u32 %v2863, 4294901760
    %v3485 = vsub.f32 %v2863, %v3484
    %v3486 = vand.u32 %v3485, 4294901760
    %3487 = vmatpush.msra.mxu0 %v3486
    %v3488 = vand.u32 %v2862, 4294901760
    %v3489 = vsub.f32 %v2862, %v3488
    %v3490 = vand.u32 %v3489, 4294901760
    %3491 = vmatpush.msra.mxu0 %v3490
    %v3492 = vand.u32 %v2861, 4294901760
    %v3493 = vsub.f32 %v2861, %v3492
    %v3494 = vand.u32 %v3493, 4294901760
    %3495 = vmatpush.msra.mxu0 %v3494
    %v3496 = vand.u32 %v2860, 4294901760
    %v3497 = vsub.f32 %v2860, %v3496
    %v3498 = vand.u32 %v3497, 4294901760
    %3499 = vmatpush.msra.mxu0 %v3498
    %v3500 = vand.u32 %v2859, 4294901760
    %v3501 = vsub.f32 %v2859, %v3500
    %v3502 = vand.u32 %v3501, 4294901760
    %3503 = vmatpush.msra.mxu0 %v3502
    %v3504 = vand.u32 %v2858, 4294901760
    %v3505 = vsub.f32 %v2858, %v3504
    %v3506 = vand.u32 %v3505, 4294901760
    %3507 = vmatpush.msra.mxu0 %v3506
    %v3508 = vand.u32 %v2857, 4294901760
    %v3509 = vsub.f32 %v2857, %v3508
    %v3510 = vand.u32 %v3509, 4294901760
    %3511 = vmatpush.msra.mxu0 %v3510
    %v3512 = vand.u32 %v2856, 4294901760
    %v3513 = vsub.f32 %v2856, %v3512
    %v3514 = vand.u32 %v3513, 4294901760
    %3515 = vmatpush.msra.mxu0 %v3514
    %v3516 = vand.u32 %v2629, 4294901760
    %3517 = vmatmul.f32.gmra.mxu0 %v3516
    %v3518 = vpop.f32.mrf.mxu0
    %v3519 = vadd.f32 %v3360, %v3518
    %v3520 = vand.u32 %v2644, 4294901760
    %3521 = vmatmul.f32.gmra.mxu0 %v3520
    %v3522 = vpop.f32.mrf.mxu0
    %v3523 = vadd.f32 %v3366, %v3522
    %v3524 = vand.u32 %v2659, 4294901760
    %3525 = vmatmul.f32.gmra.mxu0 %v3524
    %v3526 = vpop.f32.mrf.mxu0
    %v3527 = vadd.f32 %v3372, %v3526
    %v3528 = vand.u32 %v2674, 4294901760
    %3529 = vmatmul.f32.gmra.mxu0 %v3528
    %v3530 = vpop.f32.mrf.mxu0
    %v3531 = vadd.f32 %v3378, %v3530
    %v3532 = vand.u32 %v2689, 4294901760
    %3533 = vmatmul.f32.gmra.mxu0 %v3532
    %v3534 = vpop.f32.mrf.mxu0
    %v3535 = vadd.f32 %v3384, %v3534
    %v3536 = vand.u32 %v2704, 4294901760
    %3537 = vmatmul.f32.gmra.mxu0 %v3536
    %v3538 = vpop.f32.mrf.mxu0
    %v3539 = vadd.f32 %v3390, %v3538
    %v3540 = vand.u32 %v2719, 4294901760
    %3541 = vmatmul.f32.gmra.mxu0 %v3540
    %v3542 = vpop.f32.mrf.mxu0
    %v3543 = vadd.f32 %v3396, %v3542
    %v3544 = vand.u32 %v2734, 4294901760
    %3545 = vmatmul.f32.gmra.mxu0 %v3544
    %v3546 = vpop.f32.mrf.mxu0
    %v3547 = vadd.f32 %v3402, %v3546
    %v3548 = vand.u32 %v2749, 4294901760
    %3549 = vmatmul.f32.gmra.mxu0 %v3548
    %v3550 = vpop.f32.mrf.mxu0
    %v3551 = vadd.f32 %v3408, %v3550
    %v3552 = vand.u32 %v2764, 4294901760
    %3553 = vmatmul.f32.gmra.mxu0 %v3552
    %v3554 = vpop.f32.mrf.mxu0
    %v3555 = vadd.f32 %v3414, %v3554
    %v3556 = vand.u32 %v2779, 4294901760
    %3557 = vmatmul.f32.gmra.mxu0 %v3556
    %v3558 = vpop.f32.mrf.mxu0
    %v3559 = vadd.f32 %v3420, %v3558
    %v3560 = vand.u32 %v2794, 4294901760
    %3561 = vmatmul.f32.gmra.mxu0 %v3560
    %v3562 = vpop.f32.mrf.mxu0
    %v3563 = vadd.f32 %v3426, %v3562
    %v3564 = vand.u32 %v2809, 4294901760
    %3565 = vmatmul.f32.gmra.mxu0 %v3564
    %v3566 = vpop.f32.mrf.mxu0
    %v3567 = vadd.f32 %v3432, %v3566
    %v3568 = vand.u32 %v2824, 4294901760
    %3569 = vmatmul.f32.gmra.mxu0 %v3568
    %v3570 = vpop.f32.mrf.mxu0
    %v3571 = vadd.f32 %v3438, %v3570
    %v3572 = vand.u32 %v2839, 4294901760
    %3573 = vmatmul.f32.gmra.mxu0 %v3572
    %v3574 = vpop.f32.mrf.mxu0
    %v3575 = vadd.f32 %v3444, %v3574
    %v3576 = vand.u32 %v2854, 4294901760
    %3577 = vmatmul.f32.gmra.mxu0 %v3576
    %v3578 = vpop.f32.mrf.mxu0
    %v3579 = vadd.f32 %v3450, %v3578
    %3580 = vdwg.mxu0
    %v3581 = vand.u32 %v2871, 4294901760
    %3582 = vmatpush.msra.mxu0 %v3581
    %v3583 = vand.u32 %v2870, 4294901760
    %3584 = vmatpush.msra.mxu0 %v3583
    %v3585 = vand.u32 %v2869, 4294901760
    %3586 = vmatpush.msra.mxu0 %v3585
    %v3587 = vand.u32 %v2868, 4294901760
    %3588 = vmatpush.msra.mxu0 %v3587
    %v3589 = vand.u32 %v2867, 4294901760
    %3590 = vmatpush.msra.mxu0 %v3589
    %v3591 = vand.u32 %v2866, 4294901760
    %3592 = vmatpush.msra.mxu0 %v3591
    %v3593 = vand.u32 %v2865, 4294901760
    %3594 = vmatpush.msra.mxu0 %v3593
    %v3595 = vand.u32 %v2864, 4294901760
    %3596 = vmatpush.msra.mxu0 %v3595
    %v3597 = vand.u32 %v2863, 4294901760
    %3598 = vmatpush.msra.mxu0 %v3597
    %v3599 = vand.u32 %v2862, 4294901760
    %3600 = vmatpush.msra.mxu0 %v3599
    %v3601 = vand.u32 %v2861, 4294901760
    %3602 = vmatpush.msra.mxu0 %v3601
    %v3603 = vand.u32 %v2860, 4294901760
    %3604 = vmatpush.msra.mxu0 %v3603
    %v3605 = vand.u32 %v2859, 4294901760
    %3606 = vmatpush.msra.mxu0 %v3605
    %v3607 = vand.u32 %v2858, 4294901760
    %3608 = vmatpush.msra.mxu0 %v3607
    %v3609 = vand.u32 %v2857, 4294901760
    %3610 = vmatpush.msra.mxu0 %v3609
    %v3611 = vand.u32 %v2856, 4294901760
    %3612 = vmatpush.msra.mxu0 %v3611
    %v3613 = vand.u32 %v2629, 4294901760
    %3614 = vmatmul.f32.gmra.mxu0 %v3613
    %v3615 = vpop.f32.mrf.mxu0
    %v3616 = vadd.f32 %v3519, %v3615
    %v3617 = vand.u32 %v2644, 4294901760
    %3618 = vmatmul.f32.gmra.mxu0 %v3617
    %v3619 = vpop.f32.mrf.mxu0
    %v3620 = vadd.f32 %v3523, %v3619
    %v3621 = vand.u32 %v2659, 4294901760
    %3622 = vmatmul.f32.gmra.mxu0 %v3621
    %v3623 = vpop.f32.mrf.mxu0
    %v3624 = vadd.f32 %v3527, %v3623
    %v3625 = vand.u32 %v2674, 4294901760
    %3626 = vmatmul.f32.gmra.mxu0 %v3625
    %v3627 = vpop.f32.mrf.mxu0
    %v3628 = vadd.f32 %v3531, %v3627
    %v3629 = vand.u32 %v2689, 4294901760
    %3630 = vmatmul.f32.gmra.mxu0 %v3629
    %v3631 = vpop.f32.mrf.mxu0
    %v3632 = vadd.f32 %v3535, %v3631
    %v3633 = vand.u32 %v2704, 4294901760
    %3634 = vmatmul.f32.gmra.mxu0 %v3633
    %v3635 = vpop.f32.mrf.mxu0
    %v3636 = vadd.f32 %v3539, %v3635
    %v3637 = vand.u32 %v2719, 4294901760
    %3638 = vmatmul.f32.gmra.mxu0 %v3637
    %v3639 = vpop.f32.mrf.mxu0
    %v3640 = vadd.f32 %v3543, %v3639
    %v3641 = vand.u32 %v2734, 4294901760
    %3642 = vmatmul.f32.gmra.mxu0 %v3641
    %v3643 = vpop.f32.mrf.mxu0
    %v3644 = vadd.f32 %v3547, %v3643
    %v3645 = vand.u32 %v2749, 4294901760
    %3646 = vmatmul.f32.gmra.mxu0 %v3645
    %v3647 = vpop.f32.mrf.mxu0
    %v3648 = vadd.f32 %v3551, %v3647
    %v3649 = vand.u32 %v2764, 4294901760
    %3650 = vmatmul.f32.gmra.mxu0 %v3649
    %v3651 = vpop.f32.mrf.mxu0
    %v3652 = vadd.f32 %v3555, %v3651
    %v3653 = vand.u32 %v2779, 4294901760
    %3654 = vmatmul.f32.gmra.mxu0 %v3653
    %v3655 = vpop.f32.mrf.mxu0
    %v3656 = vadd.f32 %v3559, %v3655
    %v3657 = vand.u32 %v2794, 4294901760
    %3658 = vmatmul.f32.gmra.mxu0 %v3657
    %v3659 = vpop.f32.mrf.mxu0
    %v3660 = vadd.f32 %v3563, %v3659
    %v3661 = vand.u32 %v2809, 4294901760
    %3662 = vmatmul.f32.gmra.mxu0 %v3661
    %v3663 = vpop.f32.mrf.mxu0
    %v3664 = vadd.f32 %v3567, %v3663
    %v3665 = vand.u32 %v2824, 4294901760
    %3666 = vmatmul.f32.gmra.mxu0 %v3665
    %v3667 = vpop.f32.mrf.mxu0
    %v3668 = vadd.f32 %v3571, %v3667
    %v3669 = vand.u32 %v2839, 4294901760
    %3670 = vmatmul.f32.gmra.mxu0 %v3669
    %v3671 = vpop.f32.mrf.mxu0
    %v3672 = vadd.f32 %v3575, %v3671
    %v3673 = vand.u32 %v2854, 4294901760
    %3674 = vmatmul.f32.gmra.mxu0 %v3673
    %v3675 = vpop.f32.mrf.mxu0
    %v3676 = vadd.f32 %v3579, %v3675
    %3677 = vdwg.mxu0
    %v3678 = vld [vmem:[#allocation7 + $0x3] sm:$0x1]
    %v3679 = vld [vmem:[#allocation7 + $0x4] sm:$0x1]
    %v3680 = vand.u32 %v3676, 4294901760
    %3681 = vmatpush.msra.mxu0 %v3680
    %v3682 = vand.u32 %v3672, 4294901760
    %3683 = vmatpush.msra.mxu0 %v3682
    %v3684 = vand.u32 %v3668, 4294901760
    %3685 = vmatpush.msra.mxu0 %v3684
    %v3686 = vand.u32 %v3664, 4294901760
    %3687 = vmatpush.msra.mxu0 %v3686
    %v3688 = vand.u32 %v3660, 4294901760
    %3689 = vmatpush.msra.mxu0 %v3688
    %v3690 = vand.u32 %v3656, 4294901760
    %3691 = vmatpush.msra.mxu0 %v3690
    %v3692 = vand.u32 %v3652, 4294901760
    %3693 = vmatpush.msra.mxu0 %v3692
    %v3694 = vand.u32 %v3648, 4294901760
    %3695 = vmatpush.msra.mxu0 %v3694
    %v3696 = vand.u32 %v3644, 4294901760
    %3697 = vmatpush.msra.mxu0 %v3696
    %v3698 = vand.u32 %v3640, 4294901760
    %3699 = vmatpush.msra.mxu0 %v3698
    %v3700 = vand.u32 %v3636, 4294901760
    %3701 = vmatpush.msra.mxu0 %v3700
    %v3702 = vand.u32 %v3632, 4294901760
    %3703 = vmatpush.msra.mxu0 %v3702
    %v3704 = vand.u32 %v3628, 4294901760
    %3705 = vmatpush.msra.mxu0 %v3704
    %v3706 = vand.u32 %v3624, 4294901760
    %3707 = vmatpush.msra.mxu0 %v3706
    %v3708 = vand.u32 %v3620, 4294901760
    %3709 = vmatpush.msra.mxu0 %v3708
    %v3710 = vand.u32 %v3616, 4294901760
    %3711 = vmatpush.msra.mxu0 %v3710
    %3712 = vmatmul.f32.gmra.mxu0 0.0
    %v3713 = vpop.f32.mrf.mxu0
    %v3714 = vadd.f32 0.0, %v3713
    %3715 = vdwg.mxu0
    %v3716 = vand.u32 %v3676, 4294901760
    %v3717 = vsub.f32 %v3676, %v3716
    %v3718 = vand.u32 %v3717, 4294901760
    %v3719 = vsub.f32 %v3717, %v3718
    %v3720 = vand.u32 %v3719, 4294901760
    %3721 = vmatpush.msra.mxu0 %v3720
    %v3722 = vand.u32 %v3672, 4294901760
    %v3723 = vsub.f32 %v3672, %v3722
    %v3724 = vand.u32 %v3723, 4294901760
    %v3725 = vsub.f32 %v3723, %v3724
    %v3726 = vand.u32 %v3725, 4294901760
    %3727 = vmatpush.msra.mxu0 %v3726
    %v3728 = vand.u32 %v3668, 4294901760
    %v3729 = vsub.f32 %v3668, %v3728
    %v3730 = vand.u32 %v3729, 4294901760
    %v3731 = vsub.f32 %v3729, %v3730
    %v3732 = vand.u32 %v3731, 4294901760
    %3733 = vmatpush.msra.mxu0 %v3732
    %v3734 = vand.u32 %v3664, 4294901760
    %v3735 = vsub.f32 %v3664, %v3734
    %v3736 = vand.u32 %v3735, 4294901760
    %v3737 = vsub.f32 %v3735, %v3736
    %v3738 = vand.u32 %v3737, 4294901760
    %3739 = vmatpush.msra.mxu0 %v3738
    %v3740 = vand.u32 %v3660, 4294901760
    %v3741 = vsub.f32 %v3660, %v3740
    %v3742 = vand.u32 %v3741, 4294901760
    %v3743 = vsub.f32 %v3741, %v3742
    %v3744 = vand.u32 %v3743, 4294901760
    %3745 = vmatpush.msra.mxu0 %v3744
    %v3746 = vand.u32 %v3656, 4294901760
    %v3747 = vsub.f32 %v3656, %v3746
    %v3748 = vand.u32 %v3747, 4294901760
    %v3749 = vsub.f32 %v3747, %v3748
    %v3750 = vand.u32 %v3749, 4294901760
    %3751 = vmatpush.msra.mxu0 %v3750
    %v3752 = vand.u32 %v3652, 4294901760
    %v3753 = vsub.f32 %v3652, %v3752
    %v3754 = vand.u32 %v3753, 4294901760
    %v3755 = vsub.f32 %v3753, %v3754
    %v3756 = vand.u32 %v3755, 4294901760
    %3757 = vmatpush.msra.mxu0 %v3756
    %v3758 = vand.u32 %v3648, 4294901760
    %v3759 = vsub.f32 %v3648, %v3758
    %v3760 = vand.u32 %v3759, 4294901760
    %v3761 = vsub.f32 %v3759, %v3760
    %v3762 = vand.u32 %v3761, 4294901760
    %3763 = vmatpush.msra.mxu0 %v3762
    %v3764 = vand.u32 %v3644, 4294901760
    %v3765 = vsub.f32 %v3644, %v3764
    %v3766 = vand.u32 %v3765, 4294901760
    %v3767 = vsub.f32 %v3765, %v3766
    %v3768 = vand.u32 %v3767, 4294901760
    %3769 = vmatpush.msra.mxu0 %v3768
    %v3770 = vand.u32 %v3640, 4294901760
    %v3771 = vsub.f32 %v3640, %v3770
    %v3772 = vand.u32 %v3771, 4294901760
    %v3773 = vsub.f32 %v3771, %v3772
    %v3774 = vand.u32 %v3773, 4294901760
    %3775 = vmatpush.msra.mxu0 %v3774
    %v3776 = vand.u32 %v3636, 4294901760
    %v3777 = vsub.f32 %v3636, %v3776
    %v3778 = vand.u32 %v3777, 4294901760
    %v3779 = vsub.f32 %v3777, %v3778
    %v3780 = vand.u32 %v3779, 4294901760
    %3781 = vmatpush.msra.mxu0 %v3780
    %v3782 = vand.u32 %v3632, 4294901760
    %v3783 = vsub.f32 %v3632, %v3782
    %v3784 = vand.u32 %v3783, 4294901760
    %v3785 = vsub.f32 %v3783, %v3784
    %v3786 = vand.u32 %v3785, 4294901760
    %3787 = vmatpush.msra.mxu0 %v3786
    %v3788 = vand.u32 %v3628, 4294901760
    %v3789 = vsub.f32 %v3628, %v3788
    %v3790 = vand.u32 %v3789, 4294901760
    %v3791 = vsub.f32 %v3789, %v3790
    %v3792 = vand.u32 %v3791, 4294901760
    %3793 = vmatpush.msra.mxu0 %v3792
    %v3794 = vand.u32 %v3624, 4294901760
    %v3795 = vsub.f32 %v3624, %v3794
    %v3796 = vand.u32 %v3795, 4294901760
    %v3797 = vsub.f32 %v3795, %v3796
    %v3798 = vand.u32 %v3797, 4294901760
    %3799 = vmatpush.msra.mxu0 %v3798
    %v3800 = vand.u32 %v3620, 4294901760
    %v3801 = vsub.f32 %v3620, %v3800
    %v3802 = vand.u32 %v3801, 4294901760
    %v3803 = vsub.f32 %v3801, %v3802
    %v3804 = vand.u32 %v3803, 4294901760
    %3805 = vmatpush.msra.mxu0 %v3804
    %v3806 = vand.u32 %v3616, 4294901760
    %v3807 = vsub.f32 %v3616, %v3806
    %v3808 = vand.u32 %v3807, 4294901760
    %v3809 = vsub.f32 %v3807, %v3808
    %v3810 = vand.u32 %v3809, 4294901760
    %3811 = vmatpush.msra.mxu0 %v3810
    %3812 = vmatmul.f32.gmra.mxu0 1.0
    %v3813 = vpop.f32.mrf.mxu0
    %v3814 = vadd.f32 %v3714, %v3813
    %3815 = vdwg.mxu0
    %v3816 = vand.u32 %v3676, 4294901760
    %v3817 = vsub.f32 %v3676, %v3816
    %3818 = vmatpush.msra.mxu0 %v3817
    %v3819 = vand.u32 %v3672, 4294901760
    %v3820 = vsub.f32 %v3672, %v3819
    %3821 = vmatpush.msra.mxu0 %v3820
    %v3822 = vand.u32 %v3668, 4294901760
    %v3823 = vsub.f32 %v3668, %v3822
    %3824 = vmatpush.msra.mxu0 %v3823
    %v3825 = vand.u32 %v3664, 4294901760
    %v3826 = vsub.f32 %v3664, %v3825
    %3827 = vmatpush.msra.mxu0 %v3826
    %v3828 = vand.u32 %v3660, 4294901760
    %v3829 = vsub.f32 %v3660, %v3828
    %3830 = vmatpush.msra.mxu0 %v3829
    %v3831 = vand.u32 %v3656, 4294901760
    %v3832 = vsub.f32 %v3656, %v3831
    %3833 = vmatpush.msra.mxu0 %v3832
    %v3834 = vand.u32 %v3652, 4294901760
    %v3835 = vsub.f32 %v3652, %v3834
    %3836 = vmatpush.msra.mxu0 %v3835
    %v3837 = vand.u32 %v3648, 4294901760
    %v3838 = vsub.f32 %v3648, %v3837
    %3839 = vmatpush.msra.mxu0 %v3838
    %v3840 = vand.u32 %v3644, 4294901760
    %v3841 = vsub.f32 %v3644, %v3840
    %3842 = vmatpush.msra.mxu0 %v3841
    %v3843 = vand.u32 %v3640, 4294901760
    %v3844 = vsub.f32 %v3640, %v3843
    %3845 = vmatpush.msra.mxu0 %v3844
    %v3846 = vand.u32 %v3636, 4294901760
    %v3847 = vsub.f32 %v3636, %v3846
    %3848 = vmatpush.msra.mxu0 %v3847
    %v3849 = vand.u32 %v3632, 4294901760
    %v3850 = vsub.f32 %v3632, %v3849
    %3851 = vmatpush.msra.mxu0 %v3850
    %v3852 = vand.u32 %v3628, 4294901760
    %v3853 = vsub.f32 %v3628, %v3852
    %3854 = vmatpush.msra.mxu0 %v3853
    %v3855 = vand.u32 %v3624, 4294901760
    %v3856 = vsub.f32 %v3624, %v3855
    %3857 = vmatpush.msra.mxu0 %v3856
    %v3858 = vand.u32 %v3620, 4294901760
    %v3859 = vsub.f32 %v3620, %v3858
    %3860 = vmatpush.msra.mxu0 %v3859
    %v3861 = vand.u32 %v3616, 4294901760
    %v3862 = vsub.f32 %v3616, %v3861
    %3863 = vmatpush.msra.mxu0 %v3862
    %3864 = vmatmul.f32.gmra.mxu0 0.0
    %v3865 = vpop.f32.mrf.mxu0
    %v3866 = vadd.f32 %v3814, %v3865
    %3867 = vdwg.mxu0
    %v3868 = vand.u32 %v3676, 4294901760
    %3869 = vmatpush.msra.mxu0 %v3868
    %v3870 = vand.u32 %v3672, 4294901760
    %3871 = vmatpush.msra.mxu0 %v3870
    %v3872 = vand.u32 %v3668, 4294901760
    %3873 = vmatpush.msra.mxu0 %v3872
    %v3874 = vand.u32 %v3664, 4294901760
    %3875 = vmatpush.msra.mxu0 %v3874
    %v3876 = vand.u32 %v3660, 4294901760
    %3877 = vmatpush.msra.mxu0 %v3876
    %v3878 = vand.u32 %v3656, 4294901760
    %3879 = vmatpush.msra.mxu0 %v3878
    %v3880 = vand.u32 %v3652, 4294901760
    %3881 = vmatpush.msra.mxu0 %v3880
    %v3882 = vand.u32 %v3648, 4294901760
    %3883 = vmatpush.msra.mxu0 %v3882
    %v3884 = vand.u32 %v3644, 4294901760
    %3885 = vmatpush.msra.mxu0 %v3884
    %v3886 = vand.u32 %v3640, 4294901760
    %3887 = vmatpush.msra.mxu0 %v3886
    %v3888 = vand.u32 %v3636, 4294901760
    %3889 = vmatpush.msra.mxu0 %v3888
    %v3890 = vand.u32 %v3632, 4294901760
    %3891 = vmatpush.msra.mxu0 %v3890
    %v3892 = vand.u32 %v3628, 4294901760
    %3893 = vmatpush.msra.mxu0 %v3892
    %v3894 = vand.u32 %v3624, 4294901760
    %3895 = vmatpush.msra.mxu0 %v3894
    %v3896 = vand.u32 %v3620, 4294901760
    %3897 = vmatpush.msra.mxu0 %v3896
    %v3898 = vand.u32 %v3616, 4294901760
    %3899 = vmatpush.msra.mxu0 %v3898
    %3900 = vmatmul.f32.gmra.mxu0 0.0
    %v3901 = vpop.f32.mrf.mxu0
    %v3902 = vadd.f32 %v3866, %v3901
    %3903 = vdwg.mxu0
    %v3904 = vand.u32 %v3676, 4294901760
    %v3905 = vsub.f32 %v3676, %v3904
    %v3906 = vand.u32 %v3905, 4294901760
    %3907 = vmatpush.msra.mxu0 %v3906
    %v3908 = vand.u32 %v3672, 4294901760
    %v3909 = vsub.f32 %v3672, %v3908
    %v3910 = vand.u32 %v3909, 4294901760
    %3911 = vmatpush.msra.mxu0 %v3910
    %v3912 = vand.u32 %v3668, 4294901760
    %v3913 = vsub.f32 %v3668, %v3912
    %v3914 = vand.u32 %v3913, 4294901760
    %3915 = vmatpush.msra.mxu0 %v3914
    %v3916 = vand.u32 %v3664, 4294901760
    %v3917 = vsub.f32 %v3664, %v3916
    %v3918 = vand.u32 %v3917, 4294901760
    %3919 = vmatpush.msra.mxu0 %v3918
    %v3920 = vand.u32 %v3660, 4294901760
    %v3921 = vsub.f32 %v3660, %v3920
    %v3922 = vand.u32 %v3921, 4294901760
    %3923 = vmatpush.msra.mxu0 %v3922
    %v3924 = vand.u32 %v3656, 4294901760
    %v3925 = vsub.f32 %v3656, %v3924
    %v3926 = vand.u32 %v3925, 4294901760
    %3927 = vmatpush.msra.mxu0 %v3926
    %v3928 = vand.u32 %v3652, 4294901760
    %v3929 = vsub.f32 %v3652, %v3928
    %v3930 = vand.u32 %v3929, 4294901760
    %3931 = vmatpush.msra.mxu0 %v3930
    %v3932 = vand.u32 %v3648, 4294901760
    %v3933 = vsub.f32 %v3648, %v3932
    %v3934 = vand.u32 %v3933, 4294901760
    %3935 = vmatpush.msra.mxu0 %v3934
    %v3936 = vand.u32 %v3644, 4294901760
    %v3937 = vsub.f32 %v3644, %v3936
    %v3938 = vand.u32 %v3937, 4294901760
    %3939 = vmatpush.msra.mxu0 %v3938
    %v3940 = vand.u32 %v3640, 4294901760
    %v3941 = vsub.f32 %v3640, %v3940
    %v3942 = vand.u32 %v3941, 4294901760
    %3943 = vmatpush.msra.mxu0 %v3942
    %v3944 = vand.u32 %v3636, 4294901760
    %v3945 = vsub.f32 %v3636, %v3944
    %v3946 = vand.u32 %v3945, 4294901760
    %3947 = vmatpush.msra.mxu0 %v3946
    %v3948 = vand.u32 %v3632, 4294901760
    %v3949 = vsub.f32 %v3632, %v3948
    %v3950 = vand.u32 %v3949, 4294901760
    %3951 = vmatpush.msra.mxu0 %v3950
    %v3952 = vand.u32 %v3628, 4294901760
    %v3953 = vsub.f32 %v3628, %v3952
    %v3954 = vand.u32 %v3953, 4294901760
    %3955 = vmatpush.msra.mxu0 %v3954
    %v3956 = vand.u32 %v3624, 4294901760
    %v3957 = vsub.f32 %v3624, %v3956
    %v3958 = vand.u32 %v3957, 4294901760
    %3959 = vmatpush.msra.mxu0 %v3958
    %v3960 = vand.u32 %v3620, 4294901760
    %v3961 = vsub.f32 %v3620, %v3960
    %v3962 = vand.u32 %v3961, 4294901760
    %3963 = vmatpush.msra.mxu0 %v3962
    %v3964 = vand.u32 %v3616, 4294901760
    %v3965 = vsub.f32 %v3616, %v3964
    %v3966 = vand.u32 %v3965, 4294901760
    %3967 = vmatpush.msra.mxu0 %v3966
    %3968 = vmatmul.f32.gmra.mxu0 1.0
    %v3969 = vpop.f32.mrf.mxu0
    %v3970 = vadd.f32 %v3902, %v3969
    %3971 = vdwg.mxu0
    %v3972 = vand.u32 %v3676, 4294901760
    %3973 = vmatpush.msra.mxu0 %v3972
    %v3974 = vand.u32 %v3672, 4294901760
    %3975 = vmatpush.msra.mxu0 %v3974
    %v3976 = vand.u32 %v3668, 4294901760
    %3977 = vmatpush.msra.mxu0 %v3976
    %v3978 = vand.u32 %v3664, 4294901760
    %3979 = vmatpush.msra.mxu0 %v3978
    %v3980 = vand.u32 %v3660, 4294901760
    %3981 = vmatpush.msra.mxu0 %v3980
    %v3982 = vand.u32 %v3656, 4294901760
    %3983 = vmatpush.msra.mxu0 %v3982
    %v3984 = vand.u32 %v3652, 4294901760
    %3985 = vmatpush.msra.mxu0 %v3984
    %v3986 = vand.u32 %v3648, 4294901760
    %3987 = vmatpush.msra.mxu0 %v3986
    %v3988 = vand.u32 %v3644, 4294901760
    %3989 = vmatpush.msra.mxu0 %v3988
    %v3990 = vand.u32 %v3640, 4294901760
    %3991 = vmatpush.msra.mxu0 %v3990
    %v3992 = vand.u32 %v3636, 4294901760
    %3993 = vmatpush.msra.mxu0 %v3992
    %v3994 = vand.u32 %v3632, 4294901760
    %3995 = vmatpush.msra.mxu0 %v3994
    %v3996 = vand.u32 %v3628, 4294901760
    %3997 = vmatpush.msra.mxu0 %v3996
    %v3998 = vand.u32 %v3624, 4294901760
    %3999 = vmatpush.msra.mxu0 %v3998
    %v4000 = vand.u32 %v3620, 4294901760
    %4001 = vmatpush.msra.mxu0 %v4000
    %v4002 = vand.u32 %v3616, 4294901760
    %4003 = vmatpush.msra.mxu0 %v4002
    %4004 = vmatmul.f32.gmra.mxu0 1.0
    %v4005 = vpop.f32.mrf.mxu0
    %v4006 = vadd.f32 %v3970, %v4005
    %4007 = vdwg.mxu0
    %v4008 = vmul.f32 %v3616, %v3616
    %v4009 = vmul.f32 %v3620, %v3620
    %v4010 = vmul.f32 %v3624, %v3624
    %v4011 = vmul.f32 %v3628, %v3628
    %v4012 = vmul.f32 %v3632, %v3632
    %v4013 = vmul.f32 %v3636, %v3636
    %v4014 = vmul.f32 %v3640, %v3640
    %v4015 = vmul.f32 %v3644, %v3644
    %v4016 = vmul.f32 %v3648, %v3648
    %v4017 = vmul.f32 %v3652, %v3652
    %v4018 = vmul.f32 %v3656, %v3656
    %v4019 = vmul.f32 %v3660, %v3660
    %v4020 = vmul.f32 %v3664, %v3664
    %v4021 = vmul.f32 %v3668, %v3668
    %v4022 = vmul.f32 %v3672, %v3672
    %v4023 = vmul.f32 %v3676, %v3676
    %v4024 = vand.u32 %v4023, 4294901760
    %4025 = vmatpush.msra.mxu0 %v4024
    %v4026 = vand.u32 %v4022, 4294901760
    %4027 = vmatpush.msra.mxu0 %v4026
    %v4028 = vand.u32 %v4021, 4294901760
    %4029 = vmatpush.msra.mxu0 %v4028
    %v4030 = vand.u32 %v4020, 4294901760
    %4031 = vmatpush.msra.mxu0 %v4030
    %v4032 = vand.u32 %v4019, 4294901760
    %4033 = vmatpush.msra.mxu0 %v4032
    %v4034 = vand.u32 %v4018, 4294901760
    %4035 = vmatpush.msra.mxu0 %v4034
    %v4036 = vand.u32 %v4017, 4294901760
    %4037 = vmatpush.msra.mxu0 %v4036
    %v4038 = vand.u32 %v4016, 4294901760
    %4039 = vmatpush.msra.mxu0 %v4038
    %v4040 = vand.u32 %v4015, 4294901760
    %4041 = vmatpush.msra.mxu0 %v4040
    %v4042 = vand.u32 %v4014, 4294901760
    %4043 = vmatpush.msra.mxu0 %v4042
    %v4044 = vand.u32 %v4013, 4294901760
    %4045 = vmatpush.msra.mxu0 %v4044
    %v4046 = vand.u32 %v4012, 4294901760
    %4047 = vmatpush.msra.mxu0 %v4046
    %v4048 = vand.u32 %v4011, 4294901760
    %4049 = vmatpush.msra.mxu0 %v4048
    %v4050 = vand.u32 %v4010, 4294901760
    %4051 = vmatpush.msra.mxu0 %v4050
    %v4052 = vand.u32 %v4009, 4294901760
    %4053 = vmatpush.msra.mxu0 %v4052
    %v4054 = vand.u32 %v4008, 4294901760
    %4055 = vmatpush.msra.mxu0 %v4054
    %4056 = vmatmul.f32.gmra.mxu0 0.0
    %v4057 = vpop.f32.mrf.mxu0
    %v4058 = vadd.f32 0.0, %v4057
    %4059 = vdwg.mxu0
    %v4060 = vand.u32 %v4023, 4294901760
    %v4061 = vsub.f32 %v4023, %v4060
    %v4062 = vand.u32 %v4061, 4294901760
    %v4063 = vsub.f32 %v4061, %v4062
    %v4064 = vand.u32 %v4063, 4294901760
    %4065 = vmatpush.msra.mxu0 %v4064
    %v4066 = vand.u32 %v4022, 4294901760
    %v4067 = vsub.f32 %v4022, %v4066
    %v4068 = vand.u32 %v4067, 4294901760
    %v4069 = vsub.f32 %v4067, %v4068
    %v4070 = vand.u32 %v4069, 4294901760
    %4071 = vmatpush.msra.mxu0 %v4070
    %v4072 = vand.u32 %v4021, 4294901760
    %v4073 = vsub.f32 %v4021, %v4072
    %v4074 = vand.u32 %v4073, 4294901760
    %v4075 = vsub.f32 %v4073, %v4074
    %v4076 = vand.u32 %v4075, 4294901760
    %4077 = vmatpush.msra.mxu0 %v4076
    %v4078 = vand.u32 %v4020, 4294901760
    %v4079 = vsub.f32 %v4020, %v4078
    %v4080 = vand.u32 %v4079, 4294901760
    %v4081 = vsub.f32 %v4079, %v4080
    %v4082 = vand.u32 %v4081, 4294901760
    %4083 = vmatpush.msra.mxu0 %v4082
    %v4084 = vand.u32 %v4019, 4294901760
    %v4085 = vsub.f32 %v4019, %v4084
    %v4086 = vand.u32 %v4085, 4294901760
    %v4087 = vsub.f32 %v4085, %v4086
    %v4088 = vand.u32 %v4087, 4294901760
    %4089 = vmatpush.msra.mxu0 %v4088
    %v4090 = vand.u32 %v4018, 4294901760
    %v4091 = vsub.f32 %v4018, %v4090
    %v4092 = vand.u32 %v4091, 4294901760
    %v4093 = vsub.f32 %v4091, %v4092
    %v4094 = vand.u32 %v4093, 4294901760
    %4095 = vmatpush.msra.mxu0 %v4094
    %v4096 = vand.u32 %v4017, 4294901760
    %v4097 = vsub.f32 %v4017, %v4096
    %v4098 = vand.u32 %v4097, 4294901760
    %v4099 = vsub.f32 %v4097, %v4098
    %v4100 = vand.u32 %v4099, 4294901760
    %4101 = vmatpush.msra.mxu0 %v4100
    %v4102 = vand.u32 %v4016, 4294901760
    %v4103 = vsub.f32 %v4016, %v4102
    %v4104 = vand.u32 %v4103, 4294901760
    %v4105 = vsub.f32 %v4103, %v4104
    %v4106 = vand.u32 %v4105, 4294901760
    %4107 = vmatpush.msra.mxu0 %v4106
    %v4108 = vand.u32 %v4015, 4294901760
    %v4109 = vsub.f32 %v4015, %v4108
    %v4110 = vand.u32 %v4109, 4294901760
    %v4111 = vsub.f32 %v4109, %v4110
    %v4112 = vand.u32 %v4111, 4294901760
    %4113 = vmatpush.msra.mxu0 %v4112
    %v4114 = vand.u32 %v4014, 4294901760
    %v4115 = vsub.f32 %v4014, %v4114
    %v4116 = vand.u32 %v4115, 4294901760
    %v4117 = vsub.f32 %v4115, %v4116
    %v4118 = vand.u32 %v4117, 4294901760
    %4119 = vmatpush.msra.mxu0 %v4118
    %v4120 = vand.u32 %v4013, 4294901760
    %v4121 = vsub.f32 %v4013, %v4120
    %v4122 = vand.u32 %v4121, 4294901760
    %v4123 = vsub.f32 %v4121, %v4122
    %v4124 = vand.u32 %v4123, 4294901760
    %4125 = vmatpush.msra.mxu0 %v4124
    %v4126 = vand.u32 %v4012, 4294901760
    %v4127 = vsub.f32 %v4012, %v4126
    %v4128 = vand.u32 %v4127, 4294901760
    %v4129 = vsub.f32 %v4127, %v4128
    %v4130 = vand.u32 %v4129, 4294901760
    %4131 = vmatpush.msra.mxu0 %v4130
    %v4132 = vand.u32 %v4011, 4294901760
    %v4133 = vsub.f32 %v4011, %v4132
    %v4134 = vand.u32 %v4133, 4294901760
    %v4135 = vsub.f32 %v4133, %v4134
    %v4136 = vand.u32 %v4135, 4294901760
    %4137 = vmatpush.msra.mxu0 %v4136
    %v4138 = vand.u32 %v4010, 4294901760
    %v4139 = vsub.f32 %v4010, %v4138
    %v4140 = vand.u32 %v4139, 4294901760
    %v4141 = vsub.f32 %v4139, %v4140
    %v4142 = vand.u32 %v4141, 4294901760
    %4143 = vmatpush.msra.mxu0 %v4142
    %v4144 = vand.u32 %v4009, 4294901760
    %v4145 = vsub.f32 %v4009, %v4144
    %v4146 = vand.u32 %v4145, 4294901760
    %v4147 = vsub.f32 %v4145, %v4146
    %v4148 = vand.u32 %v4147, 4294901760
    %4149 = vmatpush.msra.mxu0 %v4148
    %v4150 = vand.u32 %v4008, 4294901760
    %v4151 = vsub.f32 %v4008, %v4150
    %v4152 = vand.u32 %v4151, 4294901760
    %v4153 = vsub.f32 %v4151, %v4152
    %v4154 = vand.u32 %v4153, 4294901760
    %4155 = vmatpush.msra.mxu0 %v4154
    %4156 = vmatmul.f32.gmra.mxu0 1.0
    %v4157 = vpop.f32.mrf.mxu0
    %v4158 = vadd.f32 %v4058, %v4157
    %4159 = vdwg.mxu0
    %v4160 = vand.u32 %v4023, 4294901760
    %v4161 = vsub.f32 %v4023, %v4160
    %4162 = vmatpush.msra.mxu0 %v4161
    %v4163 = vand.u32 %v4022, 4294901760
    %v4164 = vsub.f32 %v4022, %v4163
    %4165 = vmatpush.msra.mxu0 %v4164
    %v4166 = vand.u32 %v4021, 4294901760
    %v4167 = vsub.f32 %v4021, %v4166
    %4168 = vmatpush.msra.mxu0 %v4167
    %v4169 = vand.u32 %v4020, 4294901760
    %v4170 = vsub.f32 %v4020, %v4169
    %4171 = vmatpush.msra.mxu0 %v4170
    %v4172 = vand.u32 %v4019, 4294901760
    %v4173 = vsub.f32 %v4019, %v4172
    %4174 = vmatpush.msra.mxu0 %v4173
    %v4175 = vand.u32 %v4018, 4294901760
    %v4176 = vsub.f32 %v4018, %v4175
    %4177 = vmatpush.msra.mxu0 %v4176
    %v4178 = vand.u32 %v4017, 4294901760
    %v4179 = vsub.f32 %v4017, %v4178
    %4180 = vmatpush.msra.mxu0 %v4179
    %v4181 = vand.u32 %v4016, 4294901760
    %v4182 = vsub.f32 %v4016, %v4181
    %4183 = vmatpush.msra.mxu0 %v4182
    %v4184 = vand.u32 %v4015, 4294901760
    %v4185 = vsub.f32 %v4015, %v4184
    %4186 = vmatpush.msra.mxu0 %v4185
    %v4187 = vand.u32 %v4014, 4294901760
    %v4188 = vsub.f32 %v4014, %v4187
    %4189 = vmatpush.msra.mxu0 %v4188
    %v4190 = vand.u32 %v4013, 4294901760
    %v4191 = vsub.f32 %v4013, %v4190
    %4192 = vmatpush.msra.mxu0 %v4191
    %v4193 = vand.u32 %v4012, 4294901760
    %v4194 = vsub.f32 %v4012, %v4193
    %4195 = vmatpush.msra.mxu0 %v4194
    %v4196 = vand.u32 %v4011, 4294901760
    %v4197 = vsub.f32 %v4011, %v4196
    %4198 = vmatpush.msra.mxu0 %v4197
    %v4199 = vand.u32 %v4010, 4294901760
    %v4200 = vsub.f32 %v4010, %v4199
    %4201 = vmatpush.msra.mxu0 %v4200
    %v4202 = vand.u32 %v4009, 4294901760
    %v4203 = vsub.f32 %v4009, %v4202
    %4204 = vmatpush.msra.mxu0 %v4203
    %v4205 = vand.u32 %v4008, 4294901760
    %v4206 = vsub.f32 %v4008, %v4205
    %4207 = vmatpush.msra.mxu0 %v4206
    %4208 = vmatmul.f32.gmra.mxu0 0.0
    %v4209 = vpop.f32.mrf.mxu0
    %v4210 = vadd.f32 %v4158, %v4209
    %4211 = vdwg.mxu0
    %v4212 = vand.u32 %v4023, 4294901760
    %4213 = vmatpush.msra.mxu0 %v4212
    %v4214 = vand.u32 %v4022, 4294901760
    %4215 = vmatpush.msra.mxu0 %v4214
    %v4216 = vand.u32 %v4021, 4294901760
    %4217 = vmatpush.msra.mxu0 %v4216
    %v4218 = vand.u32 %v4020, 4294901760
    %4219 = vmatpush.msra.mxu0 %v4218
    %v4220 = vand.u32 %v4019, 4294901760
    %4221 = vmatpush.msra.mxu0 %v4220
    %v4222 = vand.u32 %v4018, 4294901760
    %4223 = vmatpush.msra.mxu0 %v4222
    %v4224 = vand.u32 %v4017, 4294901760
    %4225 = vmatpush.msra.mxu0 %v4224
    %v4226 = vand.u32 %v4016, 4294901760
    %4227 = vmatpush.msra.mxu0 %v4226
    %v4228 = vand.u32 %v4015, 4294901760
    %4229 = vmatpush.msra.mxu0 %v4228
    %v4230 = vand.u32 %v4014, 4294901760
    %4231 = vmatpush.msra.mxu0 %v4230
    %v4232 = vand.u32 %v4013, 4294901760
    %4233 = vmatpush.msra.mxu0 %v4232
    %v4234 = vand.u32 %v4012, 4294901760
    %4235 = vmatpush.msra.mxu0 %v4234
    %v4236 = vand.u32 %v4011, 4294901760
    %4237 = vmatpush.msra.mxu0 %v4236
    %v4238 = vand.u32 %v4010, 4294901760
    %4239 = vmatpush.msra.mxu0 %v4238
    %v4240 = vand.u32 %v4009, 4294901760
    %4241 = vmatpush.msra.mxu0 %v4240
    %v4242 = vand.u32 %v4008, 4294901760
    %4243 = vmatpush.msra.mxu0 %v4242
    %4244 = vmatmul.f32.gmra.mxu0 0.0
    %v4245 = vpop.f32.mrf.mxu0
    %v4246 = vadd.f32 %v4210, %v4245
    %4247 = vdwg.mxu0
    %v4248 = vand.u32 %v4023, 4294901760
    %v4249 = vsub.f32 %v4023, %v4248
    %v4250 = vand.u32 %v4249, 4294901760
    %4251 = vmatpush.msra.mxu0 %v4250
    %v4252 = vand.u32 %v4022, 4294901760
    %v4253 = vsub.f32 %v4022, %v4252
    %v4254 = vand.u32 %v4253, 4294901760
    %4255 = vmatpush.msra.mxu0 %v4254
    %v4256 = vand.u32 %v4021, 4294901760
    %v4257 = vsub.f32 %v4021, %v4256
    %v4258 = vand.u32 %v4257, 4294901760
    %4259 = vmatpush.msra.mxu0 %v4258
    %v4260 = vand.u32 %v4020, 4294901760
    %v4261 = vsub.f32 %v4020, %v4260
    %v4262 = vand.u32 %v4261, 4294901760
    %4263 = vmatpush.msra.mxu0 %v4262
    %v4264 = vand.u32 %v4019, 4294901760
    %v4265 = vsub.f32 %v4019, %v4264
    %v4266 = vand.u32 %v4265, 4294901760
    %4267 = vmatpush.msra.mxu0 %v4266
    %v4268 = vand.u32 %v4018, 4294901760
    %v4269 = vsub.f32 %v4018, %v4268
    %v4270 = vand.u32 %v4269, 4294901760
    %4271 = vmatpush.msra.mxu0 %v4270
    %v4272 = vand.u32 %v4017, 4294901760
    %v4273 = vsub.f32 %v4017, %v4272
    %v4274 = vand.u32 %v4273, 4294901760
    %4275 = vmatpush.msra.mxu0 %v4274
    %v4276 = vand.u32 %v4016, 4294901760
    %v4277 = vsub.f32 %v4016, %v4276
    %v4278 = vand.u32 %v4277, 4294901760
    %4279 = vmatpush.msra.mxu0 %v4278
    %v4280 = vand.u32 %v4015, 4294901760
    %v4281 = vsub.f32 %v4015, %v4280
    %v4282 = vand.u32 %v4281, 4294901760
    %4283 = vmatpush.msra.mxu0 %v4282
    %v4284 = vand.u32 %v4014, 4294901760
    %v4285 = vsub.f32 %v4014, %v4284
    %v4286 = vand.u32 %v4285, 4294901760
    %4287 = vmatpush.msra.mxu0 %v4286
    %v4288 = vand.u32 %v4013, 4294901760
    %v4289 = vsub.f32 %v4013, %v4288
    %v4290 = vand.u32 %v4289, 4294901760
    %4291 = vmatpush.msra.mxu0 %v4290
    %v4292 = vand.u32 %v4012, 4294901760
    %v4293 = vsub.f32 %v4012, %v4292
    %v4294 = vand.u32 %v4293, 4294901760
    %4295 = vmatpush.msra.mxu0 %v4294
    %v4296 = vand.u32 %v4011, 4294901760
    %v4297 = vsub.f32 %v4011, %v4296
    %v4298 = vand.u32 %v4297, 4294901760
    %4299 = vmatpush.msra.mxu0 %v4298
    %v4300 = vand.u32 %v4010, 4294901760
    %v4301 = vsub.f32 %v4010, %v4300
    %v4302 = vand.u32 %v4301, 4294901760
    %4303 = vmatpush.msra.mxu0 %v4302
    %v4304 = vand.u32 %v4009, 4294901760
    %v4305 = vsub.f32 %v4009, %v4304
    %v4306 = vand.u32 %v4305, 4294901760
    %4307 = vmatpush.msra.mxu0 %v4306
    %v4308 = vand.u32 %v4008, 4294901760
    %v4309 = vsub.f32 %v4008, %v4308
    %v4310 = vand.u32 %v4309, 4294901760
    %4311 = vmatpush.msra.mxu0 %v4310
    %4312 = vmatmul.f32.gmra.mxu0 1.0
    %v4313 = vpop.f32.mrf.mxu0
    %v4314 = vadd.f32 %v4246, %v4313
    %4315 = vdwg.mxu0
    %v4316 = vand.u32 %v4023, 4294901760
    %4317 = vmatpush.msra.mxu0 %v4316
    %v4318 = vand.u32 %v4022, 4294901760
    %4319 = vmatpush.msra.mxu0 %v4318
    %v4320 = vand.u32 %v4021, 4294901760
    %4321 = vmatpush.msra.mxu0 %v4320
    %v4322 = vand.u32 %v4020, 4294901760
    %4323 = vmatpush.msra.mxu0 %v4322
    %v4324 = vand.u32 %v4019, 4294901760
    %4325 = vmatpush.msra.mxu0 %v4324
    %v4326 = vand.u32 %v4018, 4294901760
    %4327 = vmatpush.msra.mxu0 %v4326
    %v4328 = vand.u32 %v4017, 4294901760
    %4329 = vmatpush.msra.mxu0 %v4328
    %v4330 = vand.u32 %v4016, 4294901760
    %4331 = vmatpush.msra.mxu0 %v4330
    %v4332 = vand.u32 %v4015, 4294901760
    %4333 = vmatpush.msra.mxu0 %v4332
    %v4334 = vand.u32 %v4014, 4294901760
    %4335 = vmatpush.msra.mxu0 %v4334
    %v4336 = vand.u32 %v4013, 4294901760
    %4337 = vmatpush.msra.mxu0 %v4336
    %v4338 = vand.u32 %v4012, 4294901760
    %4339 = vmatpush.msra.mxu0 %v4338
    %v4340 = vand.u32 %v4011, 4294901760
    %4341 = vmatpush.msra.mxu0 %v4340
    %v4342 = vand.u32 %v4010, 4294901760
    %4343 = vmatpush.msra.mxu0 %v4342
    %v4344 = vand.u32 %v4009, 4294901760
    %4345 = vmatpush.msra.mxu0 %v4344
    %v4346 = vand.u32 %v4008, 4294901760
    %4347 = vmatpush.msra.mxu0 %v4346
    %4348 = vmatmul.f32.gmra.mxu0 1.0
    %v4349 = vpop.f32.mrf.mxu0
    %v4350 = vadd.f32 %v4314, %v4349
    %4351 = vdwg.mxu0
    %v4352 = vmul.f32 %v4006, 0.0078125
    %v4353 = vmul.f32 %v4350, 0.0078125
    %v4354 = vmul.f32 %v4352, %v4352
    %v4355 = vsub.f32 %v4353, %v4354
    %v4356 = vmax.f32 %v4355, 0.0
    %v4357 = vadd.f32 %v4356, 1e-05
    %v4358 = vrsqrt.pop %v4357
    %v4359 = vmul.f32 %v4358, %v4357
    %v4360 = vmul.f32 %v4359, %v4358
    %v4361 = vmul.f32 0.5, %v4360
    %v4362 = vsub.f32 1.5, %v4361
    %v4363 = vmul.f32 %v4358, %v4362
    %vm4364 = vweird.f32 %v4357
    %vm4365 = vweird.f32 %v4358
    %vm4366 = vmor %vm4364, %vm4365
    %v4367 = vsel %vm4366, %v4358, %v4363
    %v4368 = vmul.f32 %v3678, %v4367
    %v4369 = vmul.f32 %v4352, %v4368
    %v4370 = vsub.f32 %v3679, %v4369
    %v4371 = vperm.slane %v4368, 0
    %v4372 = vmul.f32 %v3616, %v4371
    %v4373 = vmul.f32 %v3620, %v4371
    %v4374 = vmul.f32 %v3624, %v4371
    %v4375 = vmul.f32 %v3628, %v4371
    %v4376 = vmul.f32 %v3632, %v4371
    %v4377 = vmul.f32 %v3636, %v4371
    %v4378 = vmul.f32 %v3640, %v4371
    %v4379 = vmul.f32 %v3644, %v4371
    %v4380 = vmul.f32 %v3648, %v4371
    %v4381 = vmul.f32 %v3652, %v4371
    %v4382 = vmul.f32 %v3656, %v4371
    %v4383 = vmul.f32 %v3660, %v4371
    %v4384 = vmul.f32 %v3664, %v4371
    %v4385 = vmul.f32 %v3668, %v4371
    %v4386 = vmul.f32 %v3672, %v4371
    %v4387 = vmul.f32 %v3676, %v4371
    %v4388 = vperm.slane %v4370, 0
    %v4389 = vadd.f32 %v4372, %v4388
    %v4390 = vadd.f32 %v4373, %v4388
    %v4391 = vadd.f32 %v4374, %v4388
    %v4392 = vadd.f32 %v4375, %v4388
    %v4393 = vadd.f32 %v4376, %v4388
    %v4394 = vadd.f32 %v4377, %v4388
    %v4395 = vadd.f32 %v4378, %v4388
    %v4396 = vadd.f32 %v4379, %v4388
    %v4397 = vadd.f32 %v4380, %v4388
    %v4398 = vadd.f32 %v4381, %v4388
    %v4399 = vadd.f32 %v4382, %v4388
    %v4400 = vadd.f32 %v4383, %v4388
    %v4401 = vadd.f32 %v4384, %v4388
    %v4402 = vadd.f32 %v4385, %v4388
    %v4403 = vadd.f32 %v4386, %v4388
    %v4404 = vadd.f32 %v4387, %v4388
    %v4405 = vmax.f32 %v4389, 0.0
    %v4406 = vmax.f32 %v4390, 0.0
    %v4407 = vmax.f32 %v4391, 0.0
    %v4408 = vmax.f32 %v4392, 0.0
    %v4409 = vmax.f32 %v4393, 0.0
    %v4410 = vmax.f32 %v4394, 0.0
    %v4411 = vmax.f32 %v4395, 0.0
    %v4412 = vmax.f32 %v4396, 0.0
    %v4413 = vmax.f32 %v4397, 0.0
    %v4414 = vmax.f32 %v4398, 0.0
    %v4415 = vmax.f32 %v4399, 0.0
    %v4416 = vmax.f32 %v4400, 0.0
    %v4417 = vmax.f32 %v4401, 0.0
    %v4418 = vmax.f32 %v4402, 0.0
    %v4419 = vmax.f32 %v4403, 0.0
    %v4420 = vmax.f32 %v4404, 0.0
    %s4421 = scalar_lea.vmem [#allocation5], 384
    %v4422 = vld [vmem:[%s4421] sm:$0xff]
    %v4423 = vld [vmem:[%s4421 + $0x8] sm:$0xff]
    %v4424 = vld [vmem:[%s4421 + $0x10] sm:$0xff]
    %v4425 = vld [vmem:[%s4421 + $0x18] sm:$0xff]
    %v4426 = vld [vmem:[%s4421 + $0x20] sm:$0xff]
    %v4427 = vld [vmem:[%s4421 + $0x28] sm:$0xff]
    %v4428 = vld [vmem:[%s4421 + $0x30] sm:$0xff]
    %v4429 = vld [vmem:[%s4421 + $0x38] sm:$0xff]
    %v4430 = vld [vmem:[%s4421 + $0x40] sm:$0xff]
    %v4431 = vld [vmem:[%s4421 + $0x48] sm:$0xff]
    %v4432 = vld [vmem:[%s4421 + $0x50] sm:$0xff]
    %v4433 = vld [vmem:[%s4421 + $0x58] sm:$0xff]
    %v4434 = vld [vmem:[%s4421 + $0x60] sm:$0xff]
    %v4435 = vld [vmem:[%s4421 + $0x68] sm:$0xff]
    %v4436 = vld [vmem:[%s4421 + $0x70] sm:$0xff]
    %v4437 = vld [vmem:[%s4421 + $0x78] sm:$0xff]
    %v4438 = vand.u32 %v4437, 4294901760
    %4439 = vmatpush.msra.mxu0 %v4438
    %v4440 = vand.u32 %v4436, 4294901760
    %4441 = vmatpush.msra.mxu0 %v4440
    %v4442 = vand.u32 %v4435, 4294901760
    %4443 = vmatpush.msra.mxu0 %v4442
    %v4444 = vand.u32 %v4434, 4294901760
    %4445 = vmatpush.msra.mxu0 %v4444
    %v4446 = vand.u32 %v4433, 4294901760
    %4447 = vmatpush.msra.mxu0 %v4446
    %v4448 = vand.u32 %v4432, 4294901760
    %4449 = vmatpush.msra.mxu0 %v4448
    %v4450 = vand.u32 %v4431, 4294901760
    %4451 = vmatpush.msra.mxu0 %v4450
    %v4452 = vand.u32 %v4430, 4294901760
    %4453 = vmatpush.msra.mxu0 %v4452
    %v4454 = vand.u32 %v4429, 4294901760
    %4455 = vmatpush.msra.mxu0 %v4454
    %v4456 = vand.u32 %v4428, 4294901760
    %4457 = vmatpush.msra.mxu0 %v4456
    %v4458 = vand.u32 %v4427, 4294901760
    %4459 = vmatpush.msra.mxu0 %v4458
    %v4460 = vand.u32 %v4426, 4294901760
    %4461 = vmatpush.msra.mxu0 %v4460
    %v4462 = vand.u32 %v4425, 4294901760
    %4463 = vmatpush.msra.mxu0 %v4462
    %v4464 = vand.u32 %v4424, 4294901760
    %4465 = vmatpush.msra.mxu0 %v4464
    %v4466 = vand.u32 %v4423, 4294901760
    %4467 = vmatpush.msra.mxu0 %v4466
    %v4468 = vand.u32 %v4422, 4294901760
    %4469 = vmatpush.msra.mxu0 %v4468
    %v4470 = vand.u32 %v4405, 4294901760
    %v4471 = vsub.f32 %v4405, %v4470
    %v4472 = vand.u32 %v4471, 4294901760
    %v4473 = vsub.f32 %v4471, %v4472
    %v4474 = vand.u32 %v4473, 4294901760
    %4475 = vmatmul.f32.gmra.mxu0 %v4474
    %v4476 = vpop.f32.mrf.mxu0
    %v4477 = vadd.f32 0.0, %v4476
    %v4478 = vand.u32 %v4406, 4294901760
    %v4479 = vsub.f32 %v4406, %v4478
    %v4480 = vand.u32 %v4479, 4294901760
    %v4481 = vsub.f32 %v4479, %v4480
    %v4482 = vand.u32 %v4481, 4294901760
    %4483 = vmatmul.f32.gmra.mxu0 %v4482
    %v4484 = vpop.f32.mrf.mxu0
    %v4485 = vadd.f32 0.0, %v4484
    %v4486 = vand.u32 %v4407, 4294901760
    %v4487 = vsub.f32 %v4407, %v4486
    %v4488 = vand.u32 %v4487, 4294901760
    %v4489 = vsub.f32 %v4487, %v4488
    %v4490 = vand.u32 %v4489, 4294901760
    %4491 = vmatmul.f32.gmra.mxu0 %v4490
    %v4492 = vpop.f32.mrf.mxu0
    %v4493 = vadd.f32 0.0, %v4492
    %v4494 = vand.u32 %v4408, 4294901760
    %v4495 = vsub.f32 %v4408, %v4494
    %v4496 = vand.u32 %v4495, 4294901760
    %v4497 = vsub.f32 %v4495, %v4496
    %v4498 = vand.u32 %v4497, 4294901760
    %4499 = vmatmul.f32.gmra.mxu0 %v4498
    %v4500 = vpop.f32.mrf.mxu0
    %v4501 = vadd.f32 0.0, %v4500
    %v4502 = vand.u32 %v4409, 4294901760
    %v4503 = vsub.f32 %v4409, %v4502
    %v4504 = vand.u32 %v4503, 4294901760
    %v4505 = vsub.f32 %v4503, %v4504
    %v4506 = vand.u32 %v4505, 4294901760
    %4507 = vmatmul.f32.gmra.mxu0 %v4506
    %v4508 = vpop.f32.mrf.mxu0
    %v4509 = vadd.f32 0.0, %v4508
    %v4510 = vand.u32 %v4410, 4294901760
    %v4511 = vsub.f32 %v4410, %v4510
    %v4512 = vand.u32 %v4511, 4294901760
    %v4513 = vsub.f32 %v4511, %v4512
    %v4514 = vand.u32 %v4513, 4294901760
    %4515 = vmatmul.f32.gmra.mxu0 %v4514
    %v4516 = vpop.f32.mrf.mxu0
    %v4517 = vadd.f32 0.0, %v4516
    %v4518 = vand.u32 %v4411, 4294901760
    %v4519 = vsub.f32 %v4411, %v4518
    %v4520 = vand.u32 %v4519, 4294901760
    %v4521 = vsub.f32 %v4519, %v4520
    %v4522 = vand.u32 %v4521, 4294901760
    %4523 = vmatmul.f32.gmra.mxu0 %v4522
    %v4524 = vpop.f32.mrf.mxu0
    %v4525 = vadd.f32 0.0, %v4524
    %v4526 = vand.u32 %v4412, 4294901760
    %v4527 = vsub.f32 %v4412, %v4526
    %v4528 = vand.u32 %v4527, 4294901760
    %v4529 = vsub.f32 %v4527, %v4528
    %v4530 = vand.u32 %v4529, 4294901760
    %4531 = vmatmul.f32.gmra.mxu0 %v4530
    %v4532 = vpop.f32.mrf.mxu0
    %v4533 = vadd.f32 0.0, %v4532
    %v4534 = vand.u32 %v4413, 4294901760
    %v4535 = vsub.f32 %v4413, %v4534
    %v4536 = vand.u32 %v4535, 4294901760
    %v4537 = vsub.f32 %v4535, %v4536
    %v4538 = vand.u32 %v4537, 4294901760
    %4539 = vmatmul.f32.gmra.mxu0 %v4538
    %v4540 = vpop.f32.mrf.mxu0
    %v4541 = vadd.f32 0.0, %v4540
    %v4542 = vand.u32 %v4414, 4294901760
    %v4543 = vsub.f32 %v4414, %v4542
    %v4544 = vand.u32 %v4543, 4294901760
    %v4545 = vsub.f32 %v4543, %v4544
    %v4546 = vand.u32 %v4545, 4294901760
    %4547 = vmatmul.f32.gmra.mxu0 %v4546
    %v4548 = vpop.f32.mrf.mxu0
    %v4549 = vadd.f32 0.0, %v4548
    %v4550 = vand.u32 %v4415, 4294901760
    %v4551 = vsub.f32 %v4415, %v4550
    %v4552 = vand.u32 %v4551, 4294901760
    %v4553 = vsub.f32 %v4551, %v4552
    %v4554 = vand.u32 %v4553, 4294901760
    %4555 = vmatmul.f32.gmra.mxu0 %v4554
    %v4556 = vpop.f32.mrf.mxu0
    %v4557 = vadd.f32 0.0, %v4556
    %v4558 = vand.u32 %v4416, 4294901760
    %v4559 = vsub.f32 %v4416, %v4558
    %v4560 = vand.u32 %v4559, 4294901760
    %v4561 = vsub.f32 %v4559, %v4560
    %v4562 = vand.u32 %v4561, 4294901760
    %4563 = vmatmul.f32.gmra.mxu0 %v4562
    %v4564 = vpop.f32.mrf.mxu0
    %v4565 = vadd.f32 0.0, %v4564
    %v4566 = vand.u32 %v4417, 4294901760
    %v4567 = vsub.f32 %v4417, %v4566
    %v4568 = vand.u32 %v4567, 4294901760
    %v4569 = vsub.f32 %v4567, %v4568
    %v4570 = vand.u32 %v4569, 4294901760
    %4571 = vmatmul.f32.gmra.mxu0 %v4570
    %v4572 = vpop.f32.mrf.mxu0
    %v4573 = vadd.f32 0.0, %v4572
    %v4574 = vand.u32 %v4418, 4294901760
    %v4575 = vsub.f32 %v4418, %v4574
    %v4576 = vand.u32 %v4575, 4294901760
    %v4577 = vsub.f32 %v4575, %v4576
    %v4578 = vand.u32 %v4577, 4294901760
    %4579 = vmatmul.f32.gmra.mxu0 %v4578
    %v4580 = vpop.f32.mrf.mxu0
    %v4581 = vadd.f32 0.0, %v4580
    %v4582 = vand.u32 %v4419, 4294901760
    %v4583 = vsub.f32 %v4419, %v4582
    %v4584 = vand.u32 %v4583, 4294901760
    %v4585 = vsub.f32 %v4583, %v4584
    %v4586 = vand.u32 %v4585, 4294901760
    %4587 = vmatmul.f32.gmra.mxu0 %v4586
    %v4588 = vpop.f32.mrf.mxu0
    %v4589 = vadd.f32 0.0, %v4588
    %v4590 = vand.u32 %v4420, 4294901760
    %v4591 = vsub.f32 %v4420, %v4590
    %v4592 = vand.u32 %v4591, 4294901760
    %v4593 = vsub.f32 %v4591, %v4592
    %v4594 = vand.u32 %v4593, 4294901760
    %4595 = vmatmul.f32.gmra.mxu0 %v4594
    %v4596 = vpop.f32.mrf.mxu0
    %v4597 = vadd.f32 0.0, %v4596
    %4598 = vdwg.mxu0
    %v4599 = vand.u32 %v4437, 4294901760
    %v4600 = vsub.f32 %v4437, %v4599
    %v4601 = vand.u32 %v4600, 4294901760
    %v4602 = vsub.f32 %v4600, %v4601
    %v4603 = vand.u32 %v4602, 4294901760
    %4604 = vmatpush.msra.mxu0 %v4603
    %v4605 = vand.u32 %v4436, 4294901760
    %v4606 = vsub.f32 %v4436, %v4605
    %v4607 = vand.u32 %v4606, 4294901760
    %v4608 = vsub.f32 %v4606, %v4607
    %v4609 = vand.u32 %v4608, 4294901760
    %4610 = vmatpush.msra.mxu0 %v4609
    %v4611 = vand.u32 %v4435, 4294901760
    %v4612 = vsub.f32 %v4435, %v4611
    %v4613 = vand.u32 %v4612, 4294901760
    %v4614 = vsub.f32 %v4612, %v4613
    %v4615 = vand.u32 %v4614, 4294901760
    %4616 = vmatpush.msra.mxu0 %v4615
    %v4617 = vand.u32 %v4434, 4294901760
    %v4618 = vsub.f32 %v4434, %v4617
    %v4619 = vand.u32 %v4618, 4294901760
    %v4620 = vsub.f32 %v4618, %v4619
    %v4621 = vand.u32 %v4620, 4294901760
    %4622 = vmatpush.msra.mxu0 %v4621
    %v4623 = vand.u32 %v4433, 4294901760
    %v4624 = vsub.f32 %v4433, %v4623
    %v4625 = vand.u32 %v4624, 4294901760
    %v4626 = vsub.f32 %v4624, %v4625
    %v4627 = vand.u32 %v4626, 4294901760
    %4628 = vmatpush.msra.mxu0 %v4627
    %v4629 = vand.u32 %v4432, 4294901760
    %v4630 = vsub.f32 %v4432, %v4629
    %v4631 = vand.u32 %v4630, 4294901760
    %v4632 = vsub.f32 %v4630, %v4631
    %v4633 = vand.u32 %v4632, 4294901760
    %4634 = vmatpush.msra.mxu0 %v4633
    %v4635 = vand.u32 %v4431, 4294901760
    %v4636 = vsub.f32 %v4431, %v4635
    %v4637 = vand.u32 %v4636, 4294901760
    %v4638 = vsub.f32 %v4636, %v4637
    %v4639 = vand.u32 %v4638, 4294901760
    %4640 = vmatpush.msra.mxu0 %v4639
    %v4641 = vand.u32 %v4430, 4294901760
    %v4642 = vsub.f32 %v4430, %v4641
    %v4643 = vand.u32 %v4642, 4294901760
    %v4644 = vsub.f32 %v4642, %v4643
    %v4645 = vand.u32 %v4644, 4294901760
    %4646 = vmatpush.msra.mxu0 %v4645
    %v4647 = vand.u32 %v4429, 4294901760
    %v4648 = vsub.f32 %v4429, %v4647
    %v4649 = vand.u32 %v4648, 4294901760
    %v4650 = vsub.f32 %v4648, %v4649
    %v4651 = vand.u32 %v4650, 4294901760
    %4652 = vmatpush.msra.mxu0 %v4651
    %v4653 = vand.u32 %v4428, 4294901760
    %v4654 = vsub.f32 %v4428, %v4653
    %v4655 = vand.u32 %v4654, 4294901760
    %v4656 = vsub.f32 %v4654, %v4655
    %v4657 = vand.u32 %v4656, 4294901760
    %4658 = vmatpush.msra.mxu0 %v4657
    %v4659 = vand.u32 %v4427, 4294901760
    %v4660 = vsub.f32 %v4427, %v4659
    %v4661 = vand.u32 %v4660, 4294901760
    %v4662 = vsub.f32 %v4660, %v4661
    %v4663 = vand.u32 %v4662, 4294901760
    %4664 = vmatpush.msra.mxu0 %v4663
    %v4665 = vand.u32 %v4426, 4294901760
    %v4666 = vsub.f32 %v4426, %v4665
    %v4667 = vand.u32 %v4666, 4294901760
    %v4668 = vsub.f32 %v4666, %v4667
    %v4669 = vand.u32 %v4668, 4294901760
    %4670 = vmatpush.msra.mxu0 %v4669
    %v4671 = vand.u32 %v4425, 4294901760
    %v4672 = vsub.f32 %v4425, %v4671
    %v4673 = vand.u32 %v4672, 4294901760
    %v4674 = vsub.f32 %v4672, %v4673
    %v4675 = vand.u32 %v4674, 4294901760
    %4676 = vmatpush.msra.mxu0 %v4675
    %v4677 = vand.u32 %v4424, 4294901760
    %v4678 = vsub.f32 %v4424, %v4677
    %v4679 = vand.u32 %v4678, 4294901760
    %v4680 = vsub.f32 %v4678, %v4679
    %v4681 = vand.u32 %v4680, 4294901760
    %4682 = vmatpush.msra.mxu0 %v4681
    %v4683 = vand.u32 %v4423, 4294901760
    %v4684 = vsub.f32 %v4423, %v4683
    %v4685 = vand.u32 %v4684, 4294901760
    %v4686 = vsub.f32 %v4684, %v4685
    %v4687 = vand.u32 %v4686, 4294901760
    %4688 = vmatpush.msra.mxu0 %v4687
    %v4689 = vand.u32 %v4422, 4294901760
    %v4690 = vsub.f32 %v4422, %v4689
    %v4691 = vand.u32 %v4690, 4294901760
    %v4692 = vsub.f32 %v4690, %v4691
    %v4693 = vand.u32 %v4692, 4294901760
    %4694 = vmatpush.msra.mxu0 %v4693
    %v4695 = vand.u32 %v4405, 4294901760
    %4696 = vmatmul.f32.gmra.mxu0 %v4695
    %v4697 = vpop.f32.mrf.mxu0
    %v4698 = vadd.f32 %v4477, %v4697
    %v4699 = vand.u32 %v4406, 4294901760
    %4700 = vmatmul.f32.gmra.mxu0 %v4699
    %v4701 = vpop.f32.mrf.mxu0
    %v4702 = vadd.f32 %v4485, %v4701
    %v4703 = vand.u32 %v4407, 4294901760
    %4704 = vmatmul.f32.gmra.mxu0 %v4703
    %v4705 = vpop.f32.mrf.mxu0
    %v4706 = vadd.f32 %v4493, %v4705
    %v4707 = vand.u32 %v4408, 4294901760
    %4708 = vmatmul.f32.gmra.mxu0 %v4707
    %v4709 = vpop.f32.mrf.mxu0
    %v4710 = vadd.f32 %v4501, %v4709
    %v4711 = vand.u32 %v4409, 4294901760
    %4712 = vmatmul.f32.gmra.mxu0 %v4711
    %v4713 = vpop.f32.mrf.mxu0
    %v4714 = vadd.f32 %v4509, %v4713
    %v4715 = vand.u32 %v4410, 4294901760
    %4716 = vmatmul.f32.gmra.mxu0 %v4715
    %v4717 = vpop.f32.mrf.mxu0
    %v4718 = vadd.f32 %v4517, %v4717
    %v4719 = vand.u32 %v4411, 4294901760
    %4720 = vmatmul.f32.gmra.mxu0 %v4719
    %v4721 = vpop.f32.mrf.mxu0
    %v4722 = vadd.f32 %v4525, %v4721
    %v4723 = vand.u32 %v4412, 4294901760
    %4724 = vmatmul.f32.gmra.mxu0 %v4723
    %v4725 = vpop.f32.mrf.mxu0
    %v4726 = vadd.f32 %v4533, %v4725
    %v4727 = vand.u32 %v4413, 4294901760
    %4728 = vmatmul.f32.gmra.mxu0 %v4727
    %v4729 = vpop.f32.mrf.mxu0
    %v4730 = vadd.f32 %v4541, %v4729
    %v4731 = vand.u32 %v4414, 4294901760
    %4732 = vmatmul.f32.gmra.mxu0 %v4731
    %v4733 = vpop.f32.mrf.mxu0
    %v4734 = vadd.f32 %v4549, %v4733
    %v4735 = vand.u32 %v4415, 4294901760
    %4736 = vmatmul.f32.gmra.mxu0 %v4735
    %v4737 = vpop.f32.mrf.mxu0
    %v4738 = vadd.f32 %v4557, %v4737
    %v4739 = vand.u32 %v4416, 4294901760
    %4740 = vmatmul.f32.gmra.mxu0 %v4739
    %v4741 = vpop.f32.mrf.mxu0
    %v4742 = vadd.f32 %v4565, %v4741
    %v4743 = vand.u32 %v4417, 4294901760
    %4744 = vmatmul.f32.gmra.mxu0 %v4743
    %v4745 = vpop.f32.mrf.mxu0
    %v4746 = vadd.f32 %v4573, %v4745
    %v4747 = vand.u32 %v4418, 4294901760
    %4748 = vmatmul.f32.gmra.mxu0 %v4747
    %v4749 = vpop.f32.mrf.mxu0
    %v4750 = vadd.f32 %v4581, %v4749
    %v4751 = vand.u32 %v4419, 4294901760
    %4752 = vmatmul.f32.gmra.mxu0 %v4751
    %v4753 = vpop.f32.mrf.mxu0
    %v4754 = vadd.f32 %v4589, %v4753
    %v4755 = vand.u32 %v4420, 4294901760
    %4756 = vmatmul.f32.gmra.mxu0 %v4755
    %v4757 = vpop.f32.mrf.mxu0
    %v4758 = vadd.f32 %v4597, %v4757
    %4759 = vdwg.mxu0
    %v4760 = vand.u32 %v4437, 4294901760
    %v4761 = vsub.f32 %v4437, %v4760
    %4762 = vmatpush.msra.mxu0 %v4761
    %v4763 = vand.u32 %v4436, 4294901760
    %v4764 = vsub.f32 %v4436, %v4763
    %4765 = vmatpush.msra.mxu0 %v4764
    %v4766 = vand.u32 %v4435, 4294901760
    %v4767 = vsub.f32 %v4435, %v4766
    %4768 = vmatpush.msra.mxu0 %v4767
    %v4769 = vand.u32 %v4434, 4294901760
    %v4770 = vsub.f32 %v4434, %v4769
    %4771 = vmatpush.msra.mxu0 %v4770
    %v4772 = vand.u32 %v4433, 4294901760
    %v4773 = vsub.f32 %v4433, %v4772
    %4774 = vmatpush.msra.mxu0 %v4773
    %v4775 = vand.u32 %v4432, 4294901760
    %v4776 = vsub.f32 %v4432, %v4775
    %4777 = vmatpush.msra.mxu0 %v4776
    %v4778 = vand.u32 %v4431, 4294901760
    %v4779 = vsub.f32 %v4431, %v4778
    %4780 = vmatpush.msra.mxu0 %v4779
    %v4781 = vand.u32 %v4430, 4294901760
    %v4782 = vsub.f32 %v4430, %v4781
    %4783 = vmatpush.msra.mxu0 %v4782
    %v4784 = vand.u32 %v4429, 4294901760
    %v4785 = vsub.f32 %v4429, %v4784
    %4786 = vmatpush.msra.mxu0 %v4785
    %v4787 = vand.u32 %v4428, 4294901760
    %v4788 = vsub.f32 %v4428, %v4787
    %4789 = vmatpush.msra.mxu0 %v4788
    %v4790 = vand.u32 %v4427, 4294901760
    %v4791 = vsub.f32 %v4427, %v4790
    %4792 = vmatpush.msra.mxu0 %v4791
    %v4793 = vand.u32 %v4426, 4294901760
    %v4794 = vsub.f32 %v4426, %v4793
    %4795 = vmatpush.msra.mxu0 %v4794
    %v4796 = vand.u32 %v4425, 4294901760
    %v4797 = vsub.f32 %v4425, %v4796
    %4798 = vmatpush.msra.mxu0 %v4797
    %v4799 = vand.u32 %v4424, 4294901760
    %v4800 = vsub.f32 %v4424, %v4799
    %4801 = vmatpush.msra.mxu0 %v4800
    %v4802 = vand.u32 %v4423, 4294901760
    %v4803 = vsub.f32 %v4423, %v4802
    %4804 = vmatpush.msra.mxu0 %v4803
    %v4805 = vand.u32 %v4422, 4294901760
    %v4806 = vsub.f32 %v4422, %v4805
    %4807 = vmatpush.msra.mxu0 %v4806
    %v4808 = vand.u32 %v4405, 4294901760
    %v4809 = vsub.f32 %v4405, %v4808
    %4810 = vmatmul.f32.gmra.mxu0 %v4809
    %v4811 = vpop.f32.mrf.mxu0
    %v4812 = vadd.f32 %v4698, %v4811
    %v4813 = vand.u32 %v4406, 4294901760
    %v4814 = vsub.f32 %v4406, %v4813
    %4815 = vmatmul.f32.gmra.mxu0 %v4814
    %v4816 = vpop.f32.mrf.mxu0
    %v4817 = vadd.f32 %v4702, %v4816
    %v4818 = vand.u32 %v4407, 4294901760
    %v4819 = vsub.f32 %v4407, %v4818
    %4820 = vmatmul.f32.gmra.mxu0 %v4819
    %v4821 = vpop.f32.mrf.mxu0
    %v4822 = vadd.f32 %v4706, %v4821
    %v4823 = vand.u32 %v4408, 4294901760
    %v4824 = vsub.f32 %v4408, %v4823
    %4825 = vmatmul.f32.gmra.mxu0 %v4824
    %v4826 = vpop.f32.mrf.mxu0
    %v4827 = vadd.f32 %v4710, %v4826
    %v4828 = vand.u32 %v4409, 4294901760
    %v4829 = vsub.f32 %v4409, %v4828
    %4830 = vmatmul.f32.gmra.mxu0 %v4829
    %v4831 = vpop.f32.mrf.mxu0
    %v4832 = vadd.f32 %v4714, %v4831
    %v4833 = vand.u32 %v4410, 4294901760
    %v4834 = vsub.f32 %v4410, %v4833
    %4835 = vmatmul.f32.gmra.mxu0 %v4834
    %v4836 = vpop.f32.mrf.mxu0
    %v4837 = vadd.f32 %v4718, %v4836
    %v4838 = vand.u32 %v4411, 4294901760
    %v4839 = vsub.f32 %v4411, %v4838
    %4840 = vmatmul.f32.gmra.mxu0 %v4839
    %v4841 = vpop.f32.mrf.mxu0
    %v4842 = vadd.f32 %v4722, %v4841
    %v4843 = vand.u32 %v4412, 4294901760
    %v4844 = vsub.f32 %v4412, %v4843
    %4845 = vmatmul.f32.gmra.mxu0 %v4844
    %v4846 = vpop.f32.mrf.mxu0
    %v4847 = vadd.f32 %v4726, %v4846
    %v4848 = vand.u32 %v4413, 4294901760
    %v4849 = vsub.f32 %v4413, %v4848
    %4850 = vmatmul.f32.gmra.mxu0 %v4849
    %v4851 = vpop.f32.mrf.mxu0
    %v4852 = vadd.f32 %v4730, %v4851
    %v4853 = vand.u32 %v4414, 4294901760
    %v4854 = vsub.f32 %v4414, %v4853
    %4855 = vmatmul.f32.gmra.mxu0 %v4854
    %v4856 = vpop.f32.mrf.mxu0
    %v4857 = vadd.f32 %v4734, %v4856
    %v4858 = vand.u32 %v4415, 4294901760
    %v4859 = vsub.f32 %v4415, %v4858
    %4860 = vmatmul.f32.gmra.mxu0 %v4859
    %v4861 = vpop.f32.mrf.mxu0
    %v4862 = vadd.f32 %v4738, %v4861
    %v4863 = vand.u32 %v4416, 4294901760
    %v4864 = vsub.f32 %v4416, %v4863
    %4865 = vmatmul.f32.gmra.mxu0 %v4864
    %v4866 = vpop.f32.mrf.mxu0
    %v4867 = vadd.f32 %v4742, %v4866
    %v4868 = vand.u32 %v4417, 4294901760
    %v4869 = vsub.f32 %v4417, %v4868
    %4870 = vmatmul.f32.gmra.mxu0 %v4869
    %v4871 = vpop.f32.mrf.mxu0
    %v4872 = vadd.f32 %v4746, %v4871
    %v4873 = vand.u32 %v4418, 4294901760
    %v4874 = vsub.f32 %v4418, %v4873
    %4875 = vmatmul.f32.gmra.mxu0 %v4874
    %v4876 = vpop.f32.mrf.mxu0
    %v4877 = vadd.f32 %v4750, %v4876
    %v4878 = vand.u32 %v4419, 4294901760
    %v4879 = vsub.f32 %v4419, %v4878
    %4880 = vmatmul.f32.gmra.mxu0 %v4879
    %v4881 = vpop.f32.mrf.mxu0
    %v4882 = vadd.f32 %v4754, %v4881
    %v4883 = vand.u32 %v4420, 4294901760
    %v4884 = vsub.f32 %v4420, %v4883
    %4885 = vmatmul.f32.gmra.mxu0 %v4884
    %v4886 = vpop.f32.mrf.mxu0
    %v4887 = vadd.f32 %v4758, %v4886
    %4888 = vdwg.mxu0
    %v4889 = vand.u32 %v4437, 4294901760
    %4890 = vmatpush.msra.mxu0 %v4889
    %v4891 = vand.u32 %v4436, 4294901760
    %4892 = vmatpush.msra.mxu0 %v4891
    %v4893 = vand.u32 %v4435, 4294901760
    %4894 = vmatpush.msra.mxu0 %v4893
    %v4895 = vand.u32 %v4434, 4294901760
    %4896 = vmatpush.msra.mxu0 %v4895
    %v4897 = vand.u32 %v4433, 4294901760
    %4898 = vmatpush.msra.mxu0 %v4897
    %v4899 = vand.u32 %v4432, 4294901760
    %4900 = vmatpush.msra.mxu0 %v4899
    %v4901 = vand.u32 %v4431, 4294901760
    %4902 = vmatpush.msra.mxu0 %v4901
    %v4903 = vand.u32 %v4430, 4294901760
    %4904 = vmatpush.msra.mxu0 %v4903
    %v4905 = vand.u32 %v4429, 4294901760
    %4906 = vmatpush.msra.mxu0 %v4905
    %v4907 = vand.u32 %v4428, 4294901760
    %4908 = vmatpush.msra.mxu0 %v4907
    %v4909 = vand.u32 %v4427, 4294901760
    %4910 = vmatpush.msra.mxu0 %v4909
    %v4911 = vand.u32 %v4426, 4294901760
    %4912 = vmatpush.msra.mxu0 %v4911
    %v4913 = vand.u32 %v4425, 4294901760
    %4914 = vmatpush.msra.mxu0 %v4913
    %v4915 = vand.u32 %v4424, 4294901760
    %4916 = vmatpush.msra.mxu0 %v4915
    %v4917 = vand.u32 %v4423, 4294901760
    %4918 = vmatpush.msra.mxu0 %v4917
    %v4919 = vand.u32 %v4422, 4294901760
    %4920 = vmatpush.msra.mxu0 %v4919
    %v4921 = vand.u32 %v4405, 4294901760
    %v4922 = vsub.f32 %v4405, %v4921
    %v4923 = vand.u32 %v4922, 4294901760
    %4924 = vmatmul.f32.gmra.mxu0 %v4923
    %v4925 = vpop.f32.mrf.mxu0
    %v4926 = vadd.f32 %v4812, %v4925
    %v4927 = vand.u32 %v4406, 4294901760
    %v4928 = vsub.f32 %v4406, %v4927
    %v4929 = vand.u32 %v4928, 4294901760
    %4930 = vmatmul.f32.gmra.mxu0 %v4929
    %v4931 = vpop.f32.mrf.mxu0
    %v4932 = vadd.f32 %v4817, %v4931
    %v4933 = vand.u32 %v4407, 4294901760
    %v4934 = vsub.f32 %v4407, %v4933
    %v4935 = vand.u32 %v4934, 4294901760
    %4936 = vmatmul.f32.gmra.mxu0 %v4935
    %v4937 = vpop.f32.mrf.mxu0
    %v4938 = vadd.f32 %v4822, %v4937
    %v4939 = vand.u32 %v4408, 4294901760
    %v4940 = vsub.f32 %v4408, %v4939
    %v4941 = vand.u32 %v4940, 4294901760
    %4942 = vmatmul.f32.gmra.mxu0 %v4941
    %v4943 = vpop.f32.mrf.mxu0
    %v4944 = vadd.f32 %v4827, %v4943
    %v4945 = vand.u32 %v4409, 4294901760
    %v4946 = vsub.f32 %v4409, %v4945
    %v4947 = vand.u32 %v4946, 4294901760
    %4948 = vmatmul.f32.gmra.mxu0 %v4947
    %v4949 = vpop.f32.mrf.mxu0
    %v4950 = vadd.f32 %v4832, %v4949
    %v4951 = vand.u32 %v4410, 4294901760
    %v4952 = vsub.f32 %v4410, %v4951
    %v4953 = vand.u32 %v4952, 4294901760
    %4954 = vmatmul.f32.gmra.mxu0 %v4953
    %v4955 = vpop.f32.mrf.mxu0
    %v4956 = vadd.f32 %v4837, %v4955
    %v4957 = vand.u32 %v4411, 4294901760
    %v4958 = vsub.f32 %v4411, %v4957
    %v4959 = vand.u32 %v4958, 4294901760
    %4960 = vmatmul.f32.gmra.mxu0 %v4959
    %v4961 = vpop.f32.mrf.mxu0
    %v4962 = vadd.f32 %v4842, %v4961
    %v4963 = vand.u32 %v4412, 4294901760
    %v4964 = vsub.f32 %v4412, %v4963
    %v4965 = vand.u32 %v4964, 4294901760
    %4966 = vmatmul.f32.gmra.mxu0 %v4965
    %v4967 = vpop.f32.mrf.mxu0
    %v4968 = vadd.f32 %v4847, %v4967
    %v4969 = vand.u32 %v4413, 4294901760
    %v4970 = vsub.f32 %v4413, %v4969
    %v4971 = vand.u32 %v4970, 4294901760
    %4972 = vmatmul.f32.gmra.mxu0 %v4971
    %v4973 = vpop.f32.mrf.mxu0
    %v4974 = vadd.f32 %v4852, %v4973
    %v4975 = vand.u32 %v4414, 4294901760
    %v4976 = vsub.f32 %v4414, %v4975
    %v4977 = vand.u32 %v4976, 4294901760
    %4978 = vmatmul.f32.gmra.mxu0 %v4977
    %v4979 = vpop.f32.mrf.mxu0
    %v4980 = vadd.f32 %v4857, %v4979
    %v4981 = vand.u32 %v4415, 4294901760
    %v4982 = vsub.f32 %v4415, %v4981
    %v4983 = vand.u32 %v4982, 4294901760
    %4984 = vmatmul.f32.gmra.mxu0 %v4983
    %v4985 = vpop.f32.mrf.mxu0
    %v4986 = vadd.f32 %v4862, %v4985
    %v4987 = vand.u32 %v4416, 4294901760
    %v4988 = vsub.f32 %v4416, %v4987
    %v4989 = vand.u32 %v4988, 4294901760
    %4990 = vmatmul.f32.gmra.mxu0 %v4989
    %v4991 = vpop.f32.mrf.mxu0
    %v4992 = vadd.f32 %v4867, %v4991
    %v4993 = vand.u32 %v4417, 4294901760
    %v4994 = vsub.f32 %v4417, %v4993
    %v4995 = vand.u32 %v4994, 4294901760
    %4996 = vmatmul.f32.gmra.mxu0 %v4995
    %v4997 = vpop.f32.mrf.mxu0
    %v4998 = vadd.f32 %v4872, %v4997
    %v4999 = vand.u32 %v4418, 4294901760
    %v5000 = vsub.f32 %v4418, %v4999
    %v5001 = vand.u32 %v5000, 4294901760
    %5002 = vmatmul.f32.gmra.mxu0 %v5001
    %v5003 = vpop.f32.mrf.mxu0
    %v5004 = vadd.f32 %v4877, %v5003
    %v5005 = vand.u32 %v4419, 4294901760
    %v5006 = vsub.f32 %v4419, %v5005
    %v5007 = vand.u32 %v5006, 4294901760
    %5008 = vmatmul.f32.gmra.mxu0 %v5007
    %v5009 = vpop.f32.mrf.mxu0
    %v5010 = vadd.f32 %v4882, %v5009
    %v5011 = vand.u32 %v4420, 4294901760
    %v5012 = vsub.f32 %v4420, %v5011
    %v5013 = vand.u32 %v5012, 4294901760
    %5014 = vmatmul.f32.gmra.mxu0 %v5013
    %v5015 = vpop.f32.mrf.mxu0
    %v5016 = vadd.f32 %v4887, %v5015
    %5017 = vdwg.mxu0
    %v5018 = vand.u32 %v4437, 4294901760
    %v5019 = vsub.f32 %v4437, %v5018
    %v5020 = vand.u32 %v5019, 4294901760
    %5021 = vmatpush.msra.mxu0 %v5020
    %v5022 = vand.u32 %v4436, 4294901760
    %v5023 = vsub.f32 %v4436, %v5022
    %v5024 = vand.u32 %v5023, 4294901760
    %5025 = vmatpush.msra.mxu0 %v5024
    %v5026 = vand.u32 %v4435, 4294901760
    %v5027 = vsub.f32 %v4435, %v5026
    %v5028 = vand.u32 %v5027, 4294901760
    %5029 = vmatpush.msra.mxu0 %v5028
    %v5030 = vand.u32 %v4434, 4294901760
    %v5031 = vsub.f32 %v4434, %v5030
    %v5032 = vand.u32 %v5031, 4294901760
    %5033 = vmatpush.msra.mxu0 %v5032
    %v5034 = vand.u32 %v4433, 4294901760
    %v5035 = vsub.f32 %v4433, %v5034
    %v5036 = vand.u32 %v5035, 4294901760
    %5037 = vmatpush.msra.mxu0 %v5036
    %v5038 = vand.u32 %v4432, 4294901760
    %v5039 = vsub.f32 %v4432, %v5038
    %v5040 = vand.u32 %v5039, 4294901760
    %5041 = vmatpush.msra.mxu0 %v5040
    %v5042 = vand.u32 %v4431, 4294901760
    %v5043 = vsub.f32 %v4431, %v5042
    %v5044 = vand.u32 %v5043, 4294901760
    %5045 = vmatpush.msra.mxu0 %v5044
    %v5046 = vand.u32 %v4430, 4294901760
    %v5047 = vsub.f32 %v4430, %v5046
    %v5048 = vand.u32 %v5047, 4294901760
    %5049 = vmatpush.msra.mxu0 %v5048
    %v5050 = vand.u32 %v4429, 4294901760
    %v5051 = vsub.f32 %v4429, %v5050
    %v5052 = vand.u32 %v5051, 4294901760
    %5053 = vmatpush.msra.mxu0 %v5052
    %v5054 = vand.u32 %v4428, 4294901760
    %v5055 = vsub.f32 %v4428, %v5054
    %v5056 = vand.u32 %v5055, 4294901760
    %5057 = vmatpush.msra.mxu0 %v5056
    %v5058 = vand.u32 %v4427, 4294901760
    %v5059 = vsub.f32 %v4427, %v5058
    %v5060 = vand.u32 %v5059, 4294901760
    %5061 = vmatpush.msra.mxu0 %v5060
    %v5062 = vand.u32 %v4426, 4294901760
    %v5063 = vsub.f32 %v4426, %v5062
    %v5064 = vand.u32 %v5063, 4294901760
    %5065 = vmatpush.msra.mxu0 %v5064
    %v5066 = vand.u32 %v4425, 4294901760
    %v5067 = vsub.f32 %v4425, %v5066
    %v5068 = vand.u32 %v5067, 4294901760
    %5069 = vmatpush.msra.mxu0 %v5068
    %v5070 = vand.u32 %v4424, 4294901760
    %v5071 = vsub.f32 %v4424, %v5070
    %v5072 = vand.u32 %v5071, 4294901760
    %5073 = vmatpush.msra.mxu0 %v5072
    %v5074 = vand.u32 %v4423, 4294901760
    %v5075 = vsub.f32 %v4423, %v5074
    %v5076 = vand.u32 %v5075, 4294901760
    %5077 = vmatpush.msra.mxu0 %v5076
    %v5078 = vand.u32 %v4422, 4294901760
    %v5079 = vsub.f32 %v4422, %v5078
    %v5080 = vand.u32 %v5079, 4294901760
    %5081 = vmatpush.msra.mxu0 %v5080
    %v5082 = vand.u32 %v4405, 4294901760
    %5083 = vmatmul.f32.gmra.mxu0 %v5082
    %v5084 = vpop.f32.mrf.mxu0
    %v5085 = vadd.f32 %v4926, %v5084
    %v5086 = vand.u32 %v4406, 4294901760
    %5087 = vmatmul.f32.gmra.mxu0 %v5086
    %v5088 = vpop.f32.mrf.mxu0
    %v5089 = vadd.f32 %v4932, %v5088
    %v5090 = vand.u32 %v4407, 4294901760
    %5091 = vmatmul.f32.gmra.mxu0 %v5090
    %v5092 = vpop.f32.mrf.mxu0
    %v5093 = vadd.f32 %v4938, %v5092
    %v5094 = vand.u32 %v4408, 4294901760
    %5095 = vmatmul.f32.gmra.mxu0 %v5094
    %v5096 = vpop.f32.mrf.mxu0
    %v5097 = vadd.f32 %v4944, %v5096
    %v5098 = vand.u32 %v4409, 4294901760
    %5099 = vmatmul.f32.gmra.mxu0 %v5098
    %v5100 = vpop.f32.mrf.mxu0
    %v5101 = vadd.f32 %v4950, %v5100
    %v5102 = vand.u32 %v4410, 4294901760
    %5103 = vmatmul.f32.gmra.mxu0 %v5102
    %v5104 = vpop.f32.mrf.mxu0
    %v5105 = vadd.f32 %v4956, %v5104
    %v5106 = vand.u32 %v4411, 4294901760
    %5107 = vmatmul.f32.gmra.mxu0 %v5106
    %v5108 = vpop.f32.mrf.mxu0
    %v5109 = vadd.f32 %v4962, %v5108
    %v5110 = vand.u32 %v4412, 4294901760
    %5111 = vmatmul.f32.gmra.mxu0 %v5110
    %v5112 = vpop.f32.mrf.mxu0
    %v5113 = vadd.f32 %v4968, %v5112
    %v5114 = vand.u32 %v4413, 4294901760
    %5115 = vmatmul.f32.gmra.mxu0 %v5114
    %v5116 = vpop.f32.mrf.mxu0
    %v5117 = vadd.f32 %v4974, %v5116
    %v5118 = vand.u32 %v4414, 4294901760
    %5119 = vmatmul.f32.gmra.mxu0 %v5118
    %v5120 = vpop.f32.mrf.mxu0
    %v5121 = vadd.f32 %v4980, %v5120
    %v5122 = vand.u32 %v4415, 4294901760
    %5123 = vmatmul.f32.gmra.mxu0 %v5122
    %v5124 = vpop.f32.mrf.mxu0
    %v5125 = vadd.f32 %v4986, %v5124
    %v5126 = vand.u32 %v4416, 4294901760
    %5127 = vmatmul.f32.gmra.mxu0 %v5126
    %v5128 = vpop.f32.mrf.mxu0
    %v5129 = vadd.f32 %v4992, %v5128
    %v5130 = vand.u32 %v4417, 4294901760
    %5131 = vmatmul.f32.gmra.mxu0 %v5130
    %v5132 = vpop.f32.mrf.mxu0
    %v5133 = vadd.f32 %v4998, %v5132
    %v5134 = vand.u32 %v4418, 4294901760
    %5135 = vmatmul.f32.gmra.mxu0 %v5134
    %v5136 = vpop.f32.mrf.mxu0
    %v5137 = vadd.f32 %v5004, %v5136
    %v5138 = vand.u32 %v4419, 4294901760
    %5139 = vmatmul.f32.gmra.mxu0 %v5138
    %v5140 = vpop.f32.mrf.mxu0
    %v5141 = vadd.f32 %v5010, %v5140
    %v5142 = vand.u32 %v4420, 4294901760
    %5143 = vmatmul.f32.gmra.mxu0 %v5142
    %v5144 = vpop.f32.mrf.mxu0
    %v5145 = vadd.f32 %v5016, %v5144
    %5146 = vdwg.mxu0
    %v5147 = vand.u32 %v4437, 4294901760
    %5148 = vmatpush.msra.mxu0 %v5147
    %v5149 = vand.u32 %v4436, 4294901760
    %5150 = vmatpush.msra.mxu0 %v5149
    %v5151 = vand.u32 %v4435, 4294901760
    %5152 = vmatpush.msra.mxu0 %v5151
    %v5153 = vand.u32 %v4434, 4294901760
    %5154 = vmatpush.msra.mxu0 %v5153
    %v5155 = vand.u32 %v4433, 4294901760
    %5156 = vmatpush.msra.mxu0 %v5155
    %v5157 = vand.u32 %v4432, 4294901760
    %5158 = vmatpush.msra.mxu0 %v5157
    %v5159 = vand.u32 %v4431, 4294901760
    %5160 = vmatpush.msra.mxu0 %v5159
    %v5161 = vand.u32 %v4430, 4294901760
    %5162 = vmatpush.msra.mxu0 %v5161
    %v5163 = vand.u32 %v4429, 4294901760
    %5164 = vmatpush.msra.mxu0 %v5163
    %v5165 = vand.u32 %v4428, 4294901760
    %5166 = vmatpush.msra.mxu0 %v5165
    %v5167 = vand.u32 %v4427, 4294901760
    %5168 = vmatpush.msra.mxu0 %v5167
    %v5169 = vand.u32 %v4426, 4294901760
    %5170 = vmatpush.msra.mxu0 %v5169
    %v5171 = vand.u32 %v4425, 4294901760
    %5172 = vmatpush.msra.mxu0 %v5171
    %v5173 = vand.u32 %v4424, 4294901760
    %5174 = vmatpush.msra.mxu0 %v5173
    %v5175 = vand.u32 %v4423, 4294901760
    %5176 = vmatpush.msra.mxu0 %v5175
    %v5177 = vand.u32 %v4422, 4294901760
    %5178 = vmatpush.msra.mxu0 %v5177
    %v5179 = vand.u32 %v4405, 4294901760
    %5180 = vmatmul.f32.gmra.mxu0 %v5179
    %v5181 = vpop.f32.mrf.mxu0
    %v5182 = vadd.f32 %v5085, %v5181
    %v5183 = vand.u32 %v4406, 4294901760
    %5184 = vmatmul.f32.gmra.mxu0 %v5183
    %v5185 = vpop.f32.mrf.mxu0
    %v5186 = vadd.f32 %v5089, %v5185
    %v5187 = vand.u32 %v4407, 4294901760
    %5188 = vmatmul.f32.gmra.mxu0 %v5187
    %v5189 = vpop.f32.mrf.mxu0
    %v5190 = vadd.f32 %v5093, %v5189
    %v5191 = vand.u32 %v4408, 4294901760
    %5192 = vmatmul.f32.gmra.mxu0 %v5191
    %v5193 = vpop.f32.mrf.mxu0
    %v5194 = vadd.f32 %v5097, %v5193
    %v5195 = vand.u32 %v4409, 4294901760
    %5196 = vmatmul.f32.gmra.mxu0 %v5195
    %v5197 = vpop.f32.mrf.mxu0
    %v5198 = vadd.f32 %v5101, %v5197
    %v5199 = vand.u32 %v4410, 4294901760
    %5200 = vmatmul.f32.gmra.mxu0 %v5199
    %v5201 = vpop.f32.mrf.mxu0
    %v5202 = vadd.f32 %v5105, %v5201
    %v5203 = vand.u32 %v4411, 4294901760
    %5204 = vmatmul.f32.gmra.mxu0 %v5203
    %v5205 = vpop.f32.mrf.mxu0
    %v5206 = vadd.f32 %v5109, %v5205
    %v5207 = vand.u32 %v4412, 4294901760
    %5208 = vmatmul.f32.gmra.mxu0 %v5207
    %v5209 = vpop.f32.mrf.mxu0
    %v5210 = vadd.f32 %v5113, %v5209
    %v5211 = vand.u32 %v4413, 4294901760
    %5212 = vmatmul.f32.gmra.mxu0 %v5211
    %v5213 = vpop.f32.mrf.mxu0
    %v5214 = vadd.f32 %v5117, %v5213
    %v5215 = vand.u32 %v4414, 4294901760
    %5216 = vmatmul.f32.gmra.mxu0 %v5215
    %v5217 = vpop.f32.mrf.mxu0
    %v5218 = vadd.f32 %v5121, %v5217
    %v5219 = vand.u32 %v4415, 4294901760
    %5220 = vmatmul.f32.gmra.mxu0 %v5219
    %v5221 = vpop.f32.mrf.mxu0
    %v5222 = vadd.f32 %v5125, %v5221
    %v5223 = vand.u32 %v4416, 4294901760
    %5224 = vmatmul.f32.gmra.mxu0 %v5223
    %v5225 = vpop.f32.mrf.mxu0
    %v5226 = vadd.f32 %v5129, %v5225
    %v5227 = vand.u32 %v4417, 4294901760
    %5228 = vmatmul.f32.gmra.mxu0 %v5227
    %v5229 = vpop.f32.mrf.mxu0
    %v5230 = vadd.f32 %v5133, %v5229
    %v5231 = vand.u32 %v4418, 4294901760
    %5232 = vmatmul.f32.gmra.mxu0 %v5231
    %v5233 = vpop.f32.mrf.mxu0
    %v5234 = vadd.f32 %v5137, %v5233
    %v5235 = vand.u32 %v4419, 4294901760
    %5236 = vmatmul.f32.gmra.mxu0 %v5235
    %v5237 = vpop.f32.mrf.mxu0
    %v5238 = vadd.f32 %v5141, %v5237
    %v5239 = vand.u32 %v4420, 4294901760
    %5240 = vmatmul.f32.gmra.mxu0 %v5239
    %v5241 = vpop.f32.mrf.mxu0
    %v5242 = vadd.f32 %v5145, %v5241
    %5243 = vdwg.mxu0
    %v5244 = vld [vmem:[#allocation7 + $0x5] sm:$0x1]
    %v5245 = vld [vmem:[#allocation7 + $0x6] sm:$0x1]
    %v5246 = vand.u32 %v5242, 4294901760
    %5247 = vmatpush.msra.mxu0 %v5246
    %v5248 = vand.u32 %v5238, 4294901760
    %5249 = vmatpush.msra.mxu0 %v5248
    %v5250 = vand.u32 %v5234, 4294901760
    %5251 = vmatpush.msra.mxu0 %v5250
    %v5252 = vand.u32 %v5230, 4294901760
    %5253 = vmatpush.msra.mxu0 %v5252
    %v5254 = vand.u32 %v5226, 4294901760
    %5255 = vmatpush.msra.mxu0 %v5254
    %v5256 = vand.u32 %v5222, 4294901760
    %5257 = vmatpush.msra.mxu0 %v5256
    %v5258 = vand.u32 %v5218, 4294901760
    %5259 = vmatpush.msra.mxu0 %v5258
    %v5260 = vand.u32 %v5214, 4294901760
    %5261 = vmatpush.msra.mxu0 %v5260
    %v5262 = vand.u32 %v5210, 4294901760
    %5263 = vmatpush.msra.mxu0 %v5262
    %v5264 = vand.u32 %v5206, 4294901760
    %5265 = vmatpush.msra.mxu0 %v5264
    %v5266 = vand.u32 %v5202, 4294901760
    %5267 = vmatpush.msra.mxu0 %v5266
    %v5268 = vand.u32 %v5198, 4294901760
    %5269 = vmatpush.msra.mxu0 %v5268
    %v5270 = vand.u32 %v5194, 4294901760
    %5271 = vmatpush.msra.mxu0 %v5270
    %v5272 = vand.u32 %v5190, 4294901760
    %5273 = vmatpush.msra.mxu0 %v5272
    %v5274 = vand.u32 %v5186, 4294901760
    %5275 = vmatpush.msra.mxu0 %v5274
    %v5276 = vand.u32 %v5182, 4294901760
    %5277 = vmatpush.msra.mxu0 %v5276
    %5278 = vmatmul.f32.gmra.mxu0 0.0
    %v5279 = vpop.f32.mrf.mxu0
    %v5280 = vadd.f32 0.0, %v5279
    %5281 = vdwg.mxu0
    %v5282 = vand.u32 %v5242, 4294901760
    %v5283 = vsub.f32 %v5242, %v5282
    %v5284 = vand.u32 %v5283, 4294901760
    %v5285 = vsub.f32 %v5283, %v5284
    %v5286 = vand.u32 %v5285, 4294901760
    %5287 = vmatpush.msra.mxu0 %v5286
    %v5288 = vand.u32 %v5238, 4294901760
    %v5289 = vsub.f32 %v5238, %v5288
    %v5290 = vand.u32 %v5289, 4294901760
    %v5291 = vsub.f32 %v5289, %v5290
    %v5292 = vand.u32 %v5291, 4294901760
    %5293 = vmatpush.msra.mxu0 %v5292
    %v5294 = vand.u32 %v5234, 4294901760
    %v5295 = vsub.f32 %v5234, %v5294
    %v5296 = vand.u32 %v5295, 4294901760
    %v5297 = vsub.f32 %v5295, %v5296
    %v5298 = vand.u32 %v5297, 4294901760
    %5299 = vmatpush.msra.mxu0 %v5298
    %v5300 = vand.u32 %v5230, 4294901760
    %v5301 = vsub.f32 %v5230, %v5300
    %v5302 = vand.u32 %v5301, 4294901760
    %v5303 = vsub.f32 %v5301, %v5302
    %v5304 = vand.u32 %v5303, 4294901760
    %5305 = vmatpush.msra.mxu0 %v5304
    %v5306 = vand.u32 %v5226, 4294901760
    %v5307 = vsub.f32 %v5226, %v5306
    %v5308 = vand.u32 %v5307, 4294901760
    %v5309 = vsub.f32 %v5307, %v5308
    %v5310 = vand.u32 %v5309, 4294901760
    %5311 = vmatpush.msra.mxu0 %v5310
    %v5312 = vand.u32 %v5222, 4294901760
    %v5313 = vsub.f32 %v5222, %v5312
    %v5314 = vand.u32 %v5313, 4294901760
    %v5315 = vsub.f32 %v5313, %v5314
    %v5316 = vand.u32 %v5315, 4294901760
    %5317 = vmatpush.msra.mxu0 %v5316
    %v5318 = vand.u32 %v5218, 4294901760
    %v5319 = vsub.f32 %v5218, %v5318
    %v5320 = vand.u32 %v5319, 4294901760
    %v5321 = vsub.f32 %v5319, %v5320
    %v5322 = vand.u32 %v5321, 4294901760
    %5323 = vmatpush.msra.mxu0 %v5322
    %v5324 = vand.u32 %v5214, 4294901760
    %v5325 = vsub.f32 %v5214, %v5324
    %v5326 = vand.u32 %v5325, 4294901760
    %v5327 = vsub.f32 %v5325, %v5326
    %v5328 = vand.u32 %v5327, 4294901760
    %5329 = vmatpush.msra.mxu0 %v5328
    %v5330 = vand.u32 %v5210, 4294901760
    %v5331 = vsub.f32 %v5210, %v5330
    %v5332 = vand.u32 %v5331, 4294901760
    %v5333 = vsub.f32 %v5331, %v5332
    %v5334 = vand.u32 %v5333, 4294901760
    %5335 = vmatpush.msra.mxu0 %v5334
    %v5336 = vand.u32 %v5206, 4294901760
    %v5337 = vsub.f32 %v5206, %v5336
    %v5338 = vand.u32 %v5337, 4294901760
    %v5339 = vsub.f32 %v5337, %v5338
    %v5340 = vand.u32 %v5339, 4294901760
    %5341 = vmatpush.msra.mxu0 %v5340
    %v5342 = vand.u32 %v5202, 4294901760
    %v5343 = vsub.f32 %v5202, %v5342
    %v5344 = vand.u32 %v5343, 4294901760
    %v5345 = vsub.f32 %v5343, %v5344
    %v5346 = vand.u32 %v5345, 4294901760
    %5347 = vmatpush.msra.mxu0 %v5346
    %v5348 = vand.u32 %v5198, 4294901760
    %v5349 = vsub.f32 %v5198, %v5348
    %v5350 = vand.u32 %v5349, 4294901760
    %v5351 = vsub.f32 %v5349, %v5350
    %v5352 = vand.u32 %v5351, 4294901760
    %5353 = vmatpush.msra.mxu0 %v5352
    %v5354 = vand.u32 %v5194, 4294901760
    %v5355 = vsub.f32 %v5194, %v5354
    %v5356 = vand.u32 %v5355, 4294901760
    %v5357 = vsub.f32 %v5355, %v5356
    %v5358 = vand.u32 %v5357, 4294901760
    %5359 = vmatpush.msra.mxu0 %v5358
    %v5360 = vand.u32 %v5190, 4294901760
    %v5361 = vsub.f32 %v5190, %v5360
    %v5362 = vand.u32 %v5361, 4294901760
    %v5363 = vsub.f32 %v5361, %v5362
    %v5364 = vand.u32 %v5363, 4294901760
    %5365 = vmatpush.msra.mxu0 %v5364
    %v5366 = vand.u32 %v5186, 4294901760
    %v5367 = vsub.f32 %v5186, %v5366
    %v5368 = vand.u32 %v5367, 4294901760
    %v5369 = vsub.f32 %v5367, %v5368
    %v5370 = vand.u32 %v5369, 4294901760
    %5371 = vmatpush.msra.mxu0 %v5370
    %v5372 = vand.u32 %v5182, 4294901760
    %v5373 = vsub.f32 %v5182, %v5372
    %v5374 = vand.u32 %v5373, 4294901760
    %v5375 = vsub.f32 %v5373, %v5374
    %v5376 = vand.u32 %v5375, 4294901760
    %5377 = vmatpush.msra.mxu0 %v5376
    %5378 = vmatmul.f32.gmra.mxu0 1.0
    %v5379 = vpop.f32.mrf.mxu0
    %v5380 = vadd.f32 %v5280, %v5379
    %5381 = vdwg.mxu0
    %v5382 = vand.u32 %v5242, 4294901760
    %v5383 = vsub.f32 %v5242, %v5382
    %5384 = vmatpush.msra.mxu0 %v5383
    %v5385 = vand.u32 %v5238, 4294901760
    %v5386 = vsub.f32 %v5238, %v5385
    %5387 = vmatpush.msra.mxu0 %v5386
    %v5388 = vand.u32 %v5234, 4294901760
    %v5389 = vsub.f32 %v5234, %v5388
    %5390 = vmatpush.msra.mxu0 %v5389
    %v5391 = vand.u32 %v5230, 4294901760
    %v5392 = vsub.f32 %v5230, %v5391
    %5393 = vmatpush.msra.mxu0 %v5392
    %v5394 = vand.u32 %v5226, 4294901760
    %v5395 = vsub.f32 %v5226, %v5394
    %5396 = vmatpush.msra.mxu0 %v5395
    %v5397 = vand.u32 %v5222, 4294901760
    %v5398 = vsub.f32 %v5222, %v5397
    %5399 = vmatpush.msra.mxu0 %v5398
    %v5400 = vand.u32 %v5218, 4294901760
    %v5401 = vsub.f32 %v5218, %v5400
    %5402 = vmatpush.msra.mxu0 %v5401
    %v5403 = vand.u32 %v5214, 4294901760
    %v5404 = vsub.f32 %v5214, %v5403
    %5405 = vmatpush.msra.mxu0 %v5404
    %v5406 = vand.u32 %v5210, 4294901760
    %v5407 = vsub.f32 %v5210, %v5406
    %5408 = vmatpush.msra.mxu0 %v5407
    %v5409 = vand.u32 %v5206, 4294901760
    %v5410 = vsub.f32 %v5206, %v5409
    %5411 = vmatpush.msra.mxu0 %v5410
    %v5412 = vand.u32 %v5202, 4294901760
    %v5413 = vsub.f32 %v5202, %v5412
    %5414 = vmatpush.msra.mxu0 %v5413
    %v5415 = vand.u32 %v5198, 4294901760
    %v5416 = vsub.f32 %v5198, %v5415
    %5417 = vmatpush.msra.mxu0 %v5416
    %v5418 = vand.u32 %v5194, 4294901760
    %v5419 = vsub.f32 %v5194, %v5418
    %5420 = vmatpush.msra.mxu0 %v5419
    %v5421 = vand.u32 %v5190, 4294901760
    %v5422 = vsub.f32 %v5190, %v5421
    %5423 = vmatpush.msra.mxu0 %v5422
    %v5424 = vand.u32 %v5186, 4294901760
    %v5425 = vsub.f32 %v5186, %v5424
    %5426 = vmatpush.msra.mxu0 %v5425
    %v5427 = vand.u32 %v5182, 4294901760
    %v5428 = vsub.f32 %v5182, %v5427
    %5429 = vmatpush.msra.mxu0 %v5428
    %5430 = vmatmul.f32.gmra.mxu0 0.0
    %v5431 = vpop.f32.mrf.mxu0
    %v5432 = vadd.f32 %v5380, %v5431
    %5433 = vdwg.mxu0
    %v5434 = vand.u32 %v5242, 4294901760
    %5435 = vmatpush.msra.mxu0 %v5434
    %v5436 = vand.u32 %v5238, 4294901760
    %5437 = vmatpush.msra.mxu0 %v5436
    %v5438 = vand.u32 %v5234, 4294901760
    %5439 = vmatpush.msra.mxu0 %v5438
    %v5440 = vand.u32 %v5230, 4294901760
    %5441 = vmatpush.msra.mxu0 %v5440
    %v5442 = vand.u32 %v5226, 4294901760
    %5443 = vmatpush.msra.mxu0 %v5442
    %v5444 = vand.u32 %v5222, 4294901760
    %5445 = vmatpush.msra.mxu0 %v5444
    %v5446 = vand.u32 %v5218, 4294901760
    %5447 = vmatpush.msra.mxu0 %v5446
    %v5448 = vand.u32 %v5214, 4294901760
    %5449 = vmatpush.msra.mxu0 %v5448
    %v5450 = vand.u32 %v5210, 4294901760
    %5451 = vmatpush.msra.mxu0 %v5450
    %v5452 = vand.u32 %v5206, 4294901760
    %5453 = vmatpush.msra.mxu0 %v5452
    %v5454 = vand.u32 %v5202, 4294901760
    %5455 = vmatpush.msra.mxu0 %v5454
    %v5456 = vand.u32 %v5198, 4294901760
    %5457 = vmatpush.msra.mxu0 %v5456
    %v5458 = vand.u32 %v5194, 4294901760
    %5459 = vmatpush.msra.mxu0 %v5458
    %v5460 = vand.u32 %v5190, 4294901760
    %5461 = vmatpush.msra.mxu0 %v5460
    %v5462 = vand.u32 %v5186, 4294901760
    %5463 = vmatpush.msra.mxu0 %v5462
    %v5464 = vand.u32 %v5182, 4294901760
    %5465 = vmatpush.msra.mxu0 %v5464
    %5466 = vmatmul.f32.gmra.mxu0 0.0
    %v5467 = vpop.f32.mrf.mxu0
    %v5468 = vadd.f32 %v5432, %v5467
    %5469 = vdwg.mxu0
    %v5470 = vand.u32 %v5242, 4294901760
    %v5471 = vsub.f32 %v5242, %v5470
    %v5472 = vand.u32 %v5471, 4294901760
    %5473 = vmatpush.msra.mxu0 %v5472
    %v5474 = vand.u32 %v5238, 4294901760
    %v5475 = vsub.f32 %v5238, %v5474
    %v5476 = vand.u32 %v5475, 4294901760
    %5477 = vmatpush.msra.mxu0 %v5476
    %v5478 = vand.u32 %v5234, 4294901760
    %v5479 = vsub.f32 %v5234, %v5478
    %v5480 = vand.u32 %v5479, 4294901760
    %5481 = vmatpush.msra.mxu0 %v5480
    %v5482 = vand.u32 %v5230, 4294901760
    %v5483 = vsub.f32 %v5230, %v5482
    %v5484 = vand.u32 %v5483, 4294901760
    %5485 = vmatpush.msra.mxu0 %v5484
    %v5486 = vand.u32 %v5226, 4294901760
    %v5487 = vsub.f32 %v5226, %v5486
    %v5488 = vand.u32 %v5487, 4294901760
    %5489 = vmatpush.msra.mxu0 %v5488
    %v5490 = vand.u32 %v5222, 4294901760
    %v5491 = vsub.f32 %v5222, %v5490
    %v5492 = vand.u32 %v5491, 4294901760
    %5493 = vmatpush.msra.mxu0 %v5492
    %v5494 = vand.u32 %v5218, 4294901760
    %v5495 = vsub.f32 %v5218, %v5494
    %v5496 = vand.u32 %v5495, 4294901760
    %5497 = vmatpush.msra.mxu0 %v5496
    %v5498 = vand.u32 %v5214, 4294901760
    %v5499 = vsub.f32 %v5214, %v5498
    %v5500 = vand.u32 %v5499, 4294901760
    %5501 = vmatpush.msra.mxu0 %v5500
    %v5502 = vand.u32 %v5210, 4294901760
    %v5503 = vsub.f32 %v5210, %v5502
    %v5504 = vand.u32 %v5503, 4294901760
    %5505 = vmatpush.msra.mxu0 %v5504
    %v5506 = vand.u32 %v5206, 4294901760
    %v5507 = vsub.f32 %v5206, %v5506
    %v5508 = vand.u32 %v5507, 4294901760
    %5509 = vmatpush.msra.mxu0 %v5508
    %v5510 = vand.u32 %v5202, 4294901760
    %v5511 = vsub.f32 %v5202, %v5510
    %v5512 = vand.u32 %v5511, 4294901760
    %5513 = vmatpush.msra.mxu0 %v5512
    %v5514 = vand.u32 %v5198, 4294901760
    %v5515 = vsub.f32 %v5198, %v5514
    %v5516 = vand.u32 %v5515, 4294901760
    %5517 = vmatpush.msra.mxu0 %v5516
    %v5518 = vand.u32 %v5194, 4294901760
    %v5519 = vsub.f32 %v5194, %v5518
    %v5520 = vand.u32 %v5519, 4294901760
    %5521 = vmatpush.msra.mxu0 %v5520
    %v5522 = vand.u32 %v5190, 4294901760
    %v5523 = vsub.f32 %v5190, %v5522
    %v5524 = vand.u32 %v5523, 4294901760
    %5525 = vmatpush.msra.mxu0 %v5524
    %v5526 = vand.u32 %v5186, 4294901760
    %v5527 = vsub.f32 %v5186, %v5526
    %v5528 = vand.u32 %v5527, 4294901760
    %5529 = vmatpush.msra.mxu0 %v5528
    %v5530 = vand.u32 %v5182, 4294901760
    %v5531 = vsub.f32 %v5182, %v5530
    %v5532 = vand.u32 %v5531, 4294901760
    %5533 = vmatpush.msra.mxu0 %v5532
    %5534 = vmatmul.f32.gmra.mxu0 1.0
    %v5535 = vpop.f32.mrf.mxu0
    %v5536 = vadd.f32 %v5468, %v5535
    %5537 = vdwg.mxu0
    %v5538 = vand.u32 %v5242, 4294901760
    %5539 = vmatpush.msra.mxu0 %v5538
    %v5540 = vand.u32 %v5238, 4294901760
    %5541 = vmatpush.msra.mxu0 %v5540
    %v5542 = vand.u32 %v5234, 4294901760
    %5543 = vmatpush.msra.mxu0 %v5542
    %v5544 = vand.u32 %v5230, 4294901760
    %5545 = vmatpush.msra.mxu0 %v5544
    %v5546 = vand.u32 %v5226, 4294901760
    %5547 = vmatpush.msra.mxu0 %v5546
    %v5548 = vand.u32 %v5222, 4294901760
    %5549 = vmatpush.msra.mxu0 %v5548
    %v5550 = vand.u32 %v5218, 4294901760
    %5551 = vmatpush.msra.mxu0 %v5550
    %v5552 = vand.u32 %v5214, 4294901760
    %5553 = vmatpush.msra.mxu0 %v5552
    %v5554 = vand.u32 %v5210, 4294901760
    %5555 = vmatpush.msra.mxu0 %v5554
    %v5556 = vand.u32 %v5206, 4294901760
    %5557 = vmatpush.msra.mxu0 %v5556
    %v5558 = vand.u32 %v5202, 4294901760
    %5559 = vmatpush.msra.mxu0 %v5558
    %v5560 = vand.u32 %v5198, 4294901760
    %5561 = vmatpush.msra.mxu0 %v5560
    %v5562 = vand.u32 %v5194, 4294901760
    %5563 = vmatpush.msra.mxu0 %v5562
    %v5564 = vand.u32 %v5190, 4294901760
    %5565 = vmatpush.msra.mxu0 %v5564
    %v5566 = vand.u32 %v5186, 4294901760
    %5567 = vmatpush.msra.mxu0 %v5566
    %v5568 = vand.u32 %v5182, 4294901760
    %5569 = vmatpush.msra.mxu0 %v5568
    %5570 = vmatmul.f32.gmra.mxu0 1.0
    %v5571 = vpop.f32.mrf.mxu0
    %v5572 = vadd.f32 %v5536, %v5571
    %5573 = vdwg.mxu0
    %v5574 = vmul.f32 %v5182, %v5182
    %v5575 = vmul.f32 %v5186, %v5186
    %v5576 = vmul.f32 %v5190, %v5190
    %v5577 = vmul.f32 %v5194, %v5194
    %v5578 = vmul.f32 %v5198, %v5198
    %v5579 = vmul.f32 %v5202, %v5202
    %v5580 = vmul.f32 %v5206, %v5206
    %v5581 = vmul.f32 %v5210, %v5210
    %v5582 = vmul.f32 %v5214, %v5214
    %v5583 = vmul.f32 %v5218, %v5218
    %v5584 = vmul.f32 %v5222, %v5222
    %v5585 = vmul.f32 %v5226, %v5226
    %v5586 = vmul.f32 %v5230, %v5230
    %v5587 = vmul.f32 %v5234, %v5234
    %v5588 = vmul.f32 %v5238, %v5238
    %v5589 = vmul.f32 %v5242, %v5242
    %v5590 = vand.u32 %v5589, 4294901760
    %5591 = vmatpush.msra.mxu0 %v5590
    %v5592 = vand.u32 %v5588, 4294901760
    %5593 = vmatpush.msra.mxu0 %v5592
    %v5594 = vand.u32 %v5587, 4294901760
    %5595 = vmatpush.msra.mxu0 %v5594
    %v5596 = vand.u32 %v5586, 4294901760
    %5597 = vmatpush.msra.mxu0 %v5596
    %v5598 = vand.u32 %v5585, 4294901760
    %5599 = vmatpush.msra.mxu0 %v5598
    %v5600 = vand.u32 %v5584, 4294901760
    %5601 = vmatpush.msra.mxu0 %v5600
    %v5602 = vand.u32 %v5583, 4294901760
    %5603 = vmatpush.msra.mxu0 %v5602
    %v5604 = vand.u32 %v5582, 4294901760
    %5605 = vmatpush.msra.mxu0 %v5604
    %v5606 = vand.u32 %v5581, 4294901760
    %5607 = vmatpush.msra.mxu0 %v5606
    %v5608 = vand.u32 %v5580, 4294901760
    %5609 = vmatpush.msra.mxu0 %v5608
    %v5610 = vand.u32 %v5579, 4294901760
    %5611 = vmatpush.msra.mxu0 %v5610
    %v5612 = vand.u32 %v5578, 4294901760
    %5613 = vmatpush.msra.mxu0 %v5612
    %v5614 = vand.u32 %v5577, 4294901760
    %5615 = vmatpush.msra.mxu0 %v5614
    %v5616 = vand.u32 %v5576, 4294901760
    %5617 = vmatpush.msra.mxu0 %v5616
    %v5618 = vand.u32 %v5575, 4294901760
    %5619 = vmatpush.msra.mxu0 %v5618
    %v5620 = vand.u32 %v5574, 4294901760
    %5621 = vmatpush.msra.mxu0 %v5620
    %5622 = vmatmul.f32.gmra.mxu0 0.0
    %v5623 = vpop.f32.mrf.mxu0
    %v5624 = vadd.f32 0.0, %v5623
    %5625 = vdwg.mxu0
    %v5626 = vand.u32 %v5589, 4294901760
    %v5627 = vsub.f32 %v5589, %v5626
    %v5628 = vand.u32 %v5627, 4294901760
    %v5629 = vsub.f32 %v5627, %v5628
    %v5630 = vand.u32 %v5629, 4294901760
    %5631 = vmatpush.msra.mxu0 %v5630
    %v5632 = vand.u32 %v5588, 4294901760
    %v5633 = vsub.f32 %v5588, %v5632
    %v5634 = vand.u32 %v5633, 4294901760
    %v5635 = vsub.f32 %v5633, %v5634
    %v5636 = vand.u32 %v5635, 4294901760
    %5637 = vmatpush.msra.mxu0 %v5636
    %v5638 = vand.u32 %v5587, 4294901760
    %v5639 = vsub.f32 %v5587, %v5638
    %v5640 = vand.u32 %v5639, 4294901760
    %v5641 = vsub.f32 %v5639, %v5640
    %v5642 = vand.u32 %v5641, 4294901760
    %5643 = vmatpush.msra.mxu0 %v5642
    %v5644 = vand.u32 %v5586, 4294901760
    %v5645 = vsub.f32 %v5586, %v5644
    %v5646 = vand.u32 %v5645, 4294901760
    %v5647 = vsub.f32 %v5645, %v5646
    %v5648 = vand.u32 %v5647, 4294901760
    %5649 = vmatpush.msra.mxu0 %v5648
    %v5650 = vand.u32 %v5585, 4294901760
    %v5651 = vsub.f32 %v5585, %v5650
    %v5652 = vand.u32 %v5651, 4294901760
    %v5653 = vsub.f32 %v5651, %v5652
    %v5654 = vand.u32 %v5653, 4294901760
    %5655 = vmatpush.msra.mxu0 %v5654
    %v5656 = vand.u32 %v5584, 4294901760
    %v5657 = vsub.f32 %v5584, %v5656
    %v5658 = vand.u32 %v5657, 4294901760
    %v5659 = vsub.f32 %v5657, %v5658
    %v5660 = vand.u32 %v5659, 4294901760
    %5661 = vmatpush.msra.mxu0 %v5660
    %v5662 = vand.u32 %v5583, 4294901760
    %v5663 = vsub.f32 %v5583, %v5662
    %v5664 = vand.u32 %v5663, 4294901760
    %v5665 = vsub.f32 %v5663, %v5664
    %v5666 = vand.u32 %v5665, 4294901760
    %5667 = vmatpush.msra.mxu0 %v5666
    %v5668 = vand.u32 %v5582, 4294901760
    %v5669 = vsub.f32 %v5582, %v5668
    %v5670 = vand.u32 %v5669, 4294901760
    %v5671 = vsub.f32 %v5669, %v5670
    %v5672 = vand.u32 %v5671, 4294901760
    %5673 = vmatpush.msra.mxu0 %v5672
    %v5674 = vand.u32 %v5581, 4294901760
    %v5675 = vsub.f32 %v5581, %v5674
    %v5676 = vand.u32 %v5675, 4294901760
    %v5677 = vsub.f32 %v5675, %v5676
    %v5678 = vand.u32 %v5677, 4294901760
    %5679 = vmatpush.msra.mxu0 %v5678
    %v5680 = vand.u32 %v5580, 4294901760
    %v5681 = vsub.f32 %v5580, %v5680
    %v5682 = vand.u32 %v5681, 4294901760
    %v5683 = vsub.f32 %v5681, %v5682
    %v5684 = vand.u32 %v5683, 4294901760
    %5685 = vmatpush.msra.mxu0 %v5684
    %v5686 = vand.u32 %v5579, 4294901760
    %v5687 = vsub.f32 %v5579, %v5686
    %v5688 = vand.u32 %v5687, 4294901760
    %v5689 = vsub.f32 %v5687, %v5688
    %v5690 = vand.u32 %v5689, 4294901760
    %5691 = vmatpush.msra.mxu0 %v5690
    %v5692 = vand.u32 %v5578, 4294901760
    %v5693 = vsub.f32 %v5578, %v5692
    %v5694 = vand.u32 %v5693, 4294901760
    %v5695 = vsub.f32 %v5693, %v5694
    %v5696 = vand.u32 %v5695, 4294901760
    %5697 = vmatpush.msra.mxu0 %v5696
    %v5698 = vand.u32 %v5577, 4294901760
    %v5699 = vsub.f32 %v5577, %v5698
    %v5700 = vand.u32 %v5699, 4294901760
    %v5701 = vsub.f32 %v5699, %v5700
    %v5702 = vand.u32 %v5701, 4294901760
    %5703 = vmatpush.msra.mxu0 %v5702
    %v5704 = vand.u32 %v5576, 4294901760
    %v5705 = vsub.f32 %v5576, %v5704
    %v5706 = vand.u32 %v5705, 4294901760
    %v5707 = vsub.f32 %v5705, %v5706
    %v5708 = vand.u32 %v5707, 4294901760
    %5709 = vmatpush.msra.mxu0 %v5708
    %v5710 = vand.u32 %v5575, 4294901760
    %v5711 = vsub.f32 %v5575, %v5710
    %v5712 = vand.u32 %v5711, 4294901760
    %v5713 = vsub.f32 %v5711, %v5712
    %v5714 = vand.u32 %v5713, 4294901760
    %5715 = vmatpush.msra.mxu0 %v5714
    %v5716 = vand.u32 %v5574, 4294901760
    %v5717 = vsub.f32 %v5574, %v5716
    %v5718 = vand.u32 %v5717, 4294901760
    %v5719 = vsub.f32 %v5717, %v5718
    %v5720 = vand.u32 %v5719, 4294901760
    %5721 = vmatpush.msra.mxu0 %v5720
    %5722 = vmatmul.f32.gmra.mxu0 1.0
    %v5723 = vpop.f32.mrf.mxu0
    %v5724 = vadd.f32 %v5624, %v5723
    %5725 = vdwg.mxu0
    %v5726 = vand.u32 %v5589, 4294901760
    %v5727 = vsub.f32 %v5589, %v5726
    %5728 = vmatpush.msra.mxu0 %v5727
    %v5729 = vand.u32 %v5588, 4294901760
    %v5730 = vsub.f32 %v5588, %v5729
    %5731 = vmatpush.msra.mxu0 %v5730
    %v5732 = vand.u32 %v5587, 4294901760
    %v5733 = vsub.f32 %v5587, %v5732
    %5734 = vmatpush.msra.mxu0 %v5733
    %v5735 = vand.u32 %v5586, 4294901760
    %v5736 = vsub.f32 %v5586, %v5735
    %5737 = vmatpush.msra.mxu0 %v5736
    %v5738 = vand.u32 %v5585, 4294901760
    %v5739 = vsub.f32 %v5585, %v5738
    %5740 = vmatpush.msra.mxu0 %v5739
    %v5741 = vand.u32 %v5584, 4294901760
    %v5742 = vsub.f32 %v5584, %v5741
    %5743 = vmatpush.msra.mxu0 %v5742
    %v5744 = vand.u32 %v5583, 4294901760
    %v5745 = vsub.f32 %v5583, %v5744
    %5746 = vmatpush.msra.mxu0 %v5745
    %v5747 = vand.u32 %v5582, 4294901760
    %v5748 = vsub.f32 %v5582, %v5747
    %5749 = vmatpush.msra.mxu0 %v5748
    %v5750 = vand.u32 %v5581, 4294901760
    %v5751 = vsub.f32 %v5581, %v5750
    %5752 = vmatpush.msra.mxu0 %v5751
    %v5753 = vand.u32 %v5580, 4294901760
    %v5754 = vsub.f32 %v5580, %v5753
    %5755 = vmatpush.msra.mxu0 %v5754
    %v5756 = vand.u32 %v5579, 4294901760
    %v5757 = vsub.f32 %v5579, %v5756
    %5758 = vmatpush.msra.mxu0 %v5757
    %v5759 = vand.u32 %v5578, 4294901760
    %v5760 = vsub.f32 %v5578, %v5759
    %5761 = vmatpush.msra.mxu0 %v5760
    %v5762 = vand.u32 %v5577, 4294901760
    %v5763 = vsub.f32 %v5577, %v5762
    %5764 = vmatpush.msra.mxu0 %v5763
    %v5765 = vand.u32 %v5576, 4294901760
    %v5766 = vsub.f32 %v5576, %v5765
    %5767 = vmatpush.msra.mxu0 %v5766
    %v5768 = vand.u32 %v5575, 4294901760
    %v5769 = vsub.f32 %v5575, %v5768
    %5770 = vmatpush.msra.mxu0 %v5769
    %v5771 = vand.u32 %v5574, 4294901760
    %v5772 = vsub.f32 %v5574, %v5771
    %5773 = vmatpush.msra.mxu0 %v5772
    %5774 = vmatmul.f32.gmra.mxu0 0.0
    %v5775 = vpop.f32.mrf.mxu0
    %v5776 = vadd.f32 %v5724, %v5775
    %5777 = vdwg.mxu0
    %v5778 = vand.u32 %v5589, 4294901760
    %5779 = vmatpush.msra.mxu0 %v5778
    %v5780 = vand.u32 %v5588, 4294901760
    %5781 = vmatpush.msra.mxu0 %v5780
    %v5782 = vand.u32 %v5587, 4294901760
    %5783 = vmatpush.msra.mxu0 %v5782
    %v5784 = vand.u32 %v5586, 4294901760
    %5785 = vmatpush.msra.mxu0 %v5784
    %v5786 = vand.u32 %v5585, 4294901760
    %5787 = vmatpush.msra.mxu0 %v5786
    %v5788 = vand.u32 %v5584, 4294901760
    %5789 = vmatpush.msra.mxu0 %v5788
    %v5790 = vand.u32 %v5583, 4294901760
    %5791 = vmatpush.msra.mxu0 %v5790
    %v5792 = vand.u32 %v5582, 4294901760
    %5793 = vmatpush.msra.mxu0 %v5792
    %v5794 = vand.u32 %v5581, 4294901760
    %5795 = vmatpush.msra.mxu0 %v5794
    %v5796 = vand.u32 %v5580, 4294901760
    %5797 = vmatpush.msra.mxu0 %v5796
    %v5798 = vand.u32 %v5579, 4294901760
    %5799 = vmatpush.msra.mxu0 %v5798
    %v5800 = vand.u32 %v5578, 4294901760
    %5801 = vmatpush.msra.mxu0 %v5800
    %v5802 = vand.u32 %v5577, 4294901760
    %5803 = vmatpush.msra.mxu0 %v5802
    %v5804 = vand.u32 %v5576, 4294901760
    %5805 = vmatpush.msra.mxu0 %v5804
    %v5806 = vand.u32 %v5575, 4294901760
    %5807 = vmatpush.msra.mxu0 %v5806
    %v5808 = vand.u32 %v5574, 4294901760
    %5809 = vmatpush.msra.mxu0 %v5808
    %5810 = vmatmul.f32.gmra.mxu0 0.0
    %v5811 = vpop.f32.mrf.mxu0
    %v5812 = vadd.f32 %v5776, %v5811
    %5813 = vdwg.mxu0
    %v5814 = vand.u32 %v5589, 4294901760
    %v5815 = vsub.f32 %v5589, %v5814
    %v5816 = vand.u32 %v5815, 4294901760
    %5817 = vmatpush.msra.mxu0 %v5816
    %v5818 = vand.u32 %v5588, 4294901760
    %v5819 = vsub.f32 %v5588, %v5818
    %v5820 = vand.u32 %v5819, 4294901760
    %5821 = vmatpush.msra.mxu0 %v5820
    %v5822 = vand.u32 %v5587, 4294901760
    %v5823 = vsub.f32 %v5587, %v5822
    %v5824 = vand.u32 %v5823, 4294901760
    %5825 = vmatpush.msra.mxu0 %v5824
    %v5826 = vand.u32 %v5586, 4294901760
    %v5827 = vsub.f32 %v5586, %v5826
    %v5828 = vand.u32 %v5827, 4294901760
    %5829 = vmatpush.msra.mxu0 %v5828
    %v5830 = vand.u32 %v5585, 4294901760
    %v5831 = vsub.f32 %v5585, %v5830
    %v5832 = vand.u32 %v5831, 4294901760
    %5833 = vmatpush.msra.mxu0 %v5832
    %v5834 = vand.u32 %v5584, 4294901760
    %v5835 = vsub.f32 %v5584, %v5834
    %v5836 = vand.u32 %v5835, 4294901760
    %5837 = vmatpush.msra.mxu0 %v5836
    %v5838 = vand.u32 %v5583, 4294901760
    %v5839 = vsub.f32 %v5583, %v5838
    %v5840 = vand.u32 %v5839, 4294901760
    %5841 = vmatpush.msra.mxu0 %v5840
    %v5842 = vand.u32 %v5582, 4294901760
    %v5843 = vsub.f32 %v5582, %v5842
    %v5844 = vand.u32 %v5843, 4294901760
    %5845 = vmatpush.msra.mxu0 %v5844
    %v5846 = vand.u32 %v5581, 4294901760
    %v5847 = vsub.f32 %v5581, %v5846
    %v5848 = vand.u32 %v5847, 4294901760
    %5849 = vmatpush.msra.mxu0 %v5848
    %v5850 = vand.u32 %v5580, 4294901760
    %v5851 = vsub.f32 %v5580, %v5850
    %v5852 = vand.u32 %v5851, 4294901760
    %5853 = vmatpush.msra.mxu0 %v5852
    %v5854 = vand.u32 %v5579, 4294901760
    %v5855 = vsub.f32 %v5579, %v5854
    %v5856 = vand.u32 %v5855, 4294901760
    %5857 = vmatpush.msra.mxu0 %v5856
    %v5858 = vand.u32 %v5578, 4294901760
    %v5859 = vsub.f32 %v5578, %v5858
    %v5860 = vand.u32 %v5859, 4294901760
    %5861 = vmatpush.msra.mxu0 %v5860
    %v5862 = vand.u32 %v5577, 4294901760
    %v5863 = vsub.f32 %v5577, %v5862
    %v5864 = vand.u32 %v5863, 4294901760
    %5865 = vmatpush.msra.mxu0 %v5864
    %v5866 = vand.u32 %v5576, 4294901760
    %v5867 = vsub.f32 %v5576, %v5866
    %v5868 = vand.u32 %v5867, 4294901760
    %5869 = vmatpush.msra.mxu0 %v5868
    %v5870 = vand.u32 %v5575, 4294901760
    %v5871 = vsub.f32 %v5575, %v5870
    %v5872 = vand.u32 %v5871, 4294901760
    %5873 = vmatpush.msra.mxu0 %v5872
    %v5874 = vand.u32 %v5574, 4294901760
    %v5875 = vsub.f32 %v5574, %v5874
    %v5876 = vand.u32 %v5875, 4294901760
    %5877 = vmatpush.msra.mxu0 %v5876
    %5878 = vmatmul.f32.gmra.mxu0 1.0
    %v5879 = vpop.f32.mrf.mxu0
    %v5880 = vadd.f32 %v5812, %v5879
    %5881 = vdwg.mxu0
    %v5882 = vand.u32 %v5589, 4294901760
    %5883 = vmatpush.msra.mxu0 %v5882
    %v5884 = vand.u32 %v5588, 4294901760
    %5885 = vmatpush.msra.mxu0 %v5884
    %v5886 = vand.u32 %v5587, 4294901760
    %5887 = vmatpush.msra.mxu0 %v5886
    %v5888 = vand.u32 %v5586, 4294901760
    %5889 = vmatpush.msra.mxu0 %v5888
    %v5890 = vand.u32 %v5585, 4294901760
    %5891 = vmatpush.msra.mxu0 %v5890
    %v5892 = vand.u32 %v5584, 4294901760
    %5893 = vmatpush.msra.mxu0 %v5892
    %v5894 = vand.u32 %v5583, 4294901760
    %5895 = vmatpush.msra.mxu0 %v5894
    %v5896 = vand.u32 %v5582, 4294901760
    %5897 = vmatpush.msra.mxu0 %v5896
    %v5898 = vand.u32 %v5581, 4294901760
    %5899 = vmatpush.msra.mxu0 %v5898
    %v5900 = vand.u32 %v5580, 4294901760
    %5901 = vmatpush.msra.mxu0 %v5900
    %v5902 = vand.u32 %v5579, 4294901760
    %5903 = vmatpush.msra.mxu0 %v5902
    %v5904 = vand.u32 %v5578, 4294901760
    %5905 = vmatpush.msra.mxu0 %v5904
    %v5906 = vand.u32 %v5577, 4294901760
    %5907 = vmatpush.msra.mxu0 %v5906
    %v5908 = vand.u32 %v5576, 4294901760
    %5909 = vmatpush.msra.mxu0 %v5908
    %v5910 = vand.u32 %v5575, 4294901760
    %5911 = vmatpush.msra.mxu0 %v5910
    %v5912 = vand.u32 %v5574, 4294901760
    %5913 = vmatpush.msra.mxu0 %v5912
    %5914 = vmatmul.f32.gmra.mxu0 1.0
    %v5915 = vpop.f32.mrf.mxu0
    %v5916 = vadd.f32 %v5880, %v5915
    %5917 = vdwg.mxu0
    %v5918 = vmul.f32 %v5572, 0.0078125
    %v5919 = vmul.f32 %v5916, 0.0078125
    %v5920 = vmul.f32 %v5918, %v5918
    %v5921 = vsub.f32 %v5919, %v5920
    %v5922 = vmax.f32 %v5921, 0.0
    %v5923 = vadd.f32 %v5922, 1e-05
    %v5924 = vrsqrt.pop %v5923
    %v5925 = vmul.f32 %v5924, %v5923
    %v5926 = vmul.f32 %v5925, %v5924
    %v5927 = vmul.f32 0.5, %v5926
    %v5928 = vsub.f32 1.5, %v5927
    %v5929 = vmul.f32 %v5924, %v5928
    %vm5930 = vweird.f32 %v5923
    %vm5931 = vweird.f32 %v5924
    %vm5932 = vmor %vm5930, %vm5931
    %v5933 = vsel %vm5932, %v5924, %v5929
    %v5934 = vmul.f32 %v5244, %v5933
    %v5935 = vmul.f32 %v5918, %v5934
    %v5936 = vsub.f32 %v5245, %v5935
    %v5937 = vperm.slane %v5934, 0
    %v5938 = vmul.f32 %v5182, %v5937
    %v5939 = vmul.f32 %v5186, %v5937
    %v5940 = vmul.f32 %v5190, %v5937
    %v5941 = vmul.f32 %v5194, %v5937
    %v5942 = vmul.f32 %v5198, %v5937
    %v5943 = vmul.f32 %v5202, %v5937
    %v5944 = vmul.f32 %v5206, %v5937
    %v5945 = vmul.f32 %v5210, %v5937
    %v5946 = vmul.f32 %v5214, %v5937
    %v5947 = vmul.f32 %v5218, %v5937
    %v5948 = vmul.f32 %v5222, %v5937
    %v5949 = vmul.f32 %v5226, %v5937
    %v5950 = vmul.f32 %v5230, %v5937
    %v5951 = vmul.f32 %v5234, %v5937
    %v5952 = vmul.f32 %v5238, %v5937
    %v5953 = vmul.f32 %v5242, %v5937
    %v5954 = vperm.slane %v5936, 0
    %v5955 = vadd.f32 %v5938, %v5954
    %v5956 = vadd.f32 %v5939, %v5954
    %v5957 = vadd.f32 %v5940, %v5954
    %v5958 = vadd.f32 %v5941, %v5954
    %v5959 = vadd.f32 %v5942, %v5954
    %v5960 = vadd.f32 %v5943, %v5954
    %v5961 = vadd.f32 %v5944, %v5954
    %v5962 = vadd.f32 %v5945, %v5954
    %v5963 = vadd.f32 %v5946, %v5954
    %v5964 = vadd.f32 %v5947, %v5954
    %v5965 = vadd.f32 %v5948, %v5954
    %v5966 = vadd.f32 %v5949, %v5954
    %v5967 = vadd.f32 %v5950, %v5954
    %v5968 = vadd.f32 %v5951, %v5954
    %v5969 = vadd.f32 %v5952, %v5954
    %v5970 = vadd.f32 %v5953, %v5954
    %v5971 = vmax.f32 %v5955, 0.0
    %v5972 = vmax.f32 %v5956, 0.0
    %v5973 = vmax.f32 %v5957, 0.0
    %v5974 = vmax.f32 %v5958, 0.0
    %v5975 = vmax.f32 %v5959, 0.0
    %v5976 = vmax.f32 %v5960, 0.0
    %v5977 = vmax.f32 %v5961, 0.0
    %v5978 = vmax.f32 %v5962, 0.0
    %v5979 = vmax.f32 %v5963, 0.0
    %v5980 = vmax.f32 %v5964, 0.0
    %v5981 = vmax.f32 %v5965, 0.0
    %v5982 = vmax.f32 %v5966, 0.0
    %v5983 = vmax.f32 %v5967, 0.0
    %v5984 = vmax.f32 %v5968, 0.0
    %v5985 = vmax.f32 %v5969, 0.0
    %v5986 = vmax.f32 %v5970, 0.0
    %v5987 = vadd.f32 %v5971, %v2629
    %v5988 = vadd.f32 %v5972, %v2644
    %v5989 = vadd.f32 %v5973, %v2659
    %v5990 = vadd.f32 %v5974, %v2674
    %v5991 = vadd.f32 %v5975, %v2689
    %v5992 = vadd.f32 %v5976, %v2704
    %v5993 = vadd.f32 %v5977, %v2719
    %v5994 = vadd.f32 %v5978, %v2734
    %v5995 = vadd.f32 %v5979, %v2749
    %v5996 = vadd.f32 %v5980, %v2764
    %v5997 = vadd.f32 %v5981, %v2779
    %v5998 = vadd.f32 %v5982, %v2794
    %v5999 = vadd.f32 %v5983, %v2809
    %v6000 = vadd.f32 %v5984, %v2824
    %v6001 = vadd.f32 %v5985, %v2839
    %v6002 = vadd.f32 %v5986, %v2854
    %6003 = vst [vmem:[#allocation8] sm:$0xff] %v5987
    %6004 = vst [vmem:[#allocation8 + $0x8] sm:$0xff] %v5988
    %6005 = vst [vmem:[#allocation8 + $0x10] sm:$0xff] %v5989
    %6006 = vst [vmem:[#allocation8 + $0x18] sm:$0xff] %v5990
    %6007 = vst [vmem:[#allocation8 + $0x20] sm:$0xff] %v5991
    %6008 = vst [vmem:[#allocation8 + $0x28] sm:$0xff] %v5992
    %6009 = vst [vmem:[#allocation8 + $0x30] sm:$0xff] %v5993
    %6010 = vst [vmem:[#allocation8 + $0x38] sm:$0xff] %v5994
    %6011 = vst [vmem:[#allocation8 + $0x40] sm:$0xff] %v5995
    %6012 = vst [vmem:[#allocation8 + $0x48] sm:$0xff] %v5996
    %6013 = vst [vmem:[#allocation8 + $0x50] sm:$0xff] %v5997
    %6014 = vst [vmem:[#allocation8 + $0x58] sm:$0xff] %v5998
    %6015 = vst [vmem:[#allocation8 + $0x60] sm:$0xff] %v5999
    %6016 = vst [vmem:[#allocation8 + $0x68] sm:$0xff] %v6000
    %6017 = vst [vmem:[#allocation8 + $0x70] sm:$0xff] %v6001
    %6018 = vst [vmem:[#allocation8 + $0x78] sm:$0xff] %v6002
    // Predicated region
    $region26: #{tpu_custom_call.1} parent=1 // pred_check
      _
    $region27: #{tpu_custom_call.1} parent=1 // pred_check_branch
      %6020 = sbr.rel (0) target = $region29
    $region28: #{tpu_custom_call.1} parent=1 // pred_region
      %6022 = vsyncadd [#allocation4], 0
      %s6023 = sshll.u32 [#allocation8], 4
      %s6024 = int_to_ptr.vmem [resolvable:$true] %s6023
      %s6025 = sshll.u32 %s3, 4
      %s6026 = int_to_ptr.hbm [resolvable:$true] %s6025
      %6031 = dma.vmem_to_hbm [thread:$0]  %s6024, 2048, %s6026, [#allocation4], 128, 128, 8
    $region29: #{tpu_custom_call.1} parent=1 // pred_fallthru
      _
    // Predicated region
    $region30: #{tpu_custom_call.1} parent=1 // pred_check
      _
    $region31: #{tpu_custom_call.1} parent=1 // pred_check_branch
      %6033 = sbr.rel (0) target = $region33
    $region32: #{tpu_custom_call.1} parent=1 // pred_region
      %6035 = dma.done [#allocation4], 2048
    $region33: #{tpu_custom_call.1} parent=1 // pred_fallthru
      _
    %6036 = vsyncpa [#allocation3], 1
    %6037 = vsyncpa [#allocation6], 1
    %6038 = vsyncpa [#allocation4], 1

</llo_original>
